<compile_context>
chip_gen: v5e
topology: v5e:2x2
jax: 0.10.0
libtpu: 0.0.40
codegen_flags: <defaults>
</compile_context>

<pallas_src>
import functools

import jax
import jax.numpy as jnp
from jax.experimental import pallas as pl
from jax.experimental.pallas import tpu as pltpu


def _round_up(x, m):
    return (x + m - 1) // m * m


def parity_lstm_kernel(x_ref, lastidx_ref, wih_ref, bias_ref, whh_ref, out_ref,
                       *, hidden, gate_w):
    """LSTM recurrence over one batch tile, packed-gate layout.

    Ref shapes (all VMEM):
      x_ref       (T, TB, 1)  f32   time-major inputs for this batch tile
      lastidx_ref (TB, 1)     i32   (x_lens - 1) mod T  (-1 for padded rows)
      wih_ref     (1, GW)     f32   W_ih packed [i|f|g|o] in lanes [0,4H), 0-pad
      bias_ref    (1, GW)     f32   b_ih + b_hh, same packing
      whh_ref     (GW, GW)    f32   W_hh^T; rows [0,H) / cols [0,4H) are real
      out_ref     (TB, GW)    f32   hidden state at the last valid timestep
                                    (real data in lanes [0, H))
    """
    H = hidden
    GW = gate_w
    T, TB, _ = x_ref.shape

    # Loop-invariant operands, loaded once.
    whh = whh_ref[...]                      # (GW, GW)
    w_ih = wih_ref[...]                     # (1, GW)
    bias = bias_ref[...]                    # (1, GW)
    last_idx = lastidx_ref[...]             # (TB, 1) int32

    # Lane mask selecting the 'g' (cell-candidate) gate block -> tanh; the
    # other three gates use sigmoid.  Hoisted (JAX does not CSE iota/broadcast
    # inside loops).
    lane = jax.lax.broadcasted_iota(jnp.int32, (TB, GW), 1)
    g_mask = (lane >= 2 * H) & (lane < 3 * H)

    h0 = jnp.zeros((TB, GW), jnp.float32)
    c0 = jnp.zeros((TB, GW), jnp.float32)
    lh0 = jnp.zeros((TB, GW), jnp.float32)

    def sigmoid_t(z):
        # sigmoid(z) = 0.5 * (tanh(0.5 z) + 1): one EUP op per call.
        return 0.5 * jnp.tanh(0.5 * z) + 0.5

    def step(t, carry):
        h, c, last_h = carry
        x_col = x_ref[t]                                           # (TB, 1)
        # Rank-1 input term + bias computed in-kernel (one broadcast vmul/vadd,
        # hidden under the MXU on the serial path) instead of a pre-materialized
        # (T, B, 4*GW) slab in HBM.
        gates = x_col * w_ih + bias + jnp.dot(
            h, whh, preferred_element_type=jnp.float32,
            precision=jax.lax.Precision.HIGHEST)                    # (TB, GW)
        # Two EUP ops cover all four gates; select tanh for the 'g' block.
        act = jnp.where(g_mask, jnp.tanh(gates), sigmoid_t(gates))
        # Packed gates: i @ [0,H), f @ [H,2H), g @ [2H,3H), o @ [3H,4H).
        # Rotate each gate block down into lanes [0,H) (XLU slot, ~free here).
        f_a = pltpu.roll(act, GW - H, axis=1)
        g_a = pltpu.roll(act, GW - 2 * H, axis=1)
        o_a = pltpu.roll(act, GW - 3 * H, axis=1)
        # Lanes [0,H) carry the real state; lanes [H,GW) hold bounded garbage
        # that never leaks back (whh rows >= H are zero) and is sliced off in
        # the wrapper.
        c_new = f_a * c + act * g_a              # act lanes [0,H) hold gate i
        h_new = o_a * jnp.tanh(c_new)
        # Select the hidden state at the per-sequence last valid timestep.
        # (TB, 1) compare broadcast inside where; off the h->h critical path.
        last_h = jnp.where(last_idx == t, h_new, last_h)
        return h_new, c_new, last_h

    unroll = True if T <= 16 else 8
    _, _, last_h = jax.lax.fori_loop(0, T, step, (h0, c0, lh0), unroll=unroll)
    out_ref[...] = last_h                         # lane-dense (TB, GW) store


def parity_lstm_forward(x, x_lens, params, *, hidden_dim):
    """x: (B, T, 1) f32, x_lens: (B,) int -> (B, 2) f32 logits."""
    B, T, C = x.shape
    assert C == 1
    H = hidden_dim
    GW = _round_up(4 * H, 128)     # packed gate width: one 128-lane block if H<=32

    # Batch padding / tiling.  Aim for >= 2 batch tiles when the batch allows it
    # so the "parallel" grid axis can feed both TensorCores on v7x.
    B_pad8 = _round_up(max(B, 8), 8)
    tile_b = min(256, B_pad8)
    if B_pad8 >= 16:
        tile_b = min(tile_b, _round_up(B_pad8 // 2, 8))
    B_pad = _round_up(B_pad8, tile_b)
    n_b = B_pad // tile_b

    # Time-major, batch-padded input slab (T, B_pad, 1): only T*B_pad*4 bytes of
    # HBM traffic into the kernel (vs T*B_pad*4*GW*4 for materialized pre-gates).
    x2d = x[..., 0].astype(jnp.float32)                               # (B, T)
    x_tb = jnp.zeros((T, B_pad, 1), jnp.float32).at[:, :B, 0].set(x2d.T)

    # (x_lens - 1) mod T mimics PyTorch's negative-index wrap for x_lens == 0.
    # NOTE: x_lens > T would silently wrap here, where PyTorch would raise.
    li = (x_lens.astype(jnp.int32) - 1) % T
    last_idx = jnp.full((B_pad, 1), -1, jnp.int32).at[:B, 0].set(li)

    # --- weight prep: packed gate layout [i|f|g|o] in 4H lanes, 0-pad to GW ---
    w_ih = params["w_ih"].astype(jnp.float32)                         # (4H, 1)
    w_hh = params["w_hh"].astype(jnp.float32)                         # (4H, H)
    bias = (params["b_ih"] + params["b_hh"]).astype(jnp.float32)      # (4H,)

    w_ih_row = jnp.pad(w_ih[:, 0], (0, GW - 4 * H)).reshape(1, GW)
    bias_row = jnp.pad(bias, (0, GW - 4 * H)).reshape(1, GW)
    # W_hh^T: (H, 4H) -> zero-pad to (GW, GW).  Zero rows >= H guarantee that
    # garbage hidden lanes never contribute; zero cols >= 4H keep pad gates at 0.
    whh_pack = jnp.pad(w_hh.T, ((0, GW - H), (0, GW - 4 * H)))        # (GW, GW)

    kernel = functools.partial(parity_lstm_kernel, hidden=H, gate_w=GW)

    last_h_pad = pl.pallas_call(
        kernel,
        out_shape=jax.ShapeDtypeStruct((B_pad, GW), jnp.float32),
        grid_spec=pltpu.PrefetchScalarGridSpec(
            num_scalar_prefetch=0,
            grid=(n_b,),
            in_specs=[
                pl.BlockSpec((T, tile_b, 1), lambda b: (0, b, 0)),
                pl.BlockSpec((tile_b, 1), lambda b: (b, 0)),
                pl.BlockSpec((1, GW), lambda b: (0, 0)),
                pl.BlockSpec((1, GW), lambda b: (0, 0)),
                pl.BlockSpec((GW, GW), lambda b: (0, 0)),
            ],
            out_specs=pl.BlockSpec((tile_b, GW), lambda b: (b, 0)),
        ),
        compiler_params=pltpu.CompilerParams(
            dimension_semantics=("parallel",)),
    )(x_tb, last_idx, w_ih_row, bias_row, whh_pack)

    # Tiny (H, 2) head stays in XLA: a 2-wide in-kernel output would force
    # masked partial stores and waste a full MXU pass.
    last_h = last_h_pad[:B, :H]
    return last_h @ params["w_lin"].T + params["b_lin"]


def init_params(key, hidden_dim):
    """Deterministic init matching PyTorch LSTM/Linear shapes."""
    H = hidden_dim
    k = 1.0 / jnp.sqrt(jnp.float32(H))
    ks = jax.random.split(key, 6)
    u = lambda kk, shape: jax.random.uniform(kk, shape, jnp.float32, -k, k)
    return {
        "w_ih": u(ks[0], (4 * H, 1)),
        "w_hh": u(ks[1], (4 * H, H)),
        "b_ih": u(ks[2], (4 * H,)),
        "b_hh": u(ks[3], (4 * H,)),
        "w_lin": u(ks[4], (2, H)),
        "b_lin": u(ks[5], (2,)),
    }


def reference_forward(x, x_lens, params):
    """Pure-JAX reference (lax.scan LSTM) for correctness checking."""
    B, T, _ = x.shape
    H = params["w_hh"].shape[1]
    w_ih_t = params["w_ih"].T
    w_hh_t = params["w_hh"].T
    bias = params["b_ih"] + params["b_hh"]
    hi = jax.lax.Precision.HIGHEST

    def step(carry, x_t):                        # x_t: (B, 1)
        h, c = carry
        gates = (jnp.dot(x_t, w_ih_t, precision=hi)
                 + jnp.dot(h, w_hh_t, precision=hi) + bias)
        i = jax.nn.sigmoid(gates[:, 0 * H:1 * H])
        f = jax.nn.sigmoid(gates[:, 1 * H:2 * H])
        g = jnp.tanh(gates[:, 2 * H:3 * H])
        o = jax.nn.sigmoid(gates[:, 3 * H:4 * H])
        c = f * c + i * g
        h = o * jnp.tanh(c)
        return (h, c), h

    init = (jnp.zeros((B, H), jnp.float32), jnp.zeros((B, H), jnp.float32))
    _, outs = jax.lax.scan(step, init, jnp.swapaxes(x, 0, 1))    # (T, B, H)
    outs = jnp.swapaxes(outs, 0, 1)                               # (B, T, H)
    last_hidden = outs[jnp.arange(B), x_lens - 1]                 # (B, H)
    return last_hidden @ params["w_lin"].T + params["b_lin"]


if __name__ == "__main__":
    HIDDEN_DIM = 16
    B, T = 2, 8

    key = jax.random.PRNGKey(0)
    k_param, k_x = jax.random.split(key)
    params = init_params(k_param, HIDDEN_DIM)

    # Binary parity-style input sequences, shape (B, T, 1), plus lengths.
    x = jax.random.bernoulli(k_x, 0.5, (B, T, 1)).astype(jnp.float32)
    x_lens = jnp.array([T, 5], dtype=jnp.int32)

    out = parity_lstm_forward(x, x_lens, params, hidden_dim=HIDDEN_DIM)
    out = jax.block_until_ready(out)

    ref = reference_forward(x, x_lens, params)
    assert out.shape == (B, 2)
    assert jnp.allclose(out, ref, atol=2e-4, rtol=2e-4), (out, ref)

    print("KERNEL_OK")
</pallas_src>

<mosaic_0001>
module attributes {stable_mosaic.version = 11 : i64} {
  func.func @parity_lstm_kernel(%arg0: i32, %arg1: memref<8x8x1xf32, #tpu.memory_space<vmem>>, %arg2: memref<8x1xi32, #tpu.memory_space<vmem>>, %arg3: memref<1x128xf32, #tpu.memory_space<vmem>>, %arg4: memref<1x128xf32, #tpu.memory_space<vmem>>, %arg5: memref<128x128xf32, #tpu.memory_space<vmem>>, %arg6: memref<8x128xf32, #tpu.memory_space<vmem>>) attributes {dimension_semantics = [#tpu.dimension_semantics<parallel>], iteration_bounds = array<i64: 1>, scalar_prefetch = 0 : i64, scratch_operands = 0 : i64, tpu.core_type = #tpu.core_type<tc>, window_params = [{transform_indices = @transform_0, window_bounds = array<i64: 8, 8, 1>}, {transform_indices = @transform_1, window_bounds = array<i64: 8, 1>}, {pipeline_mode = #tpu.pipeline_mode<synchronous>, transform_indices = @transform_2, window_bounds = array<i64: 1, 128>}, {pipeline_mode = #tpu.pipeline_mode<synchronous>, transform_indices = @transform_3, window_bounds = array<i64: 1, 128>}, {pipeline_mode = #tpu.pipeline_mode<synchronous>, transform_indices = @transform_4, window_bounds = array<i64: 128, 128>}, {transform_indices = @transform_5, window_bounds = array<i64: 8, 128>}]} {
    %c0 = arith.constant 0 : index
    %c0_0 = arith.constant 0 : index
    %0 = vector.load %arg5[%c0, %c0_0] : memref<128x128xf32, #tpu.memory_space<vmem>>, vector<128x128xf32>
    %c0_1 = arith.constant 0 : index
    %c0_2 = arith.constant 0 : index
    %1 = vector.load %arg3[%c0_1, %c0_2] : memref<1x128xf32, #tpu.memory_space<vmem>>, vector<1x128xf32>
    %c0_3 = arith.constant 0 : index
    %c0_4 = arith.constant 0 : index
    %2 = vector.load %arg4[%c0_3, %c0_4] : memref<1x128xf32, #tpu.memory_space<vmem>>, vector<1x128xf32>
    %c0_5 = arith.constant 0 : index
    %c0_6 = arith.constant 0 : index
    %3 = vector.load %arg2[%c0_5, %c0_6] : memref<8x1xi32, #tpu.memory_space<vmem>>, vector<8x1xi32>
    %4 = tpu.iota {dimensions = array<i32: 1>} : vector<8x128xi32>
    %c32_i32 = arith.constant 32 : i32
    %5 = vector.broadcast %c32_i32 : i32 to vector<8x128xi32>
    %6 = arith.cmpi sge, %4, %5 : vector<8x128xi32>
    %c48_i32 = arith.constant 48 : i32
    %7 = vector.broadcast %c48_i32 : i32 to vector<8x128xi32>
    %8 = arith.cmpi slt, %4, %7 : vector<8x128xi32>
    %9 = arith.andi %6, %8 : vector<8x128xi1>
    %cst = arith.constant 0.000000e+00 : f32
    %10 = vector.broadcast %cst : f32 to vector<8x128xf32>
    %cst_7 = arith.constant 0.000000e+00 : f32
    %11 = vector.broadcast %cst_7 : f32 to vector<8x128xf32>
    %cst_8 = arith.constant 0.000000e+00 : f32
    %12 = vector.broadcast %cst_8 : f32 to vector<8x128xf32>
    %c0_i32 = arith.constant 0 : i32
    %13 = arith.index_cast %c0_i32 : i32 to index
    %c0_9 = arith.constant 0 : index
    %c0_10 = arith.constant 0 : index
    %14 = vector.load %arg1[%13, %c0_9, %c0_10] : memref<8x8x1xf32, #tpu.memory_space<vmem>>, vector<1x8x1xf32>
    %15 = vector.shape_cast %14 : vector<1x8x1xf32> to vector<8x1xf32>
    %16 = vector.broadcast %15 : vector<8x1xf32> to vector<8x128xf32>
    %17 = vector.broadcast %1 : vector<1x128xf32> to vector<8x128xf32>
    %18 = arith.mulf %16, %17 : vector<8x128xf32>
    %19 = vector.broadcast %2 : vector<1x128xf32> to vector<8x128xf32>
    %20 = arith.addf %18, %19 : vector<8x128xf32>
    %cst_11 = arith.constant dense<0.000000e+00> : vector<8x128xf32>
    %21 = tpu.matmul %10, %0, %cst_11 {dimension_numbers = #tpu.dot_dimension_numbers<[1], [0], [0], [1], [0, 0, 1, 1], [], []>, precision = #tpu.contract_precision<fp32>} : vector<8x128xf32>, vector<128x128xf32>, vector<8x128xf32> -> vector<8x128xf32>
    %22 = arith.addf %20, %21 : vector<8x128xf32>
    %23 = math.tanh %22 : vector<8x128xf32>
    %cst_12 = arith.constant 5.000000e-01 : f32
    %24 = vector.broadcast %cst_12 : f32 to vector<8x128xf32>
    %25 = arith.mulf %24, %22 : vector<8x128xf32>
    %26 = math.tanh %25 : vector<8x128xf32>
    %cst_13 = arith.constant 5.000000e-01 : f32
    %27 = vector.broadcast %cst_13 : f32 to vector<8x128xf32>
    %28 = arith.mulf %27, %26 : vector<8x128xf32>
    %cst_14 = arith.constant 5.000000e-01 : f32
    %29 = vector.broadcast %cst_14 : f32 to vector<8x128xf32>
    %30 = arith.addf %28, %29 : vector<8x128xf32>
    %31 = arith.select %9, %23, %30 : vector<8x128xi1>, vector<8x128xf32>
    %c112_i32 = arith.constant 112 : i32
    %32 = tpu.dynamic_rotate %31 by %c112_i32 dim 1 : vector<8x128xf32>, i32 -> vector<8x128xf32>
    %c96_i32 = arith.constant 96 : i32
    %33 = tpu.dynamic_rotate %31 by %c96_i32 dim 1 : vector<8x128xf32>, i32 -> vector<8x128xf32>
    %c80_i32 = arith.constant 80 : i32
    %34 = tpu.dynamic_rotate %31 by %c80_i32 dim 1 : vector<8x128xf32>, i32 -> vector<8x128xf32>
    %35 = arith.mulf %32, %11 : vector<8x128xf32>
    %36 = arith.mulf %31, %33 : vector<8x128xf32>
    %37 = arith.addf %35, %36 : vector<8x128xf32>
    %38 = math.tanh %37 : vector<8x128xf32>
    %39 = arith.mulf %34, %38 : vector<8x128xf32>
    %40 = vector.broadcast %c0_i32 : i32 to vector<8x1xi32>
    %41 = arith.cmpi eq, %3, %40 : vector<8x1xi32>
    %42 = vector.shape_cast %41 : vector<8x1xi1> to vector<8x1xi1>
    %43 = vector.broadcast %42 : vector<8x1xi1> to vector<8x128xi1>
    %44 = arith.select %43, %39, %12 : vector<8x128xi1>, vector<8x128xf32>
    %c1_i32 = arith.constant 1 : i32
    %45 = arith.index_cast %c1_i32 : i32 to index
    %c0_15 = arith.constant 0 : index
    %c0_16 = arith.constant 0 : index
    %46 = vector.load %arg1[%45, %c0_15, %c0_16] : memref<8x8x1xf32, #tpu.memory_space<vmem>>, vector<1x8x1xf32>
    %47 = vector.shape_cast %46 : vector<1x8x1xf32> to vector<8x1xf32>
    %48 = vector.broadcast %47 : vector<8x1xf32> to vector<8x128xf32>
    %49 = vector.broadcast %1 : vector<1x128xf32> to vector<8x128xf32>
    %50 = arith.mulf %48, %49 : vector<8x128xf32>
    %51 = vector.broadcast %2 : vector<1x128xf32> to vector<8x128xf32>
    %52 = arith.addf %50, %51 : vector<8x128xf32>
    %cst_17 = arith.constant dense<0.000000e+00> : vector<8x128xf32>
    %53 = tpu.matmul %39, %0, %cst_17 {dimension_numbers = #tpu.dot_dimension_numbers<[1], [0], [0], [1], [0, 0, 1, 1], [], []>, precision = #tpu.contract_precision<fp32>} : vector<8x128xf32>, vector<128x128xf32>, vector<8x128xf32> -> vector<8x128xf32>
    %54 = arith.addf %52, %53 : vector<8x128xf32>
    %55 = math.tanh %54 : vector<8x128xf32>
    %cst_18 = arith.constant 5.000000e-01 : f32
    %56 = vector.broadcast %cst_18 : f32 to vector<8x128xf32>
    %57 = arith.mulf %56, %54 : vector<8x128xf32>
    %58 = math.tanh %57 : vector<8x128xf32>
    %cst_19 = arith.constant 5.000000e-01 : f32
    %59 = vector.broadcast %cst_19 : f32 to vector<8x128xf32>
    %60 = arith.mulf %59, %58 : vector<8x128xf32>
    %cst_20 = arith.constant 5.000000e-01 : f32
    %61 = vector.broadcast %cst_20 : f32 to vector<8x128xf32>
    %62 = arith.addf %60, %61 : vector<8x128xf32>
    %63 = arith.select %9, %55, %62 : vector<8x128xi1>, vector<8x128xf32>
    %c112_i32_21 = arith.constant 112 : i32
    %64 = tpu.dynamic_rotate %63 by %c112_i32_21 dim 1 : vector<8x128xf32>, i32 -> vector<8x128xf32>
    %c96_i32_22 = arith.constant 96 : i32
    %65 = tpu.dynamic_rotate %63 by %c96_i32_22 dim 1 : vector<8x128xf32>, i32 -> vector<8x128xf32>
    %c80_i32_23 = arith.constant 80 : i32
    %66 = tpu.dynamic_rotate %63 by %c80_i32_23 dim 1 : vector<8x128xf32>, i32 -> vector<8x128xf32>
    %67 = arith.mulf %64, %37 : vector<8x128xf32>
    %68 = arith.mulf %63, %65 : vector<8x128xf32>
    %69 = arith.addf %67, %68 : vector<8x128xf32>
    %70 = math.tanh %69 : vector<8x128xf32>
    %71 = arith.mulf %66, %70 : vector<8x128xf32>
    %72 = vector.broadcast %c1_i32 : i32 to vector<8x1xi32>
    %73 = arith.cmpi eq, %3, %72 : vector<8x1xi32>
    %74 = vector.shape_cast %73 : vector<8x1xi1> to vector<8x1xi1>
    %75 = vector.broadcast %74 : vector<8x1xi1> to vector<8x128xi1>
    %76 = arith.select %75, %71, %44 : vector<8x128xi1>, vector<8x128xf32>
    %c2_i32 = arith.constant 2 : i32
    %77 = arith.index_cast %c2_i32 : i32 to index
    %c0_24 = arith.constant 0 : index
    %c0_25 = arith.constant 0 : index
    %78 = vector.load %arg1[%77, %c0_24, %c0_25] : memref<8x8x1xf32, #tpu.memory_space<vmem>>, vector<1x8x1xf32>
    %79 = vector.shape_cast %78 : vector<1x8x1xf32> to vector<8x1xf32>
    %80 = vector.broadcast %79 : vector<8x1xf32> to vector<8x128xf32>
    %81 = vector.broadcast %1 : vector<1x128xf32> to vector<8x128xf32>
    %82 = arith.mulf %80, %81 : vector<8x128xf32>
    %83 = vector.broadcast %2 : vector<1x128xf32> to vector<8x128xf32>
    %84 = arith.addf %82, %83 : vector<8x128xf32>
    %cst_26 = arith.constant dense<0.000000e+00> : vector<8x128xf32>
    %85 = tpu.matmul %71, %0, %cst_26 {dimension_numbers = #tpu.dot_dimension_numbers<[1], [0], [0], [1], [0, 0, 1, 1], [], []>, precision = #tpu.contract_precision<fp32>} : vector<8x128xf32>, vector<128x128xf32>, vector<8x128xf32> -> vector<8x128xf32>
    %86 = arith.addf %84, %85 : vector<8x128xf32>
    %87 = math.tanh %86 : vector<8x128xf32>
    %cst_27 = arith.constant 5.000000e-01 : f32
    %88 = vector.broadcast %cst_27 : f32 to vector<8x128xf32>
    %89 = arith.mulf %88, %86 : vector<8x128xf32>
    %90 = math.tanh %89 : vector<8x128xf32>
    %cst_28 = arith.constant 5.000000e-01 : f32
    %91 = vector.broadcast %cst_28 : f32 to vector<8x128xf32>
    %92 = arith.mulf %91, %90 : vector<8x128xf32>
    %cst_29 = arith.constant 5.000000e-01 : f32
    %93 = vector.broadcast %cst_29 : f32 to vector<8x128xf32>
    %94 = arith.addf %92, %93 : vector<8x128xf32>
    %95 = arith.select %9, %87, %94 : vector<8x128xi1>, vector<8x128xf32>
    %c112_i32_30 = arith.constant 112 : i32
    %96 = tpu.dynamic_rotate %95 by %c112_i32_30 dim 1 : vector<8x128xf32>, i32 -> vector<8x128xf32>
    %c96_i32_31 = arith.constant 96 : i32
    %97 = tpu.dynamic_rotate %95 by %c96_i32_31 dim 1 : vector<8x128xf32>, i32 -> vector<8x128xf32>
    %c80_i32_32 = arith.constant 80 : i32
    %98 = tpu.dynamic_rotate %95 by %c80_i32_32 dim 1 : vector<8x128xf32>, i32 -> vector<8x128xf32>
    %99 = arith.mulf %96, %69 : vector<8x128xf32>
    %100 = arith.mulf %95, %97 : vector<8x128xf32>
    %101 = arith.addf %99, %100 : vector<8x128xf32>
    %102 = math.tanh %101 : vector<8x128xf32>
    %103 = arith.mulf %98, %102 : vector<8x128xf32>
    %104 = vector.broadcast %c2_i32 : i32 to vector<8x1xi32>
    %105 = arith.cmpi eq, %3, %104 : vector<8x1xi32>
    %106 = vector.shape_cast %105 : vector<8x1xi1> to vector<8x1xi1>
    %107 = vector.broadcast %106 : vector<8x1xi1> to vector<8x128xi1>
    %108 = arith.select %107, %103, %76 : vector<8x128xi1>, vector<8x128xf32>
    %c3_i32 = arith.constant 3 : i32
    %109 = arith.index_cast %c3_i32 : i32 to index
    %c0_33 = arith.constant 0 : index
    %c0_34 = arith.constant 0 : index
    %110 = vector.load %arg1[%109, %c0_33, %c0_34] : memref<8x8x1xf32, #tpu.memory_space<vmem>>, vector<1x8x1xf32>
    %111 = vector.shape_cast %110 : vector<1x8x1xf32> to vector<8x1xf32>
    %112 = vector.broadcast %111 : vector<8x1xf32> to vector<8x128xf32>
    %113 = vector.broadcast %1 : vector<1x128xf32> to vector<8x128xf32>
    %114 = arith.mulf %112, %113 : vector<8x128xf32>
    %115 = vector.broadcast %2 : vector<1x128xf32> to vector<8x128xf32>
    %116 = arith.addf %114, %115 : vector<8x128xf32>
    %cst_35 = arith.constant dense<0.000000e+00> : vector<8x128xf32>
    %117 = tpu.matmul %103, %0, %cst_35 {dimension_numbers = #tpu.dot_dimension_numbers<[1], [0], [0], [1], [0, 0, 1, 1], [], []>, precision = #tpu.contract_precision<fp32>} : vector<8x128xf32>, vector<128x128xf32>, vector<8x128xf32> -> vector<8x128xf32>
    %118 = arith.addf %116, %117 : vector<8x128xf32>
    %119 = math.tanh %118 : vector<8x128xf32>
    %cst_36 = arith.constant 5.000000e-01 : f32
    %120 = vector.broadcast %cst_36 : f32 to vector<8x128xf32>
    %121 = arith.mulf %120, %118 : vector<8x128xf32>
    %122 = math.tanh %121 : vector<8x128xf32>
    %cst_37 = arith.constant 5.000000e-01 : f32
    %123 = vector.broadcast %cst_37 : f32 to vector<8x128xf32>
    %124 = arith.mulf %123, %122 : vector<8x128xf32>
    %cst_38 = arith.constant 5.000000e-01 : f32
    %125 = vector.broadcast %cst_38 : f32 to vector<8x128xf32>
    %126 = arith.addf %124, %125 : vector<8x128xf32>
    %127 = arith.select %9, %119, %126 : vector<8x128xi1>, vector<8x128xf32>
    %c112_i32_39 = arith.constant 112 : i32
    %128 = tpu.dynamic_rotate %127 by %c112_i32_39 dim 1 : vector<8x128xf32>, i32 -> vector<8x128xf32>
    %c96_i32_40 = arith.constant 96 : i32
    %129 = tpu.dynamic_rotate %127 by %c96_i32_40 dim 1 : vector<8x128xf32>, i32 -> vector<8x128xf32>
    %c80_i32_41 = arith.constant 80 : i32
    %130 = tpu.dynamic_rotate %127 by %c80_i32_41 dim 1 : vector<8x128xf32>, i32 -> vector<8x128xf32>
    %131 = arith.mulf %128, %101 : vector<8x128xf32>
    %132 = arith.mulf %127, %129 : vector<8x128xf32>
    %133 = arith.addf %131, %132 : vector<8x128xf32>
    %134 = math.tanh %133 : vector<8x128xf32>
    %135 = arith.mulf %130, %134 : vector<8x128xf32>
    %136 = vector.broadcast %c3_i32 : i32 to vector<8x1xi32>
    %137 = arith.cmpi eq, %3, %136 : vector<8x1xi32>
    %138 = vector.shape_cast %137 : vector<8x1xi1> to vector<8x1xi1>
    %139 = vector.broadcast %138 : vector<8x1xi1> to vector<8x128xi1>
    %140 = arith.select %139, %135, %108 : vector<8x128xi1>, vector<8x128xf32>
    %c4_i32 = arith.constant 4 : i32
    %141 = arith.index_cast %c4_i32 : i32 to index
    %c0_42 = arith.constant 0 : index
    %c0_43 = arith.constant 0 : index
    %142 = vector.load %arg1[%141, %c0_42, %c0_43] : memref<8x8x1xf32, #tpu.memory_space<vmem>>, vector<1x8x1xf32>
    %143 = vector.shape_cast %142 : vector<1x8x1xf32> to vector<8x1xf32>
    %144 = vector.broadcast %143 : vector<8x1xf32> to vector<8x128xf32>
    %145 = vector.broadcast %1 : vector<1x128xf32> to vector<8x128xf32>
    %146 = arith.mulf %144, %145 : vector<8x128xf32>
    %147 = vector.broadcast %2 : vector<1x128xf32> to vector<8x128xf32>
    %148 = arith.addf %146, %147 : vector<8x128xf32>
    %cst_44 = arith.constant dense<0.000000e+00> : vector<8x128xf32>
    %149 = tpu.matmul %135, %0, %cst_44 {dimension_numbers = #tpu.dot_dimension_numbers<[1], [0], [0], [1], [0, 0, 1, 1], [], []>, precision = #tpu.contract_precision<fp32>} : vector<8x128xf32>, vector<128x128xf32>, vector<8x128xf32> -> vector<8x128xf32>
    %150 = arith.addf %148, %149 : vector<8x128xf32>
    %151 = math.tanh %150 : vector<8x128xf32>
    %cst_45 = arith.constant 5.000000e-01 : f32
    %152 = vector.broadcast %cst_45 : f32 to vector<8x128xf32>
    %153 = arith.mulf %152, %150 : vector<8x128xf32>
    %154 = math.tanh %153 : vector<8x128xf32>
    %cst_46 = arith.constant 5.000000e-01 : f32
    %155 = vector.broadcast %cst_46 : f32 to vector<8x128xf32>
    %156 = arith.mulf %155, %154 : vector<8x128xf32>
    %cst_47 = arith.constant 5.000000e-01 : f32
    %157 = vector.broadcast %cst_47 : f32 to vector<8x128xf32>
    %158 = arith.addf %156, %157 : vector<8x128xf32>
    %159 = arith.select %9, %151, %158 : vector<8x128xi1>, vector<8x128xf32>
    %c112_i32_48 = arith.constant 112 : i32
    %160 = tpu.dynamic_rotate %159 by %c112_i32_48 dim 1 : vector<8x128xf32>, i32 -> vector<8x128xf32>
    %c96_i32_49 = arith.constant 96 : i32
    %161 = tpu.dynamic_rotate %159 by %c96_i32_49 dim 1 : vector<8x128xf32>, i32 -> vector<8x128xf32>
    %c80_i32_50 = arith.constant 80 : i32
    %162 = tpu.dynamic_rotate %159 by %c80_i32_50 dim 1 : vector<8x128xf32>, i32 -> vector<8x128xf32>
    %163 = arith.mulf %160, %133 : vector<8x128xf32>
    %164 = arith.mulf %159, %161 : vector<8x128xf32>
    %165 = arith.addf %163, %164 : vector<8x128xf32>
    %166 = math.tanh %165 : vector<8x128xf32>
    %167 = arith.mulf %162, %166 : vector<8x128xf32>
    %168 = vector.broadcast %c4_i32 : i32 to vector<8x1xi32>
    %169 = arith.cmpi eq, %3, %168 : vector<8x1xi32>
    %170 = vector.shape_cast %169 : vector<8x1xi1> to vector<8x1xi1>
    %171 = vector.broadcast %170 : vector<8x1xi1> to vector<8x128xi1>
    %172 = arith.select %171, %167, %140 : vector<8x128xi1>, vector<8x128xf32>
    %c5_i32 = arith.constant 5 : i32
    %173 = arith.index_cast %c5_i32 : i32 to index
    %c0_51 = arith.constant 0 : index
    %c0_52 = arith.constant 0 : index
    %174 = vector.load %arg1[%173, %c0_51, %c0_52] : memref<8x8x1xf32, #tpu.memory_space<vmem>>, vector<1x8x1xf32>
    %175 = vector.shape_cast %174 : vector<1x8x1xf32> to vector<8x1xf32>
    %176 = vector.broadcast %175 : vector<8x1xf32> to vector<8x128xf32>
    %177 = vector.broadcast %1 : vector<1x128xf32> to vector<8x128xf32>
    %178 = arith.mulf %176, %177 : vector<8x128xf32>
    %179 = vector.broadcast %2 : vector<1x128xf32> to vector<8x128xf32>
    %180 = arith.addf %178, %179 : vector<8x128xf32>
    %cst_53 = arith.constant dense<0.000000e+00> : vector<8x128xf32>
    %181 = tpu.matmul %167, %0, %cst_53 {dimension_numbers = #tpu.dot_dimension_numbers<[1], [0], [0], [1], [0, 0, 1, 1], [], []>, precision = #tpu.contract_precision<fp32>} : vector<8x128xf32>, vector<128x128xf32>, vector<8x128xf32> -> vector<8x128xf32>
    %182 = arith.addf %180, %181 : vector<8x128xf32>
    %183 = math.tanh %182 : vector<8x128xf32>
    %cst_54 = arith.constant 5.000000e-01 : f32
    %184 = vector.broadcast %cst_54 : f32 to vector<8x128xf32>
    %185 = arith.mulf %184, %182 : vector<8x128xf32>
    %186 = math.tanh %185 : vector<8x128xf32>
    %cst_55 = arith.constant 5.000000e-01 : f32
    %187 = vector.broadcast %cst_55 : f32 to vector<8x128xf32>
    %188 = arith.mulf %187, %186 : vector<8x128xf32>
    %cst_56 = arith.constant 5.000000e-01 : f32
    %189 = vector.broadcast %cst_56 : f32 to vector<8x128xf32>
    %190 = arith.addf %188, %189 : vector<8x128xf32>
    %191 = arith.select %9, %183, %190 : vector<8x128xi1>, vector<8x128xf32>
    %c112_i32_57 = arith.constant 112 : i32
    %192 = tpu.dynamic_rotate %191 by %c112_i32_57 dim 1 : vector<8x128xf32>, i32 -> vector<8x128xf32>
    %c96_i32_58 = arith.constant 96 : i32
    %193 = tpu.dynamic_rotate %191 by %c96_i32_58 dim 1 : vector<8x128xf32>, i32 -> vector<8x128xf32>
    %c80_i32_59 = arith.constant 80 : i32
    %194 = tpu.dynamic_rotate %191 by %c80_i32_59 dim 1 : vector<8x128xf32>, i32 -> vector<8x128xf32>
    %195 = arith.mulf %192, %165 : vector<8x128xf32>
    %196 = arith.mulf %191, %193 : vector<8x128xf32>
    %197 = arith.addf %195, %196 : vector<8x128xf32>
    %198 = math.tanh %197 : vector<8x128xf32>
    %199 = arith.mulf %194, %198 : vector<8x128xf32>
    %200 = vector.broadcast %c5_i32 : i32 to vector<8x1xi32>
    %201 = arith.cmpi eq, %3, %200 : vector<8x1xi32>
    %202 = vector.shape_cast %201 : vector<8x1xi1> to vector<8x1xi1>
    %203 = vector.broadcast %202 : vector<8x1xi1> to vector<8x128xi1>
    %204 = arith.select %203, %199, %172 : vector<8x128xi1>, vector<8x128xf32>
    %c6_i32 = arith.constant 6 : i32
    %205 = arith.index_cast %c6_i32 : i32 to index
    %c0_60 = arith.constant 0 : index
    %c0_61 = arith.constant 0 : index
    %206 = vector.load %arg1[%205, %c0_60, %c0_61] : memref<8x8x1xf32, #tpu.memory_space<vmem>>, vector<1x8x1xf32>
    %207 = vector.shape_cast %206 : vector<1x8x1xf32> to vector<8x1xf32>
    %208 = vector.broadcast %207 : vector<8x1xf32> to vector<8x128xf32>
    %209 = vector.broadcast %1 : vector<1x128xf32> to vector<8x128xf32>
    %210 = arith.mulf %208, %209 : vector<8x128xf32>
    %211 = vector.broadcast %2 : vector<1x128xf32> to vector<8x128xf32>
    %212 = arith.addf %210, %211 : vector<8x128xf32>
    %cst_62 = arith.constant dense<0.000000e+00> : vector<8x128xf32>
    %213 = tpu.matmul %199, %0, %cst_62 {dimension_numbers = #tpu.dot_dimension_numbers<[1], [0], [0], [1], [0, 0, 1, 1], [], []>, precision = #tpu.contract_precision<fp32>} : vector<8x128xf32>, vector<128x128xf32>, vector<8x128xf32> -> vector<8x128xf32>
    %214 = arith.addf %212, %213 : vector<8x128xf32>
    %215 = math.tanh %214 : vector<8x128xf32>
    %cst_63 = arith.constant 5.000000e-01 : f32
    %216 = vector.broadcast %cst_63 : f32 to vector<8x128xf32>
    %217 = arith.mulf %216, %214 : vector<8x128xf32>
    %218 = math.tanh %217 : vector<8x128xf32>
    %cst_64 = arith.constant 5.000000e-01 : f32
    %219 = vector.broadcast %cst_64 : f32 to vector<8x128xf32>
    %220 = arith.mulf %219, %218 : vector<8x128xf32>
    %cst_65 = arith.constant 5.000000e-01 : f32
    %221 = vector.broadcast %cst_65 : f32 to vector<8x128xf32>
    %222 = arith.addf %220, %221 : vector<8x128xf32>
    %223 = arith.select %9, %215, %222 : vector<8x128xi1>, vector<8x128xf32>
    %c112_i32_66 = arith.constant 112 : i32
    %224 = tpu.dynamic_rotate %223 by %c112_i32_66 dim 1 : vector<8x128xf32>, i32 -> vector<8x128xf32>
    %c96_i32_67 = arith.constant 96 : i32
    %225 = tpu.dynamic_rotate %223 by %c96_i32_67 dim 1 : vector<8x128xf32>, i32 -> vector<8x128xf32>
    %c80_i32_68 = arith.constant 80 : i32
    %226 = tpu.dynamic_rotate %223 by %c80_i32_68 dim 1 : vector<8x128xf32>, i32 -> vector<8x128xf32>
    %227 = arith.mulf %224, %197 : vector<8x128xf32>
    %228 = arith.mulf %223, %225 : vector<8x128xf32>
    %229 = arith.addf %227, %228 : vector<8x128xf32>
    %230 = math.tanh %229 : vector<8x128xf32>
    %231 = arith.mulf %226, %230 : vector<8x128xf32>
    %232 = vector.broadcast %c6_i32 : i32 to vector<8x1xi32>
    %233 = arith.cmpi eq, %3, %232 : vector<8x1xi32>
    %234 = vector.shape_cast %233 : vector<8x1xi1> to vector<8x1xi1>
    %235 = vector.broadcast %234 : vector<8x1xi1> to vector<8x128xi1>
    %236 = arith.select %235, %231, %204 : vector<8x128xi1>, vector<8x128xf32>
    %c7_i32 = arith.constant 7 : i32
    %237 = arith.index_cast %c7_i32 : i32 to index
    %c0_69 = arith.constant 0 : index
    %c0_70 = arith.constant 0 : index
    %238 = vector.load %arg1[%237, %c0_69, %c0_70] : memref<8x8x1xf32, #tpu.memory_space<vmem>>, vector<1x8x1xf32>
    %239 = vector.shape_cast %238 : vector<1x8x1xf32> to vector<8x1xf32>
    %240 = vector.broadcast %239 : vector<8x1xf32> to vector<8x128xf32>
    %241 = vector.broadcast %1 : vector<1x128xf32> to vector<8x128xf32>
    %242 = arith.mulf %240, %241 : vector<8x128xf32>
    %243 = vector.broadcast %2 : vector<1x128xf32> to vector<8x128xf32>
    %244 = arith.addf %242, %243 : vector<8x128xf32>
    %cst_71 = arith.constant dense<0.000000e+00> : vector<8x128xf32>
    %245 = tpu.matmul %231, %0, %cst_71 {dimension_numbers = #tpu.dot_dimension_numbers<[1], [0], [0], [1], [0, 0, 1, 1], [], []>, precision = #tpu.contract_precision<fp32>} : vector<8x128xf32>, vector<128x128xf32>, vector<8x128xf32> -> vector<8x128xf32>
    %246 = arith.addf %244, %245 : vector<8x128xf32>
    %247 = math.tanh %246 : vector<8x128xf32>
    %cst_72 = arith.constant 5.000000e-01 : f32
    %248 = vector.broadcast %cst_72 : f32 to vector<8x128xf32>
    %249 = arith.mulf %248, %246 : vector<8x128xf32>
    %250 = math.tanh %249 : vector<8x128xf32>
    %cst_73 = arith.constant 5.000000e-01 : f32
    %251 = vector.broadcast %cst_73 : f32 to vector<8x128xf32>
    %252 = arith.mulf %251, %250 : vector<8x128xf32>
    %cst_74 = arith.constant 5.000000e-01 : f32
    %253 = vector.broadcast %cst_74 : f32 to vector<8x128xf32>
    %254 = arith.addf %252, %253 : vector<8x128xf32>
    %255 = arith.select %9, %247, %254 : vector<8x128xi1>, vector<8x128xf32>
    %c112_i32_75 = arith.constant 112 : i32
    %256 = tpu.dynamic_rotate %255 by %c112_i32_75 dim 1 : vector<8x128xf32>, i32 -> vector<8x128xf32>
    %c96_i32_76 = arith.constant 96 : i32
    %257 = tpu.dynamic_rotate %255 by %c96_i32_76 dim 1 : vector<8x128xf32>, i32 -> vector<8x128xf32>
    %c80_i32_77 = arith.constant 80 : i32
    %258 = tpu.dynamic_rotate %255 by %c80_i32_77 dim 1 : vector<8x128xf32>, i32 -> vector<8x128xf32>
    %259 = arith.mulf %256, %229 : vector<8x128xf32>
    %260 = arith.mulf %255, %257 : vector<8x128xf32>
    %261 = arith.addf %259, %260 : vector<8x128xf32>
    %262 = math.tanh %261 : vector<8x128xf32>
    %263 = arith.mulf %258, %262 : vector<8x128xf32>
    %264 = vector.broadcast %c7_i32 : i32 to vector<8x1xi32>
    %265 = arith.cmpi eq, %3, %264 : vector<8x1xi32>
    %266 = vector.shape_cast %265 : vector<8x1xi1> to vector<8x1xi1>
    %267 = vector.broadcast %266 : vector<8x1xi1> to vector<8x128xi1>
    %268 = arith.select %267, %263, %236 : vector<8x128xi1>, vector<8x128xf32>
    %c8_i32 = arith.constant 8 : i32
    %c0_78 = arith.constant 0 : index
    %c0_79 = arith.constant 0 : index
    %269 = vector.load %arg6[%c0_78, %c0_79] : memref<8x128xf32, #tpu.memory_space<vmem>>, vector<8x128xf32>
    tpu.vector_store %arg6[%c0_78, %c0_79], %268 {strides = array<i32>} : memref<8x128xf32, #tpu.memory_space<vmem>>, vector<8x128xf32>,
    return
  }
  func.func @transform_0(%arg0: i32) -> (i32, i32, i32) {
    %c0_i32 = arith.constant 0 : i32
    %c0_i32_0 = arith.constant 0 : i32
    %c0_i32_1 = arith.constant 0 : i32
    return %c0_i32, %arg0, %c0_i32_0 : i32, i32, i32
  }
  func.func @transform_1(%arg0: i32) -> (i32, i32) {
    %c0_i32 = arith.constant 0 : i32
    %c0_i32_0 = arith.constant 0 : i32
    return %arg0, %c0_i32 : i32, i32
  }
  func.func @transform_2(%arg0: i32) -> (i32, i32) {
    %c0_i32 = arith.constant 0 : i32
    %c0_i32_0 = arith.constant 0 : i32
    %c0_i32_1 = arith.constant 0 : i32
    return %c0_i32, %c0_i32_0 : i32, i32
  }
  func.func @transform_3(%arg0: i32) -> (i32, i32) {
    %c0_i32 = arith.constant 0 : i32
    %c0_i32_0 = arith.constant 0 : i32
    %c0_i32_1 = arith.constant 0 : i32
    return %c0_i32, %c0_i32_0 : i32, i32
  }
  func.func @transform_4(%arg0: i32) -> (i32, i32) {
    %c0_i32 = arith.constant 0 : i32
    %c0_i32_0 = arith.constant 0 : i32
    %c0_i32_1 = arith.constant 0 : i32
    return %c0_i32, %c0_i32_0 : i32, i32
  }
  func.func @transform_5(%arg0: i32) -> (i32, i32) {
    %c0_i32 = arith.constant 0 : i32
    %c0_i32_0 = arith.constant 0 : i32
    return %arg0, %c0_i32 : i32, i32
  }
}

</mosaic_0001>

<llo_original>
// kernel: tpu_custom_call.1
$region0: #{tpu_custom_call.1}
  #allocation0 [shape = 'u32[]', space=smem, size = 0x4, offset = 0x4, fixed_abs, tag = 'smem constant byte address 0x4 - core index']
  #allocation1 [shape = 'u32[72,128]{1,0:T(1,128)}', space=vmem, size = 0x9000, scoped, tag = 'internal scratch']
  %s0 = inlined_call_operand.vmem [shape: f32[8,8,1], index: 0, kind: input, shape index: {}]
  %s1 = inlined_call_operand.vmem [shape: s32[8,1], index: 1, kind: input, shape index: {}]
  %s2 = inlined_call_operand.vmem [shape: f32[1,128], index: 2, kind: input, shape index: {}]
  %s3 = inlined_call_operand.vmem [shape: f32[1,128], index: 3, kind: input, shape index: {}]
  %s4 = inlined_call_operand.hbm [shape: f32[128,128], index: 4, kind: input, shape index: {}]
  %s5 = inlined_call_operand.hbm [shape: f32[8,128], index: 5, kind: output, shape index: {}]
  %s6 = sld [smem:[#allocation0]]
  $region34: #{tpu_custom_call.1} parent=0
    _
  %s8 = ssub.s32 1, %s6
  %s9 = scalar_select 0, %s8, %s6
  $region1: #{tpu_custom_call.1} parent=0
    #allocation2 [shape = 'u8[65536]{0}', space=vmem, size = 0x10000, scoped, tag = 'input window, operand 4, single buffered']
    #allocation3 [shape = 's32[1]{0}', space=sflag, size = 0x4, scoped, tag = 'scoped memory for tpu_custom_call.1']
    #allocation4 [shape = 's32[1]{0}', space=sflag, size = 0x4, scoped, tag = 'scoped memory for tpu_custom_call.1']
    #allocation5 [shape = 'u8[4096]{0}', space=vmem, size = 0x1000, scoped, tag = 'output window, operand 0, single buffered']
    %10 = vsyncpa [#allocation3], 0
    %11 = vsyncpa [#allocation4], 0
    // Predicated region
    $region2: #{tpu_custom_call.1} parent=1 // pred_check
      _
    $region3: #{tpu_custom_call.1} parent=1 // pred_check_branch
      %13 = sbr.rel (0) target = $region5
    $region4: #{tpu_custom_call.1} parent=1 // pred_region
      _
    $region5: #{tpu_custom_call.1} parent=1 // pred_fallthru
      _
    // Predicated region
    $region6: #{tpu_custom_call.1} parent=1 // pred_check
      _
    $region7: #{tpu_custom_call.1} parent=1 // pred_check_branch
      %15 = sbr.rel (0) target = $region9
    $region8: #{tpu_custom_call.1} parent=1 // pred_region
      _
    $region9: #{tpu_custom_call.1} parent=1 // pred_fallthru
      _
    // Predicated region
    $region10: #{tpu_custom_call.1} parent=1 // pred_check
      _
    $region11: #{tpu_custom_call.1} parent=1 // pred_check_branch
      %17 = sbr.rel (0) target = $region13
    $region12: #{tpu_custom_call.1} parent=1 // pred_region
      _
    $region13: #{tpu_custom_call.1} parent=1 // pred_fallthru
      _
    // Predicated region
    $region14: #{tpu_custom_call.1} parent=1 // pred_check
      _
    $region15: #{tpu_custom_call.1} parent=1 // pred_check_branch
      %19 = sbr.rel (0) target = $region17
    $region16: #{tpu_custom_call.1} parent=1 // pred_region
      _
    $region17: #{tpu_custom_call.1} parent=1 // pred_fallthru
      _
    // Predicated region
    $region18: #{tpu_custom_call.1} parent=1 // pred_check
      _
    $region19: #{tpu_custom_call.1} parent=1 // pred_check_branch
      %21 = sbr.rel (0) target = $region21
    $region20: #{tpu_custom_call.1} parent=1 // pred_region
      %23 = vsyncadd [#allocation3], 0
      %s24 = sshll.u32 %s4, 4
      %s25 = int_to_ptr.hbm [resolvable:$true] %s24
      %s26 = sshll.u32 [#allocation2], 4
      %s27 = int_to_ptr.vmem [resolvable:$true] %s26
      %32 = dma.hbm_to_vmem [thread:$0]  %s25, 2048, %s27, [#allocation3], 128, 128, 8
    $region21: #{tpu_custom_call.1} parent=1 // pred_fallthru
      _
    // Predicated region
    $region22: #{tpu_custom_call.1} parent=1 // pred_check
      _
    $region23: #{tpu_custom_call.1} parent=1 // pred_check_branch
      %34 = sbr.rel (0) target = $region25
    $region24: #{tpu_custom_call.1} parent=1 // pred_region
      %36 = dma.done [#allocation3], 2048
    $region25: #{tpu_custom_call.1} parent=1 // pred_fallthru
      _
    %v37 = vld [vmem:[#allocation2] sm:$0xff]
    %v38 = vld [vmem:[#allocation2 + $0x8] sm:$0xff]
    %v39 = vld [vmem:[#allocation2 + $0x10] sm:$0xff]
    %v40 = vld [vmem:[#allocation2 + $0x18] sm:$0xff]
    %v41 = vld [vmem:[#allocation2 + $0x20] sm:$0xff]
    %v42 = vld [vmem:[#allocation2 + $0x28] sm:$0xff]
    %v43 = vld [vmem:[#allocation2 + $0x30] sm:$0xff]
    %v44 = vld [vmem:[#allocation2 + $0x38] sm:$0xff]
    %v45 = vld [vmem:[#allocation2 + $0x40] sm:$0xff]
    %v46 = vld [vmem:[#allocation2 + $0x48] sm:$0xff]
    %v47 = vld [vmem:[#allocation2 + $0x50] sm:$0xff]
    %v48 = vld [vmem:[#allocation2 + $0x58] sm:$0xff]
    %v49 = vld [vmem:[#allocation2 + $0x60] sm:$0xff]
    %v50 = vld [vmem:[#allocation2 + $0x68] sm:$0xff]
    %v51 = vld [vmem:[#allocation2 + $0x70] sm:$0xff]
    %v52 = vld [vmem:[#allocation2 + $0x78] sm:$0xff]
    %v53 = vld [vmem:[%s2] sm:$0x1]
    %v54 = vld [vmem:[%s3] sm:$0x1]
    %v55 = vld [vmem:[%s1] sm:$0xff]
    %v56 = vlaneseq
    %v57 = vand.u32 %v56, 127
    %vm58 = vcmp.ge.s32.totalorder %v57, 32
    %vm59 = vcmp.lt.s32.totalorder %v57, 48
    %vm60 = vmand %vm58, %vm59
    %v61 = vld [vmem:[%s0] sm:$0xff]
    %63 = vset.pattern.permute.xlu0 0
    %64 = vperm.xlu0 %63, %v61
    %v65 = vpop.permute.xlu0 %64
    %v68 = vperm.slane %v53, 0
    %v70 = vmul.f32 %v65, %v68
    %v72 = vperm.slane %v54, 0
    %v74 = vadd.f32 %v70, %v72
    %v75 = vand.u32 %v52, 4294901760
    %76 = vmatpush.msra.mxu0 %v75
    %v77 = vand.u32 %v51, 4294901760
    %78 = vmatpush.msra.mxu0 %v77
    %v79 = vand.u32 %v50, 4294901760
    %80 = vmatpush.msra.mxu0 %v79
    %v81 = vand.u32 %v49, 4294901760
    %82 = vmatpush.msra.mxu0 %v81
    %v83 = vand.u32 %v48, 4294901760
    %84 = vmatpush.msra.mxu0 %v83
    %v85 = vand.u32 %v47, 4294901760
    %86 = vmatpush.msra.mxu0 %v85
    %v87 = vand.u32 %v46, 4294901760
    %88 = vmatpush.msra.mxu0 %v87
    %v89 = vand.u32 %v45, 4294901760
    %90 = vmatpush.msra.mxu0 %v89
    %v91 = vand.u32 %v44, 4294901760
    %92 = vmatpush.msra.mxu0 %v91
    %v93 = vand.u32 %v43, 4294901760
    %94 = vmatpush.msra.mxu0 %v93
    %v95 = vand.u32 %v42, 4294901760
    %96 = vmatpush.msra.mxu0 %v95
    %v97 = vand.u32 %v41, 4294901760
    %98 = vmatpush.msra.mxu0 %v97
    %v99 = vand.u32 %v40, 4294901760
    %100 = vmatpush.msra.mxu0 %v99
    %v101 = vand.u32 %v39, 4294901760
    %102 = vmatpush.msra.mxu0 %v101
    %v103 = vand.u32 %v38, 4294901760
    %104 = vmatpush.msra.mxu0 %v103
    %v105 = vand.u32 %v37, 4294901760
    %106 = vmatpush.msra.mxu0 %v105
    %107 = vmatmul.f32.gmra.mxu0 0.0
    %v108 = vpop.f32.mrf.mxu0
    %v109 = vadd.f32 0.0, %v108
    %110 = vdwg.mxu0
    %v111 = vand.u32 %v52, 4294901760
    %v112 = vsub.f32 %v52, %v111
    %v113 = vand.u32 %v112, 4294901760
    %v114 = vsub.f32 %v112, %v113
    %v115 = vand.u32 %v114, 4294901760
    %116 = vmatpush.msra.mxu0 %v115
    %v117 = vand.u32 %v51, 4294901760
    %v118 = vsub.f32 %v51, %v117
    %v119 = vand.u32 %v118, 4294901760
    %v120 = vsub.f32 %v118, %v119
    %v121 = vand.u32 %v120, 4294901760
    %122 = vmatpush.msra.mxu0 %v121
    %v123 = vand.u32 %v50, 4294901760
    %v124 = vsub.f32 %v50, %v123
    %v125 = vand.u32 %v124, 4294901760
    %v126 = vsub.f32 %v124, %v125
    %v127 = vand.u32 %v126, 4294901760
    %128 = vmatpush.msra.mxu0 %v127
    %v129 = vand.u32 %v49, 4294901760
    %v130 = vsub.f32 %v49, %v129
    %v131 = vand.u32 %v130, 4294901760
    %v132 = vsub.f32 %v130, %v131
    %v133 = vand.u32 %v132, 4294901760
    %134 = vmatpush.msra.mxu0 %v133
    %v135 = vand.u32 %v48, 4294901760
    %v136 = vsub.f32 %v48, %v135
    %v137 = vand.u32 %v136, 4294901760
    %v138 = vsub.f32 %v136, %v137
    %v139 = vand.u32 %v138, 4294901760
    %140 = vmatpush.msra.mxu0 %v139
    %v141 = vand.u32 %v47, 4294901760
    %v142 = vsub.f32 %v47, %v141
    %v143 = vand.u32 %v142, 4294901760
    %v144 = vsub.f32 %v142, %v143
    %v145 = vand.u32 %v144, 4294901760
    %146 = vmatpush.msra.mxu0 %v145
    %v147 = vand.u32 %v46, 4294901760
    %v148 = vsub.f32 %v46, %v147
    %v149 = vand.u32 %v148, 4294901760
    %v150 = vsub.f32 %v148, %v149
    %v151 = vand.u32 %v150, 4294901760
    %152 = vmatpush.msra.mxu0 %v151
    %v153 = vand.u32 %v45, 4294901760
    %v154 = vsub.f32 %v45, %v153
    %v155 = vand.u32 %v154, 4294901760
    %v156 = vsub.f32 %v154, %v155
    %v157 = vand.u32 %v156, 4294901760
    %158 = vmatpush.msra.mxu0 %v157
    %v159 = vand.u32 %v44, 4294901760
    %v160 = vsub.f32 %v44, %v159
    %v161 = vand.u32 %v160, 4294901760
    %v162 = vsub.f32 %v160, %v161
    %v163 = vand.u32 %v162, 4294901760
    %164 = vmatpush.msra.mxu0 %v163
    %v165 = vand.u32 %v43, 4294901760
    %v166 = vsub.f32 %v43, %v165
    %v167 = vand.u32 %v166, 4294901760
    %v168 = vsub.f32 %v166, %v167
    %v169 = vand.u32 %v168, 4294901760
    %170 = vmatpush.msra.mxu0 %v169
    %v171 = vand.u32 %v42, 4294901760
    %v172 = vsub.f32 %v42, %v171
    %v173 = vand.u32 %v172, 4294901760
    %v174 = vsub.f32 %v172, %v173
    %v175 = vand.u32 %v174, 4294901760
    %176 = vmatpush.msra.mxu0 %v175
    %v177 = vand.u32 %v41, 4294901760
    %v178 = vsub.f32 %v41, %v177
    %v179 = vand.u32 %v178, 4294901760
    %v180 = vsub.f32 %v178, %v179
    %v181 = vand.u32 %v180, 4294901760
    %182 = vmatpush.msra.mxu0 %v181
    %v183 = vand.u32 %v40, 4294901760
    %v184 = vsub.f32 %v40, %v183
    %v185 = vand.u32 %v184, 4294901760
    %v186 = vsub.f32 %v184, %v185
    %v187 = vand.u32 %v186, 4294901760
    %188 = vmatpush.msra.mxu0 %v187
    %v189 = vand.u32 %v39, 4294901760
    %v190 = vsub.f32 %v39, %v189
    %v191 = vand.u32 %v190, 4294901760
    %v192 = vsub.f32 %v190, %v191
    %v193 = vand.u32 %v192, 4294901760
    %194 = vmatpush.msra.mxu0 %v193
    %v195 = vand.u32 %v38, 4294901760
    %v196 = vsub.f32 %v38, %v195
    %v197 = vand.u32 %v196, 4294901760
    %v198 = vsub.f32 %v196, %v197
    %v199 = vand.u32 %v198, 4294901760
    %200 = vmatpush.msra.mxu0 %v199
    %v201 = vand.u32 %v37, 4294901760
    %v202 = vsub.f32 %v37, %v201
    %v203 = vand.u32 %v202, 4294901760
    %v204 = vsub.f32 %v202, %v203
    %v205 = vand.u32 %v204, 4294901760
    %206 = vmatpush.msra.mxu0 %v205
    %207 = vmatmul.f32.gmra.mxu0 0.0
    %v208 = vpop.f32.mrf.mxu0
    %v209 = vadd.f32 %v109, %v208
    %210 = vdwg.mxu0
    %v211 = vand.u32 %v52, 4294901760
    %v212 = vsub.f32 %v52, %v211
    %213 = vmatpush.msra.mxu0 %v212
    %v214 = vand.u32 %v51, 4294901760
    %v215 = vsub.f32 %v51, %v214
    %216 = vmatpush.msra.mxu0 %v215
    %v217 = vand.u32 %v50, 4294901760
    %v218 = vsub.f32 %v50, %v217
    %219 = vmatpush.msra.mxu0 %v218
    %v220 = vand.u32 %v49, 4294901760
    %v221 = vsub.f32 %v49, %v220
    %222 = vmatpush.msra.mxu0 %v221
    %v223 = vand.u32 %v48, 4294901760
    %v224 = vsub.f32 %v48, %v223
    %225 = vmatpush.msra.mxu0 %v224
    %v226 = vand.u32 %v47, 4294901760
    %v227 = vsub.f32 %v47, %v226
    %228 = vmatpush.msra.mxu0 %v227
    %v229 = vand.u32 %v46, 4294901760
    %v230 = vsub.f32 %v46, %v229
    %231 = vmatpush.msra.mxu0 %v230
    %v232 = vand.u32 %v45, 4294901760
    %v233 = vsub.f32 %v45, %v232
    %234 = vmatpush.msra.mxu0 %v233
    %v235 = vand.u32 %v44, 4294901760
    %v236 = vsub.f32 %v44, %v235
    %237 = vmatpush.msra.mxu0 %v236
    %v238 = vand.u32 %v43, 4294901760
    %v239 = vsub.f32 %v43, %v238
    %240 = vmatpush.msra.mxu0 %v239
    %v241 = vand.u32 %v42, 4294901760
    %v242 = vsub.f32 %v42, %v241
    %243 = vmatpush.msra.mxu0 %v242
    %v244 = vand.u32 %v41, 4294901760
    %v245 = vsub.f32 %v41, %v244
    %246 = vmatpush.msra.mxu0 %v245
    %v247 = vand.u32 %v40, 4294901760
    %v248 = vsub.f32 %v40, %v247
    %249 = vmatpush.msra.mxu0 %v248
    %v250 = vand.u32 %v39, 4294901760
    %v251 = vsub.f32 %v39, %v250
    %252 = vmatpush.msra.mxu0 %v251
    %v253 = vand.u32 %v38, 4294901760
    %v254 = vsub.f32 %v38, %v253
    %255 = vmatpush.msra.mxu0 %v254
    %v256 = vand.u32 %v37, 4294901760
    %v257 = vsub.f32 %v37, %v256
    %258 = vmatpush.msra.mxu0 %v257
    %259 = vmatmul.f32.gmra.mxu0 0.0
    %v260 = vpop.f32.mrf.mxu0
    %v261 = vadd.f32 %v209, %v260
    %262 = vdwg.mxu0
    %v263 = vand.u32 %v52, 4294901760
    %264 = vmatpush.msra.mxu0 %v263
    %v265 = vand.u32 %v51, 4294901760
    %266 = vmatpush.msra.mxu0 %v265
    %v267 = vand.u32 %v50, 4294901760
    %268 = vmatpush.msra.mxu0 %v267
    %v269 = vand.u32 %v49, 4294901760
    %270 = vmatpush.msra.mxu0 %v269
    %v271 = vand.u32 %v48, 4294901760
    %272 = vmatpush.msra.mxu0 %v271
    %v273 = vand.u32 %v47, 4294901760
    %274 = vmatpush.msra.mxu0 %v273
    %v275 = vand.u32 %v46, 4294901760
    %276 = vmatpush.msra.mxu0 %v275
    %v277 = vand.u32 %v45, 4294901760
    %278 = vmatpush.msra.mxu0 %v277
    %v279 = vand.u32 %v44, 4294901760
    %280 = vmatpush.msra.mxu0 %v279
    %v281 = vand.u32 %v43, 4294901760
    %282 = vmatpush.msra.mxu0 %v281
    %v283 = vand.u32 %v42, 4294901760
    %284 = vmatpush.msra.mxu0 %v283
    %v285 = vand.u32 %v41, 4294901760
    %286 = vmatpush.msra.mxu0 %v285
    %v287 = vand.u32 %v40, 4294901760
    %288 = vmatpush.msra.mxu0 %v287
    %v289 = vand.u32 %v39, 4294901760
    %290 = vmatpush.msra.mxu0 %v289
    %v291 = vand.u32 %v38, 4294901760
    %292 = vmatpush.msra.mxu0 %v291
    %v293 = vand.u32 %v37, 4294901760
    %294 = vmatpush.msra.mxu0 %v293
    %295 = vmatmul.f32.gmra.mxu0 0.0
    %v296 = vpop.f32.mrf.mxu0
    %v297 = vadd.f32 %v261, %v296
    %298 = vdwg.mxu0
    %v299 = vand.u32 %v52, 4294901760
    %v300 = vsub.f32 %v52, %v299
    %v301 = vand.u32 %v300, 4294901760
    %302 = vmatpush.msra.mxu0 %v301
    %v303 = vand.u32 %v51, 4294901760
    %v304 = vsub.f32 %v51, %v303
    %v305 = vand.u32 %v304, 4294901760
    %306 = vmatpush.msra.mxu0 %v305
    %v307 = vand.u32 %v50, 4294901760
    %v308 = vsub.f32 %v50, %v307
    %v309 = vand.u32 %v308, 4294901760
    %310 = vmatpush.msra.mxu0 %v309
    %v311 = vand.u32 %v49, 4294901760
    %v312 = vsub.f32 %v49, %v311
    %v313 = vand.u32 %v312, 4294901760
    %314 = vmatpush.msra.mxu0 %v313
    %v315 = vand.u32 %v48, 4294901760
    %v316 = vsub.f32 %v48, %v315
    %v317 = vand.u32 %v316, 4294901760
    %318 = vmatpush.msra.mxu0 %v317
    %v319 = vand.u32 %v47, 4294901760
    %v320 = vsub.f32 %v47, %v319
    %v321 = vand.u32 %v320, 4294901760
    %322 = vmatpush.msra.mxu0 %v321
    %v323 = vand.u32 %v46, 4294901760
    %v324 = vsub.f32 %v46, %v323
    %v325 = vand.u32 %v324, 4294901760
    %326 = vmatpush.msra.mxu0 %v325
    %v327 = vand.u32 %v45, 4294901760
    %v328 = vsub.f32 %v45, %v327
    %v329 = vand.u32 %v328, 4294901760
    %330 = vmatpush.msra.mxu0 %v329
    %v331 = vand.u32 %v44, 4294901760
    %v332 = vsub.f32 %v44, %v331
    %v333 = vand.u32 %v332, 4294901760
    %334 = vmatpush.msra.mxu0 %v333
    %v335 = vand.u32 %v43, 4294901760
    %v336 = vsub.f32 %v43, %v335
    %v337 = vand.u32 %v336, 4294901760
    %338 = vmatpush.msra.mxu0 %v337
    %v339 = vand.u32 %v42, 4294901760
    %v340 = vsub.f32 %v42, %v339
    %v341 = vand.u32 %v340, 4294901760
    %342 = vmatpush.msra.mxu0 %v341
    %v343 = vand.u32 %v41, 4294901760
    %v344 = vsub.f32 %v41, %v343
    %v345 = vand.u32 %v344, 4294901760
    %346 = vmatpush.msra.mxu0 %v345
    %v347 = vand.u32 %v40, 4294901760
    %v348 = vsub.f32 %v40, %v347
    %v349 = vand.u32 %v348, 4294901760
    %350 = vmatpush.msra.mxu0 %v349
    %v351 = vand.u32 %v39, 4294901760
    %v352 = vsub.f32 %v39, %v351
    %v353 = vand.u32 %v352, 4294901760
    %354 = vmatpush.msra.mxu0 %v353
    %v355 = vand.u32 %v38, 4294901760
    %v356 = vsub.f32 %v38, %v355
    %v357 = vand.u32 %v356, 4294901760
    %358 = vmatpush.msra.mxu0 %v357
    %v359 = vand.u32 %v37, 4294901760
    %v360 = vsub.f32 %v37, %v359
    %v361 = vand.u32 %v360, 4294901760
    %362 = vmatpush.msra.mxu0 %v361
    %363 = vmatmul.f32.gmra.mxu0 0.0
    %v364 = vpop.f32.mrf.mxu0
    %v365 = vadd.f32 %v297, %v364
    %366 = vdwg.mxu0
    %v367 = vand.u32 %v52, 4294901760
    %368 = vmatpush.msra.mxu0 %v367
    %v369 = vand.u32 %v51, 4294901760
    %370 = vmatpush.msra.mxu0 %v369
    %v371 = vand.u32 %v50, 4294901760
    %372 = vmatpush.msra.mxu0 %v371
    %v373 = vand.u32 %v49, 4294901760
    %374 = vmatpush.msra.mxu0 %v373
    %v375 = vand.u32 %v48, 4294901760
    %376 = vmatpush.msra.mxu0 %v375
    %v377 = vand.u32 %v47, 4294901760
    %378 = vmatpush.msra.mxu0 %v377
    %v379 = vand.u32 %v46, 4294901760
    %380 = vmatpush.msra.mxu0 %v379
    %v381 = vand.u32 %v45, 4294901760
    %382 = vmatpush.msra.mxu0 %v381
    %v383 = vand.u32 %v44, 4294901760
    %384 = vmatpush.msra.mxu0 %v383
    %v385 = vand.u32 %v43, 4294901760
    %386 = vmatpush.msra.mxu0 %v385
    %v387 = vand.u32 %v42, 4294901760
    %388 = vmatpush.msra.mxu0 %v387
    %v389 = vand.u32 %v41, 4294901760
    %390 = vmatpush.msra.mxu0 %v389
    %v391 = vand.u32 %v40, 4294901760
    %392 = vmatpush.msra.mxu0 %v391
    %v393 = vand.u32 %v39, 4294901760
    %394 = vmatpush.msra.mxu0 %v393
    %v395 = vand.u32 %v38, 4294901760
    %396 = vmatpush.msra.mxu0 %v395
    %v397 = vand.u32 %v37, 4294901760
    %398 = vmatpush.msra.mxu0 %v397
    %399 = vmatmul.f32.gmra.mxu0 0.0
    %v400 = vpop.f32.mrf.mxu0
    %v401 = vadd.f32 %v365, %v400
    %402 = vdwg.mxu0
    %v403 = vadd.f32 %v74, %v401
    %v404 = vtanh.pop %v403
    %v405 = vmul.f32 %v403, 0.5
    %v406 = vtanh.pop %v405
    %v407 = vmul.f32 %v406, 0.5
    %v408 = vadd.f32 %v407, 0.5
    %v409 = vsel %vm60, %v404, %v408
    %410 = vrot.lane.b32.xlu0 %v409, 112
    %v411 = vpop.permute.xlu0 %410
    %412 = vrot.lane.b32.xlu0 %v409, 96
    %v413 = vpop.permute.xlu0 %412
    %414 = vrot.lane.b32.xlu0 %v409, 80
    %v415 = vpop.permute.xlu0 %414
    %v416 = vmul.f32 %v411, 0.0
    %v417 = vmul.f32 %v409, %v413
    %v418 = vadd.f32 %v416, %v417
    %v419 = vtanh.pop %v418
    %v420 = vmul.f32 %v415, %v419
    %vm421 = vcmp.eq.s32.totalorder %v55, 0
    %v422 = vsel %vm421, 1, 0
    %423 = vset.pattern.permute.xlu0 0
    %424 = vperm.xlu0 %423, %v422
    %v425 = vpop.permute.xlu0 %424
    %vm426 = vcmp.eq.s32.totalorder %v425, 1
    %v427 = vsel %vm426, %v420, 0.0
    %s428 = scalar_lea.vmem %s0, 8
    %v429 = vld [vmem:[%s428] sm:$0xff]
    %431 = vset.pattern.permute.xlu0 0
    %432 = vperm.xlu0 %431, %v429
    %v433 = vpop.permute.xlu0 %432
    %v435 = vmul.f32 %v433, %v68
    %v436 = vadd.f32 %v435, %v72
    %v437 = vand.u32 %v52, 4294901760
    %438 = vmatpush.msra.mxu0 %v437
    %v439 = vand.u32 %v51, 4294901760
    %440 = vmatpush.msra.mxu0 %v439
    %v441 = vand.u32 %v50, 4294901760
    %442 = vmatpush.msra.mxu0 %v441
    %v443 = vand.u32 %v49, 4294901760
    %444 = vmatpush.msra.mxu0 %v443
    %v445 = vand.u32 %v48, 4294901760
    %446 = vmatpush.msra.mxu0 %v445
    %v447 = vand.u32 %v47, 4294901760
    %448 = vmatpush.msra.mxu0 %v447
    %v449 = vand.u32 %v46, 4294901760
    %450 = vmatpush.msra.mxu0 %v449
    %v451 = vand.u32 %v45, 4294901760
    %452 = vmatpush.msra.mxu0 %v451
    %v453 = vand.u32 %v44, 4294901760
    %454 = vmatpush.msra.mxu0 %v453
    %v455 = vand.u32 %v43, 4294901760
    %456 = vmatpush.msra.mxu0 %v455
    %v457 = vand.u32 %v42, 4294901760
    %458 = vmatpush.msra.mxu0 %v457
    %v459 = vand.u32 %v41, 4294901760
    %460 = vmatpush.msra.mxu0 %v459
    %v461 = vand.u32 %v40, 4294901760
    %462 = vmatpush.msra.mxu0 %v461
    %v463 = vand.u32 %v39, 4294901760
    %464 = vmatpush.msra.mxu0 %v463
    %v465 = vand.u32 %v38, 4294901760
    %466 = vmatpush.msra.mxu0 %v465
    %v467 = vand.u32 %v37, 4294901760
    %468 = vmatpush.msra.mxu0 %v467
    %v469 = vand.u32 %v420, 4294901760
    %v470 = vsub.f32 %v420, %v469
    %v471 = vand.u32 %v470, 4294901760
    %v472 = vsub.f32 %v470, %v471
    %v473 = vand.u32 %v472, 4294901760
    %474 = vmatmul.f32.gmra.mxu0 %v473
    %v475 = vpop.f32.mrf.mxu0
    %v476 = vadd.f32 0.0, %v475
    %477 = vdwg.mxu0
    %v478 = vand.u32 %v52, 4294901760
    %v479 = vsub.f32 %v52, %v478
    %v480 = vand.u32 %v479, 4294901760
    %v481 = vsub.f32 %v479, %v480
    %v482 = vand.u32 %v481, 4294901760
    %483 = vmatpush.msra.mxu0 %v482
    %v484 = vand.u32 %v51, 4294901760
    %v485 = vsub.f32 %v51, %v484
    %v486 = vand.u32 %v485, 4294901760
    %v487 = vsub.f32 %v485, %v486
    %v488 = vand.u32 %v487, 4294901760
    %489 = vmatpush.msra.mxu0 %v488
    %v490 = vand.u32 %v50, 4294901760
    %v491 = vsub.f32 %v50, %v490
    %v492 = vand.u32 %v491, 4294901760
    %v493 = vsub.f32 %v491, %v492
    %v494 = vand.u32 %v493, 4294901760
    %495 = vmatpush.msra.mxu0 %v494
    %v496 = vand.u32 %v49, 4294901760
    %v497 = vsub.f32 %v49, %v496
    %v498 = vand.u32 %v497, 4294901760
    %v499 = vsub.f32 %v497, %v498
    %v500 = vand.u32 %v499, 4294901760
    %501 = vmatpush.msra.mxu0 %v500
    %v502 = vand.u32 %v48, 4294901760
    %v503 = vsub.f32 %v48, %v502
    %v504 = vand.u32 %v503, 4294901760
    %v505 = vsub.f32 %v503, %v504
    %v506 = vand.u32 %v505, 4294901760
    %507 = vmatpush.msra.mxu0 %v506
    %v508 = vand.u32 %v47, 4294901760
    %v509 = vsub.f32 %v47, %v508
    %v510 = vand.u32 %v509, 4294901760
    %v511 = vsub.f32 %v509, %v510
    %v512 = vand.u32 %v511, 4294901760
    %513 = vmatpush.msra.mxu0 %v512
    %v514 = vand.u32 %v46, 4294901760
    %v515 = vsub.f32 %v46, %v514
    %v516 = vand.u32 %v515, 4294901760
    %v517 = vsub.f32 %v515, %v516
    %v518 = vand.u32 %v517, 4294901760
    %519 = vmatpush.msra.mxu0 %v518
    %v520 = vand.u32 %v45, 4294901760
    %v521 = vsub.f32 %v45, %v520
    %v522 = vand.u32 %v521, 4294901760
    %v523 = vsub.f32 %v521, %v522
    %v524 = vand.u32 %v523, 4294901760
    %525 = vmatpush.msra.mxu0 %v524
    %v526 = vand.u32 %v44, 4294901760
    %v527 = vsub.f32 %v44, %v526
    %v528 = vand.u32 %v527, 4294901760
    %v529 = vsub.f32 %v527, %v528
    %v530 = vand.u32 %v529, 4294901760
    %531 = vmatpush.msra.mxu0 %v530
    %v532 = vand.u32 %v43, 4294901760
    %v533 = vsub.f32 %v43, %v532
    %v534 = vand.u32 %v533, 4294901760
    %v535 = vsub.f32 %v533, %v534
    %v536 = vand.u32 %v535, 4294901760
    %537 = vmatpush.msra.mxu0 %v536
    %v538 = vand.u32 %v42, 4294901760
    %v539 = vsub.f32 %v42, %v538
    %v540 = vand.u32 %v539, 4294901760
    %v541 = vsub.f32 %v539, %v540
    %v542 = vand.u32 %v541, 4294901760
    %543 = vmatpush.msra.mxu0 %v542
    %v544 = vand.u32 %v41, 4294901760
    %v545 = vsub.f32 %v41, %v544
    %v546 = vand.u32 %v545, 4294901760
    %v547 = vsub.f32 %v545, %v546
    %v548 = vand.u32 %v547, 4294901760
    %549 = vmatpush.msra.mxu0 %v548
    %v550 = vand.u32 %v40, 4294901760
    %v551 = vsub.f32 %v40, %v550
    %v552 = vand.u32 %v551, 4294901760
    %v553 = vsub.f32 %v551, %v552
    %v554 = vand.u32 %v553, 4294901760
    %555 = vmatpush.msra.mxu0 %v554
    %v556 = vand.u32 %v39, 4294901760
    %v557 = vsub.f32 %v39, %v556
    %v558 = vand.u32 %v557, 4294901760
    %v559 = vsub.f32 %v557, %v558
    %v560 = vand.u32 %v559, 4294901760
    %561 = vmatpush.msra.mxu0 %v560
    %v562 = vand.u32 %v38, 4294901760
    %v563 = vsub.f32 %v38, %v562
    %v564 = vand.u32 %v563, 4294901760
    %v565 = vsub.f32 %v563, %v564
    %v566 = vand.u32 %v565, 4294901760
    %567 = vmatpush.msra.mxu0 %v566
    %v568 = vand.u32 %v37, 4294901760
    %v569 = vsub.f32 %v37, %v568
    %v570 = vand.u32 %v569, 4294901760
    %v571 = vsub.f32 %v569, %v570
    %v572 = vand.u32 %v571, 4294901760
    %573 = vmatpush.msra.mxu0 %v572
    %v574 = vand.u32 %v420, 4294901760
    %575 = vmatmul.f32.gmra.mxu0 %v574
    %v576 = vpop.f32.mrf.mxu0
    %v577 = vadd.f32 %v476, %v576
    %578 = vdwg.mxu0
    %v579 = vand.u32 %v52, 4294901760
    %v580 = vsub.f32 %v52, %v579
    %581 = vmatpush.msra.mxu0 %v580
    %v582 = vand.u32 %v51, 4294901760
    %v583 = vsub.f32 %v51, %v582
    %584 = vmatpush.msra.mxu0 %v583
    %v585 = vand.u32 %v50, 4294901760
    %v586 = vsub.f32 %v50, %v585
    %587 = vmatpush.msra.mxu0 %v586
    %v588 = vand.u32 %v49, 4294901760
    %v589 = vsub.f32 %v49, %v588
    %590 = vmatpush.msra.mxu0 %v589
    %v591 = vand.u32 %v48, 4294901760
    %v592 = vsub.f32 %v48, %v591
    %593 = vmatpush.msra.mxu0 %v592
    %v594 = vand.u32 %v47, 4294901760
    %v595 = vsub.f32 %v47, %v594
    %596 = vmatpush.msra.mxu0 %v595
    %v597 = vand.u32 %v46, 4294901760
    %v598 = vsub.f32 %v46, %v597
    %599 = vmatpush.msra.mxu0 %v598
    %v600 = vand.u32 %v45, 4294901760
    %v601 = vsub.f32 %v45, %v600
    %602 = vmatpush.msra.mxu0 %v601
    %v603 = vand.u32 %v44, 4294901760
    %v604 = vsub.f32 %v44, %v603
    %605 = vmatpush.msra.mxu0 %v604
    %v606 = vand.u32 %v43, 4294901760
    %v607 = vsub.f32 %v43, %v606
    %608 = vmatpush.msra.mxu0 %v607
    %v609 = vand.u32 %v42, 4294901760
    %v610 = vsub.f32 %v42, %v609
    %611 = vmatpush.msra.mxu0 %v610
    %v612 = vand.u32 %v41, 4294901760
    %v613 = vsub.f32 %v41, %v612
    %614 = vmatpush.msra.mxu0 %v613
    %v615 = vand.u32 %v40, 4294901760
    %v616 = vsub.f32 %v40, %v615
    %617 = vmatpush.msra.mxu0 %v616
    %v618 = vand.u32 %v39, 4294901760
    %v619 = vsub.f32 %v39, %v618
    %620 = vmatpush.msra.mxu0 %v619
    %v621 = vand.u32 %v38, 4294901760
    %v622 = vsub.f32 %v38, %v621
    %623 = vmatpush.msra.mxu0 %v622
    %v624 = vand.u32 %v37, 4294901760
    %v625 = vsub.f32 %v37, %v624
    %626 = vmatpush.msra.mxu0 %v625
    %v627 = vand.u32 %v420, 4294901760
    %v628 = vsub.f32 %v420, %v627
    %629 = vmatmul.f32.gmra.mxu0 %v628
    %v630 = vpop.f32.mrf.mxu0
    %v631 = vadd.f32 %v577, %v630
    %632 = vdwg.mxu0
    %v633 = vand.u32 %v52, 4294901760
    %634 = vmatpush.msra.mxu0 %v633
    %v635 = vand.u32 %v51, 4294901760
    %636 = vmatpush.msra.mxu0 %v635
    %v637 = vand.u32 %v50, 4294901760
    %638 = vmatpush.msra.mxu0 %v637
    %v639 = vand.u32 %v49, 4294901760
    %640 = vmatpush.msra.mxu0 %v639
    %v641 = vand.u32 %v48, 4294901760
    %642 = vmatpush.msra.mxu0 %v641
    %v643 = vand.u32 %v47, 4294901760
    %644 = vmatpush.msra.mxu0 %v643
    %v645 = vand.u32 %v46, 4294901760
    %646 = vmatpush.msra.mxu0 %v645
    %v647 = vand.u32 %v45, 4294901760
    %648 = vmatpush.msra.mxu0 %v647
    %v649 = vand.u32 %v44, 4294901760
    %650 = vmatpush.msra.mxu0 %v649
    %v651 = vand.u32 %v43, 4294901760
    %652 = vmatpush.msra.mxu0 %v651
    %v653 = vand.u32 %v42, 4294901760
    %654 = vmatpush.msra.mxu0 %v653
    %v655 = vand.u32 %v41, 4294901760
    %656 = vmatpush.msra.mxu0 %v655
    %v657 = vand.u32 %v40, 4294901760
    %658 = vmatpush.msra.mxu0 %v657
    %v659 = vand.u32 %v39, 4294901760
    %660 = vmatpush.msra.mxu0 %v659
    %v661 = vand.u32 %v38, 4294901760
    %662 = vmatpush.msra.mxu0 %v661
    %v663 = vand.u32 %v37, 4294901760
    %664 = vmatpush.msra.mxu0 %v663
    %v665 = vand.u32 %v420, 4294901760
    %v666 = vsub.f32 %v420, %v665
    %v667 = vand.u32 %v666, 4294901760
    %668 = vmatmul.f32.gmra.mxu0 %v667
    %v669 = vpop.f32.mrf.mxu0
    %v670 = vadd.f32 %v631, %v669
    %671 = vdwg.mxu0
    %v672 = vand.u32 %v52, 4294901760
    %v673 = vsub.f32 %v52, %v672
    %v674 = vand.u32 %v673, 4294901760
    %675 = vmatpush.msra.mxu0 %v674
    %v676 = vand.u32 %v51, 4294901760
    %v677 = vsub.f32 %v51, %v676
    %v678 = vand.u32 %v677, 4294901760
    %679 = vmatpush.msra.mxu0 %v678
    %v680 = vand.u32 %v50, 4294901760
    %v681 = vsub.f32 %v50, %v680
    %v682 = vand.u32 %v681, 4294901760
    %683 = vmatpush.msra.mxu0 %v682
    %v684 = vand.u32 %v49, 4294901760
    %v685 = vsub.f32 %v49, %v684
    %v686 = vand.u32 %v685, 4294901760
    %687 = vmatpush.msra.mxu0 %v686
    %v688 = vand.u32 %v48, 4294901760
    %v689 = vsub.f32 %v48, %v688
    %v690 = vand.u32 %v689, 4294901760
    %691 = vmatpush.msra.mxu0 %v690
    %v692 = vand.u32 %v47, 4294901760
    %v693 = vsub.f32 %v47, %v692
    %v694 = vand.u32 %v693, 4294901760
    %695 = vmatpush.msra.mxu0 %v694
    %v696 = vand.u32 %v46, 4294901760
    %v697 = vsub.f32 %v46, %v696
    %v698 = vand.u32 %v697, 4294901760
    %699 = vmatpush.msra.mxu0 %v698
    %v700 = vand.u32 %v45, 4294901760
    %v701 = vsub.f32 %v45, %v700
    %v702 = vand.u32 %v701, 4294901760
    %703 = vmatpush.msra.mxu0 %v702
    %v704 = vand.u32 %v44, 4294901760
    %v705 = vsub.f32 %v44, %v704
    %v706 = vand.u32 %v705, 4294901760
    %707 = vmatpush.msra.mxu0 %v706
    %v708 = vand.u32 %v43, 4294901760
    %v709 = vsub.f32 %v43, %v708
    %v710 = vand.u32 %v709, 4294901760
    %711 = vmatpush.msra.mxu0 %v710
    %v712 = vand.u32 %v42, 4294901760
    %v713 = vsub.f32 %v42, %v712
    %v714 = vand.u32 %v713, 4294901760
    %715 = vmatpush.msra.mxu0 %v714
    %v716 = vand.u32 %v41, 4294901760
    %v717 = vsub.f32 %v41, %v716
    %v718 = vand.u32 %v717, 4294901760
    %719 = vmatpush.msra.mxu0 %v718
    %v720 = vand.u32 %v40, 4294901760
    %v721 = vsub.f32 %v40, %v720
    %v722 = vand.u32 %v721, 4294901760
    %723 = vmatpush.msra.mxu0 %v722
    %v724 = vand.u32 %v39, 4294901760
    %v725 = vsub.f32 %v39, %v724
    %v726 = vand.u32 %v725, 4294901760
    %727 = vmatpush.msra.mxu0 %v726
    %v728 = vand.u32 %v38, 4294901760
    %v729 = vsub.f32 %v38, %v728
    %v730 = vand.u32 %v729, 4294901760
    %731 = vmatpush.msra.mxu0 %v730
    %v732 = vand.u32 %v37, 4294901760
    %v733 = vsub.f32 %v37, %v732
    %v734 = vand.u32 %v733, 4294901760
    %735 = vmatpush.msra.mxu0 %v734
    %v736 = vand.u32 %v420, 4294901760
    %737 = vmatmul.f32.gmra.mxu0 %v736
    %v738 = vpop.f32.mrf.mxu0
    %v739 = vadd.f32 %v670, %v738
    %740 = vdwg.mxu0
    %v741 = vand.u32 %v52, 4294901760
    %742 = vmatpush.msra.mxu0 %v741
    %v743 = vand.u32 %v51, 4294901760
    %744 = vmatpush.msra.mxu0 %v743
    %v745 = vand.u32 %v50, 4294901760
    %746 = vmatpush.msra.mxu0 %v745
    %v747 = vand.u32 %v49, 4294901760
    %748 = vmatpush.msra.mxu0 %v747
    %v749 = vand.u32 %v48, 4294901760
    %750 = vmatpush.msra.mxu0 %v749
    %v751 = vand.u32 %v47, 4294901760
    %752 = vmatpush.msra.mxu0 %v751
    %v753 = vand.u32 %v46, 4294901760
    %754 = vmatpush.msra.mxu0 %v753
    %v755 = vand.u32 %v45, 4294901760
    %756 = vmatpush.msra.mxu0 %v755
    %v757 = vand.u32 %v44, 4294901760
    %758 = vmatpush.msra.mxu0 %v757
    %v759 = vand.u32 %v43, 4294901760
    %760 = vmatpush.msra.mxu0 %v759
    %v761 = vand.u32 %v42, 4294901760
    %762 = vmatpush.msra.mxu0 %v761
    %v763 = vand.u32 %v41, 4294901760
    %764 = vmatpush.msra.mxu0 %v763
    %v765 = vand.u32 %v40, 4294901760
    %766 = vmatpush.msra.mxu0 %v765
    %v767 = vand.u32 %v39, 4294901760
    %768 = vmatpush.msra.mxu0 %v767
    %v769 = vand.u32 %v38, 4294901760
    %770 = vmatpush.msra.mxu0 %v769
    %v771 = vand.u32 %v37, 4294901760
    %772 = vmatpush.msra.mxu0 %v771
    %v773 = vand.u32 %v420, 4294901760
    %774 = vmatmul.f32.gmra.mxu0 %v773
    %v775 = vpop.f32.mrf.mxu0
    %v776 = vadd.f32 %v739, %v775
    %777 = vdwg.mxu0
    %v778 = vadd.f32 %v436, %v776
    %v779 = vtanh.pop %v778
    %v780 = vmul.f32 %v778, 0.5
    %v781 = vtanh.pop %v780
    %v782 = vmul.f32 %v781, 0.5
    %v783 = vadd.f32 %v782, 0.5
    %v784 = vsel %vm60, %v779, %v783
    %785 = vrot.lane.b32.xlu0 %v784, 112
    %v786 = vpop.permute.xlu0 %785
    %787 = vrot.lane.b32.xlu0 %v784, 96
    %v788 = vpop.permute.xlu0 %787
    %789 = vrot.lane.b32.xlu0 %v784, 80
    %v790 = vpop.permute.xlu0 %789
    %v791 = vmul.f32 %v786, %v418
    %v792 = vmul.f32 %v784, %v788
    %v793 = vadd.f32 %v791, %v792
    %v794 = vtanh.pop %v793
    %v795 = vmul.f32 %v790, %v794
    %vm796 = vcmp.eq.s32.totalorder %v55, 1
    %v797 = vsel %vm796, 1, 0
    %798 = vset.pattern.permute.xlu0 0
    %799 = vperm.xlu0 %798, %v797
    %v800 = vpop.permute.xlu0 %799
    %vm801 = vcmp.eq.s32.totalorder %v800, 1
    %v802 = vsel %vm801, %v795, %v427
    %s803 = scalar_lea.vmem %s0, 16
    %v804 = vld [vmem:[%s803] sm:$0xff]
    %806 = vset.pattern.permute.xlu0 0
    %807 = vperm.xlu0 %806, %v804
    %v808 = vpop.permute.xlu0 %807
    %v810 = vmul.f32 %v808, %v68
    %v811 = vadd.f32 %v810, %v72
    %v812 = vand.u32 %v52, 4294901760
    %813 = vmatpush.msra.mxu0 %v812
    %v814 = vand.u32 %v51, 4294901760
    %815 = vmatpush.msra.mxu0 %v814
    %v816 = vand.u32 %v50, 4294901760
    %817 = vmatpush.msra.mxu0 %v816
    %v818 = vand.u32 %v49, 4294901760
    %819 = vmatpush.msra.mxu0 %v818
    %v820 = vand.u32 %v48, 4294901760
    %821 = vmatpush.msra.mxu0 %v820
    %v822 = vand.u32 %v47, 4294901760
    %823 = vmatpush.msra.mxu0 %v822
    %v824 = vand.u32 %v46, 4294901760
    %825 = vmatpush.msra.mxu0 %v824
    %v826 = vand.u32 %v45, 4294901760
    %827 = vmatpush.msra.mxu0 %v826
    %v828 = vand.u32 %v44, 4294901760
    %829 = vmatpush.msra.mxu0 %v828
    %v830 = vand.u32 %v43, 4294901760
    %831 = vmatpush.msra.mxu0 %v830
    %v832 = vand.u32 %v42, 4294901760
    %833 = vmatpush.msra.mxu0 %v832
    %v834 = vand.u32 %v41, 4294901760
    %835 = vmatpush.msra.mxu0 %v834
    %v836 = vand.u32 %v40, 4294901760
    %837 = vmatpush.msra.mxu0 %v836
    %v838 = vand.u32 %v39, 4294901760
    %839 = vmatpush.msra.mxu0 %v838
    %v840 = vand.u32 %v38, 4294901760
    %841 = vmatpush.msra.mxu0 %v840
    %v842 = vand.u32 %v37, 4294901760
    %843 = vmatpush.msra.mxu0 %v842
    %v844 = vand.u32 %v795, 4294901760
    %v845 = vsub.f32 %v795, %v844
    %v846 = vand.u32 %v845, 4294901760
    %v847 = vsub.f32 %v845, %v846
    %v848 = vand.u32 %v847, 4294901760
    %849 = vmatmul.f32.gmra.mxu0 %v848
    %v850 = vpop.f32.mrf.mxu0
    %v851 = vadd.f32 0.0, %v850
    %852 = vdwg.mxu0
    %v853 = vand.u32 %v52, 4294901760
    %v854 = vsub.f32 %v52, %v853
    %v855 = vand.u32 %v854, 4294901760
    %v856 = vsub.f32 %v854, %v855
    %v857 = vand.u32 %v856, 4294901760
    %858 = vmatpush.msra.mxu0 %v857
    %v859 = vand.u32 %v51, 4294901760
    %v860 = vsub.f32 %v51, %v859
    %v861 = vand.u32 %v860, 4294901760
    %v862 = vsub.f32 %v860, %v861
    %v863 = vand.u32 %v862, 4294901760
    %864 = vmatpush.msra.mxu0 %v863
    %v865 = vand.u32 %v50, 4294901760
    %v866 = vsub.f32 %v50, %v865
    %v867 = vand.u32 %v866, 4294901760
    %v868 = vsub.f32 %v866, %v867
    %v869 = vand.u32 %v868, 4294901760
    %870 = vmatpush.msra.mxu0 %v869
    %v871 = vand.u32 %v49, 4294901760
    %v872 = vsub.f32 %v49, %v871
    %v873 = vand.u32 %v872, 4294901760
    %v874 = vsub.f32 %v872, %v873
    %v875 = vand.u32 %v874, 4294901760
    %876 = vmatpush.msra.mxu0 %v875
    %v877 = vand.u32 %v48, 4294901760
    %v878 = vsub.f32 %v48, %v877
    %v879 = vand.u32 %v878, 4294901760
    %v880 = vsub.f32 %v878, %v879
    %v881 = vand.u32 %v880, 4294901760
    %882 = vmatpush.msra.mxu0 %v881
    %v883 = vand.u32 %v47, 4294901760
    %v884 = vsub.f32 %v47, %v883
    %v885 = vand.u32 %v884, 4294901760
    %v886 = vsub.f32 %v884, %v885
    %v887 = vand.u32 %v886, 4294901760
    %888 = vmatpush.msra.mxu0 %v887
    %v889 = vand.u32 %v46, 4294901760
    %v890 = vsub.f32 %v46, %v889
    %v891 = vand.u32 %v890, 4294901760
    %v892 = vsub.f32 %v890, %v891
    %v893 = vand.u32 %v892, 4294901760
    %894 = vmatpush.msra.mxu0 %v893
    %v895 = vand.u32 %v45, 4294901760
    %v896 = vsub.f32 %v45, %v895
    %v897 = vand.u32 %v896, 4294901760
    %v898 = vsub.f32 %v896, %v897
    %v899 = vand.u32 %v898, 4294901760
    %900 = vmatpush.msra.mxu0 %v899
    %v901 = vand.u32 %v44, 4294901760
    %v902 = vsub.f32 %v44, %v901
    %v903 = vand.u32 %v902, 4294901760
    %v904 = vsub.f32 %v902, %v903
    %v905 = vand.u32 %v904, 4294901760
    %906 = vmatpush.msra.mxu0 %v905
    %v907 = vand.u32 %v43, 4294901760
    %v908 = vsub.f32 %v43, %v907
    %v909 = vand.u32 %v908, 4294901760
    %v910 = vsub.f32 %v908, %v909
    %v911 = vand.u32 %v910, 4294901760
    %912 = vmatpush.msra.mxu0 %v911
    %v913 = vand.u32 %v42, 4294901760
    %v914 = vsub.f32 %v42, %v913
    %v915 = vand.u32 %v914, 4294901760
    %v916 = vsub.f32 %v914, %v915
    %v917 = vand.u32 %v916, 4294901760
    %918 = vmatpush.msra.mxu0 %v917
    %v919 = vand.u32 %v41, 4294901760
    %v920 = vsub.f32 %v41, %v919
    %v921 = vand.u32 %v920, 4294901760
    %v922 = vsub.f32 %v920, %v921
    %v923 = vand.u32 %v922, 4294901760
    %924 = vmatpush.msra.mxu0 %v923
    %v925 = vand.u32 %v40, 4294901760
    %v926 = vsub.f32 %v40, %v925
    %v927 = vand.u32 %v926, 4294901760
    %v928 = vsub.f32 %v926, %v927
    %v929 = vand.u32 %v928, 4294901760
    %930 = vmatpush.msra.mxu0 %v929
    %v931 = vand.u32 %v39, 4294901760
    %v932 = vsub.f32 %v39, %v931
    %v933 = vand.u32 %v932, 4294901760
    %v934 = vsub.f32 %v932, %v933
    %v935 = vand.u32 %v934, 4294901760
    %936 = vmatpush.msra.mxu0 %v935
    %v937 = vand.u32 %v38, 4294901760
    %v938 = vsub.f32 %v38, %v937
    %v939 = vand.u32 %v938, 4294901760
    %v940 = vsub.f32 %v938, %v939
    %v941 = vand.u32 %v940, 4294901760
    %942 = vmatpush.msra.mxu0 %v941
    %v943 = vand.u32 %v37, 4294901760
    %v944 = vsub.f32 %v37, %v943
    %v945 = vand.u32 %v944, 4294901760
    %v946 = vsub.f32 %v944, %v945
    %v947 = vand.u32 %v946, 4294901760
    %948 = vmatpush.msra.mxu0 %v947
    %v949 = vand.u32 %v795, 4294901760
    %950 = vmatmul.f32.gmra.mxu0 %v949
    %v951 = vpop.f32.mrf.mxu0
    %v952 = vadd.f32 %v851, %v951
    %953 = vdwg.mxu0
    %v954 = vand.u32 %v52, 4294901760
    %v955 = vsub.f32 %v52, %v954
    %956 = vmatpush.msra.mxu0 %v955
    %v957 = vand.u32 %v51, 4294901760
    %v958 = vsub.f32 %v51, %v957
    %959 = vmatpush.msra.mxu0 %v958
    %v960 = vand.u32 %v50, 4294901760
    %v961 = vsub.f32 %v50, %v960
    %962 = vmatpush.msra.mxu0 %v961
    %v963 = vand.u32 %v49, 4294901760
    %v964 = vsub.f32 %v49, %v963
    %965 = vmatpush.msra.mxu0 %v964
    %v966 = vand.u32 %v48, 4294901760
    %v967 = vsub.f32 %v48, %v966
    %968 = vmatpush.msra.mxu0 %v967
    %v969 = vand.u32 %v47, 4294901760
    %v970 = vsub.f32 %v47, %v969
    %971 = vmatpush.msra.mxu0 %v970
    %v972 = vand.u32 %v46, 4294901760
    %v973 = vsub.f32 %v46, %v972
    %974 = vmatpush.msra.mxu0 %v973
    %v975 = vand.u32 %v45, 4294901760
    %v976 = vsub.f32 %v45, %v975
    %977 = vmatpush.msra.mxu0 %v976
    %v978 = vand.u32 %v44, 4294901760
    %v979 = vsub.f32 %v44, %v978
    %980 = vmatpush.msra.mxu0 %v979
    %v981 = vand.u32 %v43, 4294901760
    %v982 = vsub.f32 %v43, %v981
    %983 = vmatpush.msra.mxu0 %v982
    %v984 = vand.u32 %v42, 4294901760
    %v985 = vsub.f32 %v42, %v984
    %986 = vmatpush.msra.mxu0 %v985
    %v987 = vand.u32 %v41, 4294901760
    %v988 = vsub.f32 %v41, %v987
    %989 = vmatpush.msra.mxu0 %v988
    %v990 = vand.u32 %v40, 4294901760
    %v991 = vsub.f32 %v40, %v990
    %992 = vmatpush.msra.mxu0 %v991
    %v993 = vand.u32 %v39, 4294901760
    %v994 = vsub.f32 %v39, %v993
    %995 = vmatpush.msra.mxu0 %v994
    %v996 = vand.u32 %v38, 4294901760
    %v997 = vsub.f32 %v38, %v996
    %998 = vmatpush.msra.mxu0 %v997
    %v999 = vand.u32 %v37, 4294901760
    %v1000 = vsub.f32 %v37, %v999
    %1001 = vmatpush.msra.mxu0 %v1000
    %v1002 = vand.u32 %v795, 4294901760
    %v1003 = vsub.f32 %v795, %v1002
    %1004 = vmatmul.f32.gmra.mxu0 %v1003
    %v1005 = vpop.f32.mrf.mxu0
    %v1006 = vadd.f32 %v952, %v1005
    %1007 = vdwg.mxu0
    %v1008 = vand.u32 %v52, 4294901760
    %1009 = vmatpush.msra.mxu0 %v1008
    %v1010 = vand.u32 %v51, 4294901760
    %1011 = vmatpush.msra.mxu0 %v1010
    %v1012 = vand.u32 %v50, 4294901760
    %1013 = vmatpush.msra.mxu0 %v1012
    %v1014 = vand.u32 %v49, 4294901760
    %1015 = vmatpush.msra.mxu0 %v1014
    %v1016 = vand.u32 %v48, 4294901760
    %1017 = vmatpush.msra.mxu0 %v1016
    %v1018 = vand.u32 %v47, 4294901760
    %1019 = vmatpush.msra.mxu0 %v1018
    %v1020 = vand.u32 %v46, 4294901760
    %1021 = vmatpush.msra.mxu0 %v1020
    %v1022 = vand.u32 %v45, 4294901760
    %1023 = vmatpush.msra.mxu0 %v1022
    %v1024 = vand.u32 %v44, 4294901760
    %1025 = vmatpush.msra.mxu0 %v1024
    %v1026 = vand.u32 %v43, 4294901760
    %1027 = vmatpush.msra.mxu0 %v1026
    %v1028 = vand.u32 %v42, 4294901760
    %1029 = vmatpush.msra.mxu0 %v1028
    %v1030 = vand.u32 %v41, 4294901760
    %1031 = vmatpush.msra.mxu0 %v1030
    %v1032 = vand.u32 %v40, 4294901760
    %1033 = vmatpush.msra.mxu0 %v1032
    %v1034 = vand.u32 %v39, 4294901760
    %1035 = vmatpush.msra.mxu0 %v1034
    %v1036 = vand.u32 %v38, 4294901760
    %1037 = vmatpush.msra.mxu0 %v1036
    %v1038 = vand.u32 %v37, 4294901760
    %1039 = vmatpush.msra.mxu0 %v1038
    %v1040 = vand.u32 %v795, 4294901760
    %v1041 = vsub.f32 %v795, %v1040
    %v1042 = vand.u32 %v1041, 4294901760
    %1043 = vmatmul.f32.gmra.mxu0 %v1042
    %v1044 = vpop.f32.mrf.mxu0
    %v1045 = vadd.f32 %v1006, %v1044
    %1046 = vdwg.mxu0
    %v1047 = vand.u32 %v52, 4294901760
    %v1048 = vsub.f32 %v52, %v1047
    %v1049 = vand.u32 %v1048, 4294901760
    %1050 = vmatpush.msra.mxu0 %v1049
    %v1051 = vand.u32 %v51, 4294901760
    %v1052 = vsub.f32 %v51, %v1051
    %v1053 = vand.u32 %v1052, 4294901760
    %1054 = vmatpush.msra.mxu0 %v1053
    %v1055 = vand.u32 %v50, 4294901760
    %v1056 = vsub.f32 %v50, %v1055
    %v1057 = vand.u32 %v1056, 4294901760
    %1058 = vmatpush.msra.mxu0 %v1057
    %v1059 = vand.u32 %v49, 4294901760
    %v1060 = vsub.f32 %v49, %v1059
    %v1061 = vand.u32 %v1060, 4294901760
    %1062 = vmatpush.msra.mxu0 %v1061
    %v1063 = vand.u32 %v48, 4294901760
    %v1064 = vsub.f32 %v48, %v1063
    %v1065 = vand.u32 %v1064, 4294901760
    %1066 = vmatpush.msra.mxu0 %v1065
    %v1067 = vand.u32 %v47, 4294901760
    %v1068 = vsub.f32 %v47, %v1067
    %v1069 = vand.u32 %v1068, 4294901760
    %1070 = vmatpush.msra.mxu0 %v1069
    %v1071 = vand.u32 %v46, 4294901760
    %v1072 = vsub.f32 %v46, %v1071
    %v1073 = vand.u32 %v1072, 4294901760
    %1074 = vmatpush.msra.mxu0 %v1073
    %v1075 = vand.u32 %v45, 4294901760
    %v1076 = vsub.f32 %v45, %v1075
    %v1077 = vand.u32 %v1076, 4294901760
    %1078 = vmatpush.msra.mxu0 %v1077
    %v1079 = vand.u32 %v44, 4294901760
    %v1080 = vsub.f32 %v44, %v1079
    %v1081 = vand.u32 %v1080, 4294901760
    %1082 = vmatpush.msra.mxu0 %v1081
    %v1083 = vand.u32 %v43, 4294901760
    %v1084 = vsub.f32 %v43, %v1083
    %v1085 = vand.u32 %v1084, 4294901760
    %1086 = vmatpush.msra.mxu0 %v1085
    %v1087 = vand.u32 %v42, 4294901760
    %v1088 = vsub.f32 %v42, %v1087
    %v1089 = vand.u32 %v1088, 4294901760
    %1090 = vmatpush.msra.mxu0 %v1089
    %v1091 = vand.u32 %v41, 4294901760
    %v1092 = vsub.f32 %v41, %v1091
    %v1093 = vand.u32 %v1092, 4294901760
    %1094 = vmatpush.msra.mxu0 %v1093
    %v1095 = vand.u32 %v40, 4294901760
    %v1096 = vsub.f32 %v40, %v1095
    %v1097 = vand.u32 %v1096, 4294901760
    %1098 = vmatpush.msra.mxu0 %v1097
    %v1099 = vand.u32 %v39, 4294901760
    %v1100 = vsub.f32 %v39, %v1099
    %v1101 = vand.u32 %v1100, 4294901760
    %1102 = vmatpush.msra.mxu0 %v1101
    %v1103 = vand.u32 %v38, 4294901760
    %v1104 = vsub.f32 %v38, %v1103
    %v1105 = vand.u32 %v1104, 4294901760
    %1106 = vmatpush.msra.mxu0 %v1105
    %v1107 = vand.u32 %v37, 4294901760
    %v1108 = vsub.f32 %v37, %v1107
    %v1109 = vand.u32 %v1108, 4294901760
    %1110 = vmatpush.msra.mxu0 %v1109
    %v1111 = vand.u32 %v795, 4294901760
    %1112 = vmatmul.f32.gmra.mxu0 %v1111
    %v1113 = vpop.f32.mrf.mxu0
    %v1114 = vadd.f32 %v1045, %v1113
    %1115 = vdwg.mxu0
    %v1116 = vand.u32 %v52, 4294901760
    %1117 = vmatpush.msra.mxu0 %v1116
    %v1118 = vand.u32 %v51, 4294901760
    %1119 = vmatpush.msra.mxu0 %v1118
    %v1120 = vand.u32 %v50, 4294901760
    %1121 = vmatpush.msra.mxu0 %v1120
    %v1122 = vand.u32 %v49, 4294901760
    %1123 = vmatpush.msra.mxu0 %v1122
    %v1124 = vand.u32 %v48, 4294901760
    %1125 = vmatpush.msra.mxu0 %v1124
    %v1126 = vand.u32 %v47, 4294901760
    %1127 = vmatpush.msra.mxu0 %v1126
    %v1128 = vand.u32 %v46, 4294901760
    %1129 = vmatpush.msra.mxu0 %v1128
    %v1130 = vand.u32 %v45, 4294901760
    %1131 = vmatpush.msra.mxu0 %v1130
    %v1132 = vand.u32 %v44, 4294901760
    %1133 = vmatpush.msra.mxu0 %v1132
    %v1134 = vand.u32 %v43, 4294901760
    %1135 = vmatpush.msra.mxu0 %v1134
    %v1136 = vand.u32 %v42, 4294901760
    %1137 = vmatpush.msra.mxu0 %v1136
    %v1138 = vand.u32 %v41, 4294901760
    %1139 = vmatpush.msra.mxu0 %v1138
    %v1140 = vand.u32 %v40, 4294901760
    %1141 = vmatpush.msra.mxu0 %v1140
    %v1142 = vand.u32 %v39, 4294901760
    %1143 = vmatpush.msra.mxu0 %v1142
    %v1144 = vand.u32 %v38, 4294901760
    %1145 = vmatpush.msra.mxu0 %v1144
    %v1146 = vand.u32 %v37, 4294901760
    %1147 = vmatpush.msra.mxu0 %v1146
    %v1148 = vand.u32 %v795, 4294901760
    %1149 = vmatmul.f32.gmra.mxu0 %v1148
    %v1150 = vpop.f32.mrf.mxu0
    %v1151 = vadd.f32 %v1114, %v1150
    %1152 = vdwg.mxu0
    %v1153 = vadd.f32 %v811, %v1151
    %v1154 = vtanh.pop %v1153
    %v1155 = vmul.f32 %v1153, 0.5
    %v1156 = vtanh.pop %v1155
    %v1157 = vmul.f32 %v1156, 0.5
    %v1158 = vadd.f32 %v1157, 0.5
    %v1159 = vsel %vm60, %v1154, %v1158
    %1160 = vrot.lane.b32.xlu0 %v1159, 112
    %v1161 = vpop.permute.xlu0 %1160
    %1162 = vrot.lane.b32.xlu0 %v1159, 96
    %v1163 = vpop.permute.xlu0 %1162
    %1164 = vrot.lane.b32.xlu0 %v1159, 80
    %v1165 = vpop.permute.xlu0 %1164
    %v1166 = vmul.f32 %v1161, %v793
    %v1167 = vmul.f32 %v1159, %v1163
    %v1168 = vadd.f32 %v1166, %v1167
    %v1169 = vtanh.pop %v1168
    %v1170 = vmul.f32 %v1165, %v1169
    %vm1171 = vcmp.eq.s32.totalorder %v55, 2
    %v1172 = vsel %vm1171, 1, 0
    %1173 = vset.pattern.permute.xlu0 0
    %1174 = vperm.xlu0 %1173, %v1172
    %v1175 = vpop.permute.xlu0 %1174
    %vm1176 = vcmp.eq.s32.totalorder %v1175, 1
    %v1177 = vsel %vm1176, %v1170, %v802
    %s1178 = scalar_lea.vmem %s0, 24
    %v1179 = vld [vmem:[%s1178] sm:$0xff]
    %1181 = vset.pattern.permute.xlu0 0
    %1182 = vperm.xlu0 %1181, %v1179
    %v1183 = vpop.permute.xlu0 %1182
    %v1185 = vmul.f32 %v1183, %v68
    %v1186 = vadd.f32 %v1185, %v72
    %v1187 = vand.u32 %v52, 4294901760
    %1188 = vmatpush.msra.mxu0 %v1187
    %v1189 = vand.u32 %v51, 4294901760
    %1190 = vmatpush.msra.mxu0 %v1189
    %v1191 = vand.u32 %v50, 4294901760
    %1192 = vmatpush.msra.mxu0 %v1191
    %v1193 = vand.u32 %v49, 4294901760
    %1194 = vmatpush.msra.mxu0 %v1193
    %v1195 = vand.u32 %v48, 4294901760
    %1196 = vmatpush.msra.mxu0 %v1195
    %v1197 = vand.u32 %v47, 4294901760
    %1198 = vmatpush.msra.mxu0 %v1197
    %v1199 = vand.u32 %v46, 4294901760
    %1200 = vmatpush.msra.mxu0 %v1199
    %v1201 = vand.u32 %v45, 4294901760
    %1202 = vmatpush.msra.mxu0 %v1201
    %v1203 = vand.u32 %v44, 4294901760
    %1204 = vmatpush.msra.mxu0 %v1203
    %v1205 = vand.u32 %v43, 4294901760
    %1206 = vmatpush.msra.mxu0 %v1205
    %v1207 = vand.u32 %v42, 4294901760
    %1208 = vmatpush.msra.mxu0 %v1207
    %v1209 = vand.u32 %v41, 4294901760
    %1210 = vmatpush.msra.mxu0 %v1209
    %v1211 = vand.u32 %v40, 4294901760
    %1212 = vmatpush.msra.mxu0 %v1211
    %v1213 = vand.u32 %v39, 4294901760
    %1214 = vmatpush.msra.mxu0 %v1213
    %v1215 = vand.u32 %v38, 4294901760
    %1216 = vmatpush.msra.mxu0 %v1215
    %v1217 = vand.u32 %v37, 4294901760
    %1218 = vmatpush.msra.mxu0 %v1217
    %v1219 = vand.u32 %v1170, 4294901760
    %v1220 = vsub.f32 %v1170, %v1219
    %v1221 = vand.u32 %v1220, 4294901760
    %v1222 = vsub.f32 %v1220, %v1221
    %v1223 = vand.u32 %v1222, 4294901760
    %1224 = vmatmul.f32.gmra.mxu0 %v1223
    %v1225 = vpop.f32.mrf.mxu0
    %v1226 = vadd.f32 0.0, %v1225
    %1227 = vdwg.mxu0
    %v1228 = vand.u32 %v52, 4294901760
    %v1229 = vsub.f32 %v52, %v1228
    %v1230 = vand.u32 %v1229, 4294901760
    %v1231 = vsub.f32 %v1229, %v1230
    %v1232 = vand.u32 %v1231, 4294901760
    %1233 = vmatpush.msra.mxu0 %v1232
    %v1234 = vand.u32 %v51, 4294901760
    %v1235 = vsub.f32 %v51, %v1234
    %v1236 = vand.u32 %v1235, 4294901760
    %v1237 = vsub.f32 %v1235, %v1236
    %v1238 = vand.u32 %v1237, 4294901760
    %1239 = vmatpush.msra.mxu0 %v1238
    %v1240 = vand.u32 %v50, 4294901760
    %v1241 = vsub.f32 %v50, %v1240
    %v1242 = vand.u32 %v1241, 4294901760
    %v1243 = vsub.f32 %v1241, %v1242
    %v1244 = vand.u32 %v1243, 4294901760
    %1245 = vmatpush.msra.mxu0 %v1244
    %v1246 = vand.u32 %v49, 4294901760
    %v1247 = vsub.f32 %v49, %v1246
    %v1248 = vand.u32 %v1247, 4294901760
    %v1249 = vsub.f32 %v1247, %v1248
    %v1250 = vand.u32 %v1249, 4294901760
    %1251 = vmatpush.msra.mxu0 %v1250
    %v1252 = vand.u32 %v48, 4294901760
    %v1253 = vsub.f32 %v48, %v1252
    %v1254 = vand.u32 %v1253, 4294901760
    %v1255 = vsub.f32 %v1253, %v1254
    %v1256 = vand.u32 %v1255, 4294901760
    %1257 = vmatpush.msra.mxu0 %v1256
    %v1258 = vand.u32 %v47, 4294901760
    %v1259 = vsub.f32 %v47, %v1258
    %v1260 = vand.u32 %v1259, 4294901760
    %v1261 = vsub.f32 %v1259, %v1260
    %v1262 = vand.u32 %v1261, 4294901760
    %1263 = vmatpush.msra.mxu0 %v1262
    %v1264 = vand.u32 %v46, 4294901760
    %v1265 = vsub.f32 %v46, %v1264
    %v1266 = vand.u32 %v1265, 4294901760
    %v1267 = vsub.f32 %v1265, %v1266
    %v1268 = vand.u32 %v1267, 4294901760
    %1269 = vmatpush.msra.mxu0 %v1268
    %v1270 = vand.u32 %v45, 4294901760
    %v1271 = vsub.f32 %v45, %v1270
    %v1272 = vand.u32 %v1271, 4294901760
    %v1273 = vsub.f32 %v1271, %v1272
    %v1274 = vand.u32 %v1273, 4294901760
    %1275 = vmatpush.msra.mxu0 %v1274
    %v1276 = vand.u32 %v44, 4294901760
    %v1277 = vsub.f32 %v44, %v1276
    %v1278 = vand.u32 %v1277, 4294901760
    %v1279 = vsub.f32 %v1277, %v1278
    %v1280 = vand.u32 %v1279, 4294901760
    %1281 = vmatpush.msra.mxu0 %v1280
    %v1282 = vand.u32 %v43, 4294901760
    %v1283 = vsub.f32 %v43, %v1282
    %v1284 = vand.u32 %v1283, 4294901760
    %v1285 = vsub.f32 %v1283, %v1284
    %v1286 = vand.u32 %v1285, 4294901760
    %1287 = vmatpush.msra.mxu0 %v1286
    %v1288 = vand.u32 %v42, 4294901760
    %v1289 = vsub.f32 %v42, %v1288
    %v1290 = vand.u32 %v1289, 4294901760
    %v1291 = vsub.f32 %v1289, %v1290
    %v1292 = vand.u32 %v1291, 4294901760
    %1293 = vmatpush.msra.mxu0 %v1292
    %v1294 = vand.u32 %v41, 4294901760
    %v1295 = vsub.f32 %v41, %v1294
    %v1296 = vand.u32 %v1295, 4294901760
    %v1297 = vsub.f32 %v1295, %v1296
    %v1298 = vand.u32 %v1297, 4294901760
    %1299 = vmatpush.msra.mxu0 %v1298
    %v1300 = vand.u32 %v40, 4294901760
    %v1301 = vsub.f32 %v40, %v1300
    %v1302 = vand.u32 %v1301, 4294901760
    %v1303 = vsub.f32 %v1301, %v1302
    %v1304 = vand.u32 %v1303, 4294901760
    %1305 = vmatpush.msra.mxu0 %v1304
    %v1306 = vand.u32 %v39, 4294901760
    %v1307 = vsub.f32 %v39, %v1306
    %v1308 = vand.u32 %v1307, 4294901760
    %v1309 = vsub.f32 %v1307, %v1308
    %v1310 = vand.u32 %v1309, 4294901760
    %1311 = vmatpush.msra.mxu0 %v1310
    %v1312 = vand.u32 %v38, 4294901760
    %v1313 = vsub.f32 %v38, %v1312
    %v1314 = vand.u32 %v1313, 4294901760
    %v1315 = vsub.f32 %v1313, %v1314
    %v1316 = vand.u32 %v1315, 4294901760
    %1317 = vmatpush.msra.mxu0 %v1316
    %v1318 = vand.u32 %v37, 4294901760
    %v1319 = vsub.f32 %v37, %v1318
    %v1320 = vand.u32 %v1319, 4294901760
    %v1321 = vsub.f32 %v1319, %v1320
    %v1322 = vand.u32 %v1321, 4294901760
    %1323 = vmatpush.msra.mxu0 %v1322
    %v1324 = vand.u32 %v1170, 4294901760
    %1325 = vmatmul.f32.gmra.mxu0 %v1324
    %v1326 = vpop.f32.mrf.mxu0
    %v1327 = vadd.f32 %v1226, %v1326
    %1328 = vdwg.mxu0
    %v1329 = vand.u32 %v52, 4294901760
    %v1330 = vsub.f32 %v52, %v1329
    %1331 = vmatpush.msra.mxu0 %v1330
    %v1332 = vand.u32 %v51, 4294901760
    %v1333 = vsub.f32 %v51, %v1332
    %1334 = vmatpush.msra.mxu0 %v1333
    %v1335 = vand.u32 %v50, 4294901760
    %v1336 = vsub.f32 %v50, %v1335
    %1337 = vmatpush.msra.mxu0 %v1336
    %v1338 = vand.u32 %v49, 4294901760
    %v1339 = vsub.f32 %v49, %v1338
    %1340 = vmatpush.msra.mxu0 %v1339
    %v1341 = vand.u32 %v48, 4294901760
    %v1342 = vsub.f32 %v48, %v1341
    %1343 = vmatpush.msra.mxu0 %v1342
    %v1344 = vand.u32 %v47, 4294901760
    %v1345 = vsub.f32 %v47, %v1344
    %1346 = vmatpush.msra.mxu0 %v1345
    %v1347 = vand.u32 %v46, 4294901760
    %v1348 = vsub.f32 %v46, %v1347
    %1349 = vmatpush.msra.mxu0 %v1348
    %v1350 = vand.u32 %v45, 4294901760
    %v1351 = vsub.f32 %v45, %v1350
    %1352 = vmatpush.msra.mxu0 %v1351
    %v1353 = vand.u32 %v44, 4294901760
    %v1354 = vsub.f32 %v44, %v1353
    %1355 = vmatpush.msra.mxu0 %v1354
    %v1356 = vand.u32 %v43, 4294901760
    %v1357 = vsub.f32 %v43, %v1356
    %1358 = vmatpush.msra.mxu0 %v1357
    %v1359 = vand.u32 %v42, 4294901760
    %v1360 = vsub.f32 %v42, %v1359
    %1361 = vmatpush.msra.mxu0 %v1360
    %v1362 = vand.u32 %v41, 4294901760
    %v1363 = vsub.f32 %v41, %v1362
    %1364 = vmatpush.msra.mxu0 %v1363
    %v1365 = vand.u32 %v40, 4294901760
    %v1366 = vsub.f32 %v40, %v1365
    %1367 = vmatpush.msra.mxu0 %v1366
    %v1368 = vand.u32 %v39, 4294901760
    %v1369 = vsub.f32 %v39, %v1368
    %1370 = vmatpush.msra.mxu0 %v1369
    %v1371 = vand.u32 %v38, 4294901760
    %v1372 = vsub.f32 %v38, %v1371
    %1373 = vmatpush.msra.mxu0 %v1372
    %v1374 = vand.u32 %v37, 4294901760
    %v1375 = vsub.f32 %v37, %v1374
    %1376 = vmatpush.msra.mxu0 %v1375
    %v1377 = vand.u32 %v1170, 4294901760
    %v1378 = vsub.f32 %v1170, %v1377
    %1379 = vmatmul.f32.gmra.mxu0 %v1378
    %v1380 = vpop.f32.mrf.mxu0
    %v1381 = vadd.f32 %v1327, %v1380
    %1382 = vdwg.mxu0
    %v1383 = vand.u32 %v52, 4294901760
    %1384 = vmatpush.msra.mxu0 %v1383
    %v1385 = vand.u32 %v51, 4294901760
    %1386 = vmatpush.msra.mxu0 %v1385
    %v1387 = vand.u32 %v50, 4294901760
    %1388 = vmatpush.msra.mxu0 %v1387
    %v1389 = vand.u32 %v49, 4294901760
    %1390 = vmatpush.msra.mxu0 %v1389
    %v1391 = vand.u32 %v48, 4294901760
    %1392 = vmatpush.msra.mxu0 %v1391
    %v1393 = vand.u32 %v47, 4294901760
    %1394 = vmatpush.msra.mxu0 %v1393
    %v1395 = vand.u32 %v46, 4294901760
    %1396 = vmatpush.msra.mxu0 %v1395
    %v1397 = vand.u32 %v45, 4294901760
    %1398 = vmatpush.msra.mxu0 %v1397
    %v1399 = vand.u32 %v44, 4294901760
    %1400 = vmatpush.msra.mxu0 %v1399
    %v1401 = vand.u32 %v43, 4294901760
    %1402 = vmatpush.msra.mxu0 %v1401
    %v1403 = vand.u32 %v42, 4294901760
    %1404 = vmatpush.msra.mxu0 %v1403
    %v1405 = vand.u32 %v41, 4294901760
    %1406 = vmatpush.msra.mxu0 %v1405
    %v1407 = vand.u32 %v40, 4294901760
    %1408 = vmatpush.msra.mxu0 %v1407
    %v1409 = vand.u32 %v39, 4294901760
    %1410 = vmatpush.msra.mxu0 %v1409
    %v1411 = vand.u32 %v38, 4294901760
    %1412 = vmatpush.msra.mxu0 %v1411
    %v1413 = vand.u32 %v37, 4294901760
    %1414 = vmatpush.msra.mxu0 %v1413
    %v1415 = vand.u32 %v1170, 4294901760
    %v1416 = vsub.f32 %v1170, %v1415
    %v1417 = vand.u32 %v1416, 4294901760
    %1418 = vmatmul.f32.gmra.mxu0 %v1417
    %v1419 = vpop.f32.mrf.mxu0
    %v1420 = vadd.f32 %v1381, %v1419
    %1421 = vdwg.mxu0
    %v1422 = vand.u32 %v52, 4294901760
    %v1423 = vsub.f32 %v52, %v1422
    %v1424 = vand.u32 %v1423, 4294901760
    %1425 = vmatpush.msra.mxu0 %v1424
    %v1426 = vand.u32 %v51, 4294901760
    %v1427 = vsub.f32 %v51, %v1426
    %v1428 = vand.u32 %v1427, 4294901760
    %1429 = vmatpush.msra.mxu0 %v1428
    %v1430 = vand.u32 %v50, 4294901760
    %v1431 = vsub.f32 %v50, %v1430
    %v1432 = vand.u32 %v1431, 4294901760
    %1433 = vmatpush.msra.mxu0 %v1432
    %v1434 = vand.u32 %v49, 4294901760
    %v1435 = vsub.f32 %v49, %v1434
    %v1436 = vand.u32 %v1435, 4294901760
    %1437 = vmatpush.msra.mxu0 %v1436
    %v1438 = vand.u32 %v48, 4294901760
    %v1439 = vsub.f32 %v48, %v1438
    %v1440 = vand.u32 %v1439, 4294901760
    %1441 = vmatpush.msra.mxu0 %v1440
    %v1442 = vand.u32 %v47, 4294901760
    %v1443 = vsub.f32 %v47, %v1442
    %v1444 = vand.u32 %v1443, 4294901760
    %1445 = vmatpush.msra.mxu0 %v1444
    %v1446 = vand.u32 %v46, 4294901760
    %v1447 = vsub.f32 %v46, %v1446
    %v1448 = vand.u32 %v1447, 4294901760
    %1449 = vmatpush.msra.mxu0 %v1448
    %v1450 = vand.u32 %v45, 4294901760
    %v1451 = vsub.f32 %v45, %v1450
    %v1452 = vand.u32 %v1451, 4294901760
    %1453 = vmatpush.msra.mxu0 %v1452
    %v1454 = vand.u32 %v44, 4294901760
    %v1455 = vsub.f32 %v44, %v1454
    %v1456 = vand.u32 %v1455, 4294901760
    %1457 = vmatpush.msra.mxu0 %v1456
    %v1458 = vand.u32 %v43, 4294901760
    %v1459 = vsub.f32 %v43, %v1458
    %v1460 = vand.u32 %v1459, 4294901760
    %1461 = vmatpush.msra.mxu0 %v1460
    %v1462 = vand.u32 %v42, 4294901760
    %v1463 = vsub.f32 %v42, %v1462
    %v1464 = vand.u32 %v1463, 4294901760
    %1465 = vmatpush.msra.mxu0 %v1464
    %v1466 = vand.u32 %v41, 4294901760
    %v1467 = vsub.f32 %v41, %v1466
    %v1468 = vand.u32 %v1467, 4294901760
    %1469 = vmatpush.msra.mxu0 %v1468
    %v1470 = vand.u32 %v40, 4294901760
    %v1471 = vsub.f32 %v40, %v1470
    %v1472 = vand.u32 %v1471, 4294901760
    %1473 = vmatpush.msra.mxu0 %v1472
    %v1474 = vand.u32 %v39, 4294901760
    %v1475 = vsub.f32 %v39, %v1474
    %v1476 = vand.u32 %v1475, 4294901760
    %1477 = vmatpush.msra.mxu0 %v1476
    %v1478 = vand.u32 %v38, 4294901760
    %v1479 = vsub.f32 %v38, %v1478
    %v1480 = vand.u32 %v1479, 4294901760
    %1481 = vmatpush.msra.mxu0 %v1480
    %v1482 = vand.u32 %v37, 4294901760
    %v1483 = vsub.f32 %v37, %v1482
    %v1484 = vand.u32 %v1483, 4294901760
    %1485 = vmatpush.msra.mxu0 %v1484
    %v1486 = vand.u32 %v1170, 4294901760
    %1487 = vmatmul.f32.gmra.mxu0 %v1486
    %v1488 = vpop.f32.mrf.mxu0
    %v1489 = vadd.f32 %v1420, %v1488
    %1490 = vdwg.mxu0
    %v1491 = vand.u32 %v52, 4294901760
    %1492 = vmatpush.msra.mxu0 %v1491
    %v1493 = vand.u32 %v51, 4294901760
    %1494 = vmatpush.msra.mxu0 %v1493
    %v1495 = vand.u32 %v50, 4294901760
    %1496 = vmatpush.msra.mxu0 %v1495
    %v1497 = vand.u32 %v49, 4294901760
    %1498 = vmatpush.msra.mxu0 %v1497
    %v1499 = vand.u32 %v48, 4294901760
    %1500 = vmatpush.msra.mxu0 %v1499
    %v1501 = vand.u32 %v47, 4294901760
    %1502 = vmatpush.msra.mxu0 %v1501
    %v1503 = vand.u32 %v46, 4294901760
    %1504 = vmatpush.msra.mxu0 %v1503
    %v1505 = vand.u32 %v45, 4294901760
    %1506 = vmatpush.msra.mxu0 %v1505
    %v1507 = vand.u32 %v44, 4294901760
    %1508 = vmatpush.msra.mxu0 %v1507
    %v1509 = vand.u32 %v43, 4294901760
    %1510 = vmatpush.msra.mxu0 %v1509
    %v1511 = vand.u32 %v42, 4294901760
    %1512 = vmatpush.msra.mxu0 %v1511
    %v1513 = vand.u32 %v41, 4294901760
    %1514 = vmatpush.msra.mxu0 %v1513
    %v1515 = vand.u32 %v40, 4294901760
    %1516 = vmatpush.msra.mxu0 %v1515
    %v1517 = vand.u32 %v39, 4294901760
    %1518 = vmatpush.msra.mxu0 %v1517
    %v1519 = vand.u32 %v38, 4294901760
    %1520 = vmatpush.msra.mxu0 %v1519
    %v1521 = vand.u32 %v37, 4294901760
    %1522 = vmatpush.msra.mxu0 %v1521
    %v1523 = vand.u32 %v1170, 4294901760
    %1524 = vmatmul.f32.gmra.mxu0 %v1523
    %v1525 = vpop.f32.mrf.mxu0
    %v1526 = vadd.f32 %v1489, %v1525
    %1527 = vdwg.mxu0
    %v1528 = vadd.f32 %v1186, %v1526
    %v1529 = vtanh.pop %v1528
    %v1530 = vmul.f32 %v1528, 0.5
    %v1531 = vtanh.pop %v1530
    %v1532 = vmul.f32 %v1531, 0.5
    %v1533 = vadd.f32 %v1532, 0.5
    %v1534 = vsel %vm60, %v1529, %v1533
    %1535 = vrot.lane.b32.xlu0 %v1534, 112
    %v1536 = vpop.permute.xlu0 %1535
    %1537 = vrot.lane.b32.xlu0 %v1534, 96
    %v1538 = vpop.permute.xlu0 %1537
    %1539 = vrot.lane.b32.xlu0 %v1534, 80
    %v1540 = vpop.permute.xlu0 %1539
    %v1541 = vmul.f32 %v1536, %v1168
    %v1542 = vmul.f32 %v1534, %v1538
    %v1543 = vadd.f32 %v1541, %v1542
    %v1544 = vtanh.pop %v1543
    %v1545 = vmul.f32 %v1540, %v1544
    %vm1546 = vcmp.eq.s32.totalorder %v55, 3
    %v1547 = vsel %vm1546, 1, 0
    %1548 = vset.pattern.permute.xlu0 0
    %1549 = vperm.xlu0 %1548, %v1547
    %v1550 = vpop.permute.xlu0 %1549
    %vm1551 = vcmp.eq.s32.totalorder %v1550, 1
    %v1552 = vsel %vm1551, %v1545, %v1177
    %s1553 = scalar_lea.vmem %s0, 32
    %v1554 = vld [vmem:[%s1553] sm:$0xff]
    %1556 = vset.pattern.permute.xlu0 0
    %1557 = vperm.xlu0 %1556, %v1554
    %v1558 = vpop.permute.xlu0 %1557
    %v1560 = vmul.f32 %v1558, %v68
    %v1561 = vadd.f32 %v1560, %v72
    %v1562 = vand.u32 %v52, 4294901760
    %1563 = vmatpush.msra.mxu0 %v1562
    %v1564 = vand.u32 %v51, 4294901760
    %1565 = vmatpush.msra.mxu0 %v1564
    %v1566 = vand.u32 %v50, 4294901760
    %1567 = vmatpush.msra.mxu0 %v1566
    %v1568 = vand.u32 %v49, 4294901760
    %1569 = vmatpush.msra.mxu0 %v1568
    %v1570 = vand.u32 %v48, 4294901760
    %1571 = vmatpush.msra.mxu0 %v1570
    %v1572 = vand.u32 %v47, 4294901760
    %1573 = vmatpush.msra.mxu0 %v1572
    %v1574 = vand.u32 %v46, 4294901760
    %1575 = vmatpush.msra.mxu0 %v1574
    %v1576 = vand.u32 %v45, 4294901760
    %1577 = vmatpush.msra.mxu0 %v1576
    %v1578 = vand.u32 %v44, 4294901760
    %1579 = vmatpush.msra.mxu0 %v1578
    %v1580 = vand.u32 %v43, 4294901760
    %1581 = vmatpush.msra.mxu0 %v1580
    %v1582 = vand.u32 %v42, 4294901760
    %1583 = vmatpush.msra.mxu0 %v1582
    %v1584 = vand.u32 %v41, 4294901760
    %1585 = vmatpush.msra.mxu0 %v1584
    %v1586 = vand.u32 %v40, 4294901760
    %1587 = vmatpush.msra.mxu0 %v1586
    %v1588 = vand.u32 %v39, 4294901760
    %1589 = vmatpush.msra.mxu0 %v1588
    %v1590 = vand.u32 %v38, 4294901760
    %1591 = vmatpush.msra.mxu0 %v1590
    %v1592 = vand.u32 %v37, 4294901760
    %1593 = vmatpush.msra.mxu0 %v1592
    %v1594 = vand.u32 %v1545, 4294901760
    %v1595 = vsub.f32 %v1545, %v1594
    %v1596 = vand.u32 %v1595, 4294901760
    %v1597 = vsub.f32 %v1595, %v1596
    %v1598 = vand.u32 %v1597, 4294901760
    %1599 = vmatmul.f32.gmra.mxu0 %v1598
    %v1600 = vpop.f32.mrf.mxu0
    %v1601 = vadd.f32 0.0, %v1600
    %1602 = vdwg.mxu0
    %v1603 = vand.u32 %v52, 4294901760
    %v1604 = vsub.f32 %v52, %v1603
    %v1605 = vand.u32 %v1604, 4294901760
    %v1606 = vsub.f32 %v1604, %v1605
    %v1607 = vand.u32 %v1606, 4294901760
    %1608 = vmatpush.msra.mxu0 %v1607
    %v1609 = vand.u32 %v51, 4294901760
    %v1610 = vsub.f32 %v51, %v1609
    %v1611 = vand.u32 %v1610, 4294901760
    %v1612 = vsub.f32 %v1610, %v1611
    %v1613 = vand.u32 %v1612, 4294901760
    %1614 = vmatpush.msra.mxu0 %v1613
    %v1615 = vand.u32 %v50, 4294901760
    %v1616 = vsub.f32 %v50, %v1615
    %v1617 = vand.u32 %v1616, 4294901760
    %v1618 = vsub.f32 %v1616, %v1617
    %v1619 = vand.u32 %v1618, 4294901760
    %1620 = vmatpush.msra.mxu0 %v1619
    %v1621 = vand.u32 %v49, 4294901760
    %v1622 = vsub.f32 %v49, %v1621
    %v1623 = vand.u32 %v1622, 4294901760
    %v1624 = vsub.f32 %v1622, %v1623
    %v1625 = vand.u32 %v1624, 4294901760
    %1626 = vmatpush.msra.mxu0 %v1625
    %v1627 = vand.u32 %v48, 4294901760
    %v1628 = vsub.f32 %v48, %v1627
    %v1629 = vand.u32 %v1628, 4294901760
    %v1630 = vsub.f32 %v1628, %v1629
    %v1631 = vand.u32 %v1630, 4294901760
    %1632 = vmatpush.msra.mxu0 %v1631
    %v1633 = vand.u32 %v47, 4294901760
    %v1634 = vsub.f32 %v47, %v1633
    %v1635 = vand.u32 %v1634, 4294901760
    %v1636 = vsub.f32 %v1634, %v1635
    %v1637 = vand.u32 %v1636, 4294901760
    %1638 = vmatpush.msra.mxu0 %v1637
    %v1639 = vand.u32 %v46, 4294901760
    %v1640 = vsub.f32 %v46, %v1639
    %v1641 = vand.u32 %v1640, 4294901760
    %v1642 = vsub.f32 %v1640, %v1641
    %v1643 = vand.u32 %v1642, 4294901760
    %1644 = vmatpush.msra.mxu0 %v1643
    %v1645 = vand.u32 %v45, 4294901760
    %v1646 = vsub.f32 %v45, %v1645
    %v1647 = vand.u32 %v1646, 4294901760
    %v1648 = vsub.f32 %v1646, %v1647
    %v1649 = vand.u32 %v1648, 4294901760
    %1650 = vmatpush.msra.mxu0 %v1649
    %v1651 = vand.u32 %v44, 4294901760
    %v1652 = vsub.f32 %v44, %v1651
    %v1653 = vand.u32 %v1652, 4294901760
    %v1654 = vsub.f32 %v1652, %v1653
    %v1655 = vand.u32 %v1654, 4294901760
    %1656 = vmatpush.msra.mxu0 %v1655
    %v1657 = vand.u32 %v43, 4294901760
    %v1658 = vsub.f32 %v43, %v1657
    %v1659 = vand.u32 %v1658, 4294901760
    %v1660 = vsub.f32 %v1658, %v1659
    %v1661 = vand.u32 %v1660, 4294901760
    %1662 = vmatpush.msra.mxu0 %v1661
    %v1663 = vand.u32 %v42, 4294901760
    %v1664 = vsub.f32 %v42, %v1663
    %v1665 = vand.u32 %v1664, 4294901760
    %v1666 = vsub.f32 %v1664, %v1665
    %v1667 = vand.u32 %v1666, 4294901760
    %1668 = vmatpush.msra.mxu0 %v1667
    %v1669 = vand.u32 %v41, 4294901760
    %v1670 = vsub.f32 %v41, %v1669
    %v1671 = vand.u32 %v1670, 4294901760
    %v1672 = vsub.f32 %v1670, %v1671
    %v1673 = vand.u32 %v1672, 4294901760
    %1674 = vmatpush.msra.mxu0 %v1673
    %v1675 = vand.u32 %v40, 4294901760
    %v1676 = vsub.f32 %v40, %v1675
    %v1677 = vand.u32 %v1676, 4294901760
    %v1678 = vsub.f32 %v1676, %v1677
    %v1679 = vand.u32 %v1678, 4294901760
    %1680 = vmatpush.msra.mxu0 %v1679
    %v1681 = vand.u32 %v39, 4294901760
    %v1682 = vsub.f32 %v39, %v1681
    %v1683 = vand.u32 %v1682, 4294901760
    %v1684 = vsub.f32 %v1682, %v1683
    %v1685 = vand.u32 %v1684, 4294901760
    %1686 = vmatpush.msra.mxu0 %v1685
    %v1687 = vand.u32 %v38, 4294901760
    %v1688 = vsub.f32 %v38, %v1687
    %v1689 = vand.u32 %v1688, 4294901760
    %v1690 = vsub.f32 %v1688, %v1689
    %v1691 = vand.u32 %v1690, 4294901760
    %1692 = vmatpush.msra.mxu0 %v1691
    %v1693 = vand.u32 %v37, 4294901760
    %v1694 = vsub.f32 %v37, %v1693
    %v1695 = vand.u32 %v1694, 4294901760
    %v1696 = vsub.f32 %v1694, %v1695
    %v1697 = vand.u32 %v1696, 4294901760
    %1698 = vmatpush.msra.mxu0 %v1697
    %v1699 = vand.u32 %v1545, 4294901760
    %1700 = vmatmul.f32.gmra.mxu0 %v1699
    %v1701 = vpop.f32.mrf.mxu0
    %v1702 = vadd.f32 %v1601, %v1701
    %1703 = vdwg.mxu0
    %v1704 = vand.u32 %v52, 4294901760
    %v1705 = vsub.f32 %v52, %v1704
    %1706 = vmatpush.msra.mxu0 %v1705
    %v1707 = vand.u32 %v51, 4294901760
    %v1708 = vsub.f32 %v51, %v1707
    %1709 = vmatpush.msra.mxu0 %v1708
    %v1710 = vand.u32 %v50, 4294901760
    %v1711 = vsub.f32 %v50, %v1710
    %1712 = vmatpush.msra.mxu0 %v1711
    %v1713 = vand.u32 %v49, 4294901760
    %v1714 = vsub.f32 %v49, %v1713
    %1715 = vmatpush.msra.mxu0 %v1714
    %v1716 = vand.u32 %v48, 4294901760
    %v1717 = vsub.f32 %v48, %v1716
    %1718 = vmatpush.msra.mxu0 %v1717
    %v1719 = vand.u32 %v47, 4294901760
    %v1720 = vsub.f32 %v47, %v1719
    %1721 = vmatpush.msra.mxu0 %v1720
    %v1722 = vand.u32 %v46, 4294901760
    %v1723 = vsub.f32 %v46, %v1722
    %1724 = vmatpush.msra.mxu0 %v1723
    %v1725 = vand.u32 %v45, 4294901760
    %v1726 = vsub.f32 %v45, %v1725
    %1727 = vmatpush.msra.mxu0 %v1726
    %v1728 = vand.u32 %v44, 4294901760
    %v1729 = vsub.f32 %v44, %v1728
    %1730 = vmatpush.msra.mxu0 %v1729
    %v1731 = vand.u32 %v43, 4294901760
    %v1732 = vsub.f32 %v43, %v1731
    %1733 = vmatpush.msra.mxu0 %v1732
    %v1734 = vand.u32 %v42, 4294901760
    %v1735 = vsub.f32 %v42, %v1734
    %1736 = vmatpush.msra.mxu0 %v1735
    %v1737 = vand.u32 %v41, 4294901760
    %v1738 = vsub.f32 %v41, %v1737
    %1739 = vmatpush.msra.mxu0 %v1738
    %v1740 = vand.u32 %v40, 4294901760
    %v1741 = vsub.f32 %v40, %v1740
    %1742 = vmatpush.msra.mxu0 %v1741
    %v1743 = vand.u32 %v39, 4294901760
    %v1744 = vsub.f32 %v39, %v1743
    %1745 = vmatpush.msra.mxu0 %v1744
    %v1746 = vand.u32 %v38, 4294901760
    %v1747 = vsub.f32 %v38, %v1746
    %1748 = vmatpush.msra.mxu0 %v1747
    %v1749 = vand.u32 %v37, 4294901760
    %v1750 = vsub.f32 %v37, %v1749
    %1751 = vmatpush.msra.mxu0 %v1750
    %v1752 = vand.u32 %v1545, 4294901760
    %v1753 = vsub.f32 %v1545, %v1752
    %1754 = vmatmul.f32.gmra.mxu0 %v1753
    %v1755 = vpop.f32.mrf.mxu0
    %v1756 = vadd.f32 %v1702, %v1755
    %1757 = vdwg.mxu0
    %v1758 = vand.u32 %v52, 4294901760
    %1759 = vmatpush.msra.mxu0 %v1758
    %v1760 = vand.u32 %v51, 4294901760
    %1761 = vmatpush.msra.mxu0 %v1760
    %v1762 = vand.u32 %v50, 4294901760
    %1763 = vmatpush.msra.mxu0 %v1762
    %v1764 = vand.u32 %v49, 4294901760
    %1765 = vmatpush.msra.mxu0 %v1764
    %v1766 = vand.u32 %v48, 4294901760
    %1767 = vmatpush.msra.mxu0 %v1766
    %v1768 = vand.u32 %v47, 4294901760
    %1769 = vmatpush.msra.mxu0 %v1768
    %v1770 = vand.u32 %v46, 4294901760
    %1771 = vmatpush.msra.mxu0 %v1770
    %v1772 = vand.u32 %v45, 4294901760
    %1773 = vmatpush.msra.mxu0 %v1772
    %v1774 = vand.u32 %v44, 4294901760
    %1775 = vmatpush.msra.mxu0 %v1774
    %v1776 = vand.u32 %v43, 4294901760
    %1777 = vmatpush.msra.mxu0 %v1776
    %v1778 = vand.u32 %v42, 4294901760
    %1779 = vmatpush.msra.mxu0 %v1778
    %v1780 = vand.u32 %v41, 4294901760
    %1781 = vmatpush.msra.mxu0 %v1780
    %v1782 = vand.u32 %v40, 4294901760
    %1783 = vmatpush.msra.mxu0 %v1782
    %v1784 = vand.u32 %v39, 4294901760
    %1785 = vmatpush.msra.mxu0 %v1784
    %v1786 = vand.u32 %v38, 4294901760
    %1787 = vmatpush.msra.mxu0 %v1786
    %v1788 = vand.u32 %v37, 4294901760
    %1789 = vmatpush.msra.mxu0 %v1788
    %v1790 = vand.u32 %v1545, 4294901760
    %v1791 = vsub.f32 %v1545, %v1790
    %v1792 = vand.u32 %v1791, 4294901760
    %1793 = vmatmul.f32.gmra.mxu0 %v1792
    %v1794 = vpop.f32.mrf.mxu0
    %v1795 = vadd.f32 %v1756, %v1794
    %1796 = vdwg.mxu0
    %v1797 = vand.u32 %v52, 4294901760
    %v1798 = vsub.f32 %v52, %v1797
    %v1799 = vand.u32 %v1798, 4294901760
    %1800 = vmatpush.msra.mxu0 %v1799
    %v1801 = vand.u32 %v51, 4294901760
    %v1802 = vsub.f32 %v51, %v1801
    %v1803 = vand.u32 %v1802, 4294901760
    %1804 = vmatpush.msra.mxu0 %v1803
    %v1805 = vand.u32 %v50, 4294901760
    %v1806 = vsub.f32 %v50, %v1805
    %v1807 = vand.u32 %v1806, 4294901760
    %1808 = vmatpush.msra.mxu0 %v1807
    %v1809 = vand.u32 %v49, 4294901760
    %v1810 = vsub.f32 %v49, %v1809
    %v1811 = vand.u32 %v1810, 4294901760
    %1812 = vmatpush.msra.mxu0 %v1811
    %v1813 = vand.u32 %v48, 4294901760
    %v1814 = vsub.f32 %v48, %v1813
    %v1815 = vand.u32 %v1814, 4294901760
    %1816 = vmatpush.msra.mxu0 %v1815
    %v1817 = vand.u32 %v47, 4294901760
    %v1818 = vsub.f32 %v47, %v1817
    %v1819 = vand.u32 %v1818, 4294901760
    %1820 = vmatpush.msra.mxu0 %v1819
    %v1821 = vand.u32 %v46, 4294901760
    %v1822 = vsub.f32 %v46, %v1821
    %v1823 = vand.u32 %v1822, 4294901760
    %1824 = vmatpush.msra.mxu0 %v1823
    %v1825 = vand.u32 %v45, 4294901760
    %v1826 = vsub.f32 %v45, %v1825
    %v1827 = vand.u32 %v1826, 4294901760
    %1828 = vmatpush.msra.mxu0 %v1827
    %v1829 = vand.u32 %v44, 4294901760
    %v1830 = vsub.f32 %v44, %v1829
    %v1831 = vand.u32 %v1830, 4294901760
    %1832 = vmatpush.msra.mxu0 %v1831
    %v1833 = vand.u32 %v43, 4294901760
    %v1834 = vsub.f32 %v43, %v1833
    %v1835 = vand.u32 %v1834, 4294901760
    %1836 = vmatpush.msra.mxu0 %v1835
    %v1837 = vand.u32 %v42, 4294901760
    %v1838 = vsub.f32 %v42, %v1837
    %v1839 = vand.u32 %v1838, 4294901760
    %1840 = vmatpush.msra.mxu0 %v1839
    %v1841 = vand.u32 %v41, 4294901760
    %v1842 = vsub.f32 %v41, %v1841
    %v1843 = vand.u32 %v1842, 4294901760
    %1844 = vmatpush.msra.mxu0 %v1843
    %v1845 = vand.u32 %v40, 4294901760
    %v1846 = vsub.f32 %v40, %v1845
    %v1847 = vand.u32 %v1846, 4294901760
    %1848 = vmatpush.msra.mxu0 %v1847
    %v1849 = vand.u32 %v39, 4294901760
    %v1850 = vsub.f32 %v39, %v1849
    %v1851 = vand.u32 %v1850, 4294901760
    %1852 = vmatpush.msra.mxu0 %v1851
    %v1853 = vand.u32 %v38, 4294901760
    %v1854 = vsub.f32 %v38, %v1853
    %v1855 = vand.u32 %v1854, 4294901760
    %1856 = vmatpush.msra.mxu0 %v1855
    %v1857 = vand.u32 %v37, 4294901760
    %v1858 = vsub.f32 %v37, %v1857
    %v1859 = vand.u32 %v1858, 4294901760
    %1860 = vmatpush.msra.mxu0 %v1859
    %v1861 = vand.u32 %v1545, 4294901760
    %1862 = vmatmul.f32.gmra.mxu0 %v1861
    %v1863 = vpop.f32.mrf.mxu0
    %v1864 = vadd.f32 %v1795, %v1863
    %1865 = vdwg.mxu0
    %v1866 = vand.u32 %v52, 4294901760
    %1867 = vmatpush.msra.mxu0 %v1866
    %v1868 = vand.u32 %v51, 4294901760
    %1869 = vmatpush.msra.mxu0 %v1868
    %v1870 = vand.u32 %v50, 4294901760
    %1871 = vmatpush.msra.mxu0 %v1870
    %v1872 = vand.u32 %v49, 4294901760
    %1873 = vmatpush.msra.mxu0 %v1872
    %v1874 = vand.u32 %v48, 4294901760
    %1875 = vmatpush.msra.mxu0 %v1874
    %v1876 = vand.u32 %v47, 4294901760
    %1877 = vmatpush.msra.mxu0 %v1876
    %v1878 = vand.u32 %v46, 4294901760
    %1879 = vmatpush.msra.mxu0 %v1878
    %v1880 = vand.u32 %v45, 4294901760
    %1881 = vmatpush.msra.mxu0 %v1880
    %v1882 = vand.u32 %v44, 4294901760
    %1883 = vmatpush.msra.mxu0 %v1882
    %v1884 = vand.u32 %v43, 4294901760
    %1885 = vmatpush.msra.mxu0 %v1884
    %v1886 = vand.u32 %v42, 4294901760
    %1887 = vmatpush.msra.mxu0 %v1886
    %v1888 = vand.u32 %v41, 4294901760
    %1889 = vmatpush.msra.mxu0 %v1888
    %v1890 = vand.u32 %v40, 4294901760
    %1891 = vmatpush.msra.mxu0 %v1890
    %v1892 = vand.u32 %v39, 4294901760
    %1893 = vmatpush.msra.mxu0 %v1892
    %v1894 = vand.u32 %v38, 4294901760
    %1895 = vmatpush.msra.mxu0 %v1894
    %v1896 = vand.u32 %v37, 4294901760
    %1897 = vmatpush.msra.mxu0 %v1896
    %v1898 = vand.u32 %v1545, 4294901760
    %1899 = vmatmul.f32.gmra.mxu0 %v1898
    %v1900 = vpop.f32.mrf.mxu0
    %v1901 = vadd.f32 %v1864, %v1900
    %1902 = vdwg.mxu0
    %v1903 = vadd.f32 %v1561, %v1901
    %v1904 = vtanh.pop %v1903
    %v1905 = vmul.f32 %v1903, 0.5
    %v1906 = vtanh.pop %v1905
    %v1907 = vmul.f32 %v1906, 0.5
    %v1908 = vadd.f32 %v1907, 0.5
    %v1909 = vsel %vm60, %v1904, %v1908
    %1910 = vrot.lane.b32.xlu0 %v1909, 112
    %v1911 = vpop.permute.xlu0 %1910
    %1912 = vrot.lane.b32.xlu0 %v1909, 96
    %v1913 = vpop.permute.xlu0 %1912
    %1914 = vrot.lane.b32.xlu0 %v1909, 80
    %v1915 = vpop.permute.xlu0 %1914
    %v1916 = vmul.f32 %v1911, %v1543
    %v1917 = vmul.f32 %v1909, %v1913
    %v1918 = vadd.f32 %v1916, %v1917
    %v1919 = vtanh.pop %v1918
    %v1920 = vmul.f32 %v1915, %v1919
    %vm1921 = vcmp.eq.s32.totalorder %v55, 4
    %v1922 = vsel %vm1921, 1, 0
    %1923 = vset.pattern.permute.xlu0 0
    %1924 = vperm.xlu0 %1923, %v1922
    %v1925 = vpop.permute.xlu0 %1924
    %vm1926 = vcmp.eq.s32.totalorder %v1925, 1
    %v1927 = vsel %vm1926, %v1920, %v1552
    %s1928 = scalar_lea.vmem %s0, 40
    %v1929 = vld [vmem:[%s1928] sm:$0xff]
    %1931 = vset.pattern.permute.xlu0 0
    %1932 = vperm.xlu0 %1931, %v1929
    %v1933 = vpop.permute.xlu0 %1932
    %v1935 = vmul.f32 %v1933, %v68
    %v1936 = vadd.f32 %v1935, %v72
    %v1937 = vand.u32 %v52, 4294901760
    %1938 = vmatpush.msra.mxu0 %v1937
    %v1939 = vand.u32 %v51, 4294901760
    %1940 = vmatpush.msra.mxu0 %v1939
    %v1941 = vand.u32 %v50, 4294901760
    %1942 = vmatpush.msra.mxu0 %v1941
    %v1943 = vand.u32 %v49, 4294901760
    %1944 = vmatpush.msra.mxu0 %v1943
    %v1945 = vand.u32 %v48, 4294901760
    %1946 = vmatpush.msra.mxu0 %v1945
    %v1947 = vand.u32 %v47, 4294901760
    %1948 = vmatpush.msra.mxu0 %v1947
    %v1949 = vand.u32 %v46, 4294901760
    %1950 = vmatpush.msra.mxu0 %v1949
    %v1951 = vand.u32 %v45, 4294901760
    %1952 = vmatpush.msra.mxu0 %v1951
    %v1953 = vand.u32 %v44, 4294901760
    %1954 = vmatpush.msra.mxu0 %v1953
    %v1955 = vand.u32 %v43, 4294901760
    %1956 = vmatpush.msra.mxu0 %v1955
    %v1957 = vand.u32 %v42, 4294901760
    %1958 = vmatpush.msra.mxu0 %v1957
    %v1959 = vand.u32 %v41, 4294901760
    %1960 = vmatpush.msra.mxu0 %v1959
    %v1961 = vand.u32 %v40, 4294901760
    %1962 = vmatpush.msra.mxu0 %v1961
    %v1963 = vand.u32 %v39, 4294901760
    %1964 = vmatpush.msra.mxu0 %v1963
    %v1965 = vand.u32 %v38, 4294901760
    %1966 = vmatpush.msra.mxu0 %v1965
    %v1967 = vand.u32 %v37, 4294901760
    %1968 = vmatpush.msra.mxu0 %v1967
    %v1969 = vand.u32 %v1920, 4294901760
    %v1970 = vsub.f32 %v1920, %v1969
    %v1971 = vand.u32 %v1970, 4294901760
    %v1972 = vsub.f32 %v1970, %v1971
    %v1973 = vand.u32 %v1972, 4294901760
    %1974 = vmatmul.f32.gmra.mxu0 %v1973
    %v1975 = vpop.f32.mrf.mxu0
    %v1976 = vadd.f32 0.0, %v1975
    %1977 = vdwg.mxu0
    %v1978 = vand.u32 %v52, 4294901760
    %v1979 = vsub.f32 %v52, %v1978
    %v1980 = vand.u32 %v1979, 4294901760
    %v1981 = vsub.f32 %v1979, %v1980
    %v1982 = vand.u32 %v1981, 4294901760
    %1983 = vmatpush.msra.mxu0 %v1982
    %v1984 = vand.u32 %v51, 4294901760
    %v1985 = vsub.f32 %v51, %v1984
    %v1986 = vand.u32 %v1985, 4294901760
    %v1987 = vsub.f32 %v1985, %v1986
    %v1988 = vand.u32 %v1987, 4294901760
    %1989 = vmatpush.msra.mxu0 %v1988
    %v1990 = vand.u32 %v50, 4294901760
    %v1991 = vsub.f32 %v50, %v1990
    %v1992 = vand.u32 %v1991, 4294901760
    %v1993 = vsub.f32 %v1991, %v1992
    %v1994 = vand.u32 %v1993, 4294901760
    %1995 = vmatpush.msra.mxu0 %v1994
    %v1996 = vand.u32 %v49, 4294901760
    %v1997 = vsub.f32 %v49, %v1996
    %v1998 = vand.u32 %v1997, 4294901760
    %v1999 = vsub.f32 %v1997, %v1998
    %v2000 = vand.u32 %v1999, 4294901760
    %2001 = vmatpush.msra.mxu0 %v2000
    %v2002 = vand.u32 %v48, 4294901760
    %v2003 = vsub.f32 %v48, %v2002
    %v2004 = vand.u32 %v2003, 4294901760
    %v2005 = vsub.f32 %v2003, %v2004
    %v2006 = vand.u32 %v2005, 4294901760
    %2007 = vmatpush.msra.mxu0 %v2006
    %v2008 = vand.u32 %v47, 4294901760
    %v2009 = vsub.f32 %v47, %v2008
    %v2010 = vand.u32 %v2009, 4294901760
    %v2011 = vsub.f32 %v2009, %v2010
    %v2012 = vand.u32 %v2011, 4294901760
    %2013 = vmatpush.msra.mxu0 %v2012
    %v2014 = vand.u32 %v46, 4294901760
    %v2015 = vsub.f32 %v46, %v2014
    %v2016 = vand.u32 %v2015, 4294901760
    %v2017 = vsub.f32 %v2015, %v2016
    %v2018 = vand.u32 %v2017, 4294901760
    %2019 = vmatpush.msra.mxu0 %v2018
    %v2020 = vand.u32 %v45, 4294901760
    %v2021 = vsub.f32 %v45, %v2020
    %v2022 = vand.u32 %v2021, 4294901760
    %v2023 = vsub.f32 %v2021, %v2022
    %v2024 = vand.u32 %v2023, 4294901760
    %2025 = vmatpush.msra.mxu0 %v2024
    %v2026 = vand.u32 %v44, 4294901760
    %v2027 = vsub.f32 %v44, %v2026
    %v2028 = vand.u32 %v2027, 4294901760
    %v2029 = vsub.f32 %v2027, %v2028
    %v2030 = vand.u32 %v2029, 4294901760
    %2031 = vmatpush.msra.mxu0 %v2030
    %v2032 = vand.u32 %v43, 4294901760
    %v2033 = vsub.f32 %v43, %v2032
    %v2034 = vand.u32 %v2033, 4294901760
    %v2035 = vsub.f32 %v2033, %v2034
    %v2036 = vand.u32 %v2035, 4294901760
    %2037 = vmatpush.msra.mxu0 %v2036
    %v2038 = vand.u32 %v42, 4294901760
    %v2039 = vsub.f32 %v42, %v2038
    %v2040 = vand.u32 %v2039, 4294901760
    %v2041 = vsub.f32 %v2039, %v2040
    %v2042 = vand.u32 %v2041, 4294901760
    %2043 = vmatpush.msra.mxu0 %v2042
    %v2044 = vand.u32 %v41, 4294901760
    %v2045 = vsub.f32 %v41, %v2044
    %v2046 = vand.u32 %v2045, 4294901760
    %v2047 = vsub.f32 %v2045, %v2046
    %v2048 = vand.u32 %v2047, 4294901760
    %2049 = vmatpush.msra.mxu0 %v2048
    %v2050 = vand.u32 %v40, 4294901760
    %v2051 = vsub.f32 %v40, %v2050
    %v2052 = vand.u32 %v2051, 4294901760
    %v2053 = vsub.f32 %v2051, %v2052
    %v2054 = vand.u32 %v2053, 4294901760
    %2055 = vmatpush.msra.mxu0 %v2054
    %v2056 = vand.u32 %v39, 4294901760
    %v2057 = vsub.f32 %v39, %v2056
    %v2058 = vand.u32 %v2057, 4294901760
    %v2059 = vsub.f32 %v2057, %v2058
    %v2060 = vand.u32 %v2059, 4294901760
    %2061 = vmatpush.msra.mxu0 %v2060
    %v2062 = vand.u32 %v38, 4294901760
    %v2063 = vsub.f32 %v38, %v2062
    %v2064 = vand.u32 %v2063, 4294901760
    %v2065 = vsub.f32 %v2063, %v2064
    %v2066 = vand.u32 %v2065, 4294901760
    %2067 = vmatpush.msra.mxu0 %v2066
    %v2068 = vand.u32 %v37, 4294901760
    %v2069 = vsub.f32 %v37, %v2068
    %v2070 = vand.u32 %v2069, 4294901760
    %v2071 = vsub.f32 %v2069, %v2070
    %v2072 = vand.u32 %v2071, 4294901760
    %2073 = vmatpush.msra.mxu0 %v2072
    %v2074 = vand.u32 %v1920, 4294901760
    %2075 = vmatmul.f32.gmra.mxu0 %v2074
    %v2076 = vpop.f32.mrf.mxu0
    %v2077 = vadd.f32 %v1976, %v2076
    %2078 = vdwg.mxu0
    %v2079 = vand.u32 %v52, 4294901760
    %v2080 = vsub.f32 %v52, %v2079
    %2081 = vmatpush.msra.mxu0 %v2080
    %v2082 = vand.u32 %v51, 4294901760
    %v2083 = vsub.f32 %v51, %v2082
    %2084 = vmatpush.msra.mxu0 %v2083
    %v2085 = vand.u32 %v50, 4294901760
    %v2086 = vsub.f32 %v50, %v2085
    %2087 = vmatpush.msra.mxu0 %v2086
    %v2088 = vand.u32 %v49, 4294901760
    %v2089 = vsub.f32 %v49, %v2088
    %2090 = vmatpush.msra.mxu0 %v2089
    %v2091 = vand.u32 %v48, 4294901760
    %v2092 = vsub.f32 %v48, %v2091
    %2093 = vmatpush.msra.mxu0 %v2092
    %v2094 = vand.u32 %v47, 4294901760
    %v2095 = vsub.f32 %v47, %v2094
    %2096 = vmatpush.msra.mxu0 %v2095
    %v2097 = vand.u32 %v46, 4294901760
    %v2098 = vsub.f32 %v46, %v2097
    %2099 = vmatpush.msra.mxu0 %v2098
    %v2100 = vand.u32 %v45, 4294901760
    %v2101 = vsub.f32 %v45, %v2100
    %2102 = vmatpush.msra.mxu0 %v2101
    %v2103 = vand.u32 %v44, 4294901760
    %v2104 = vsub.f32 %v44, %v2103
    %2105 = vmatpush.msra.mxu0 %v2104
    %v2106 = vand.u32 %v43, 4294901760
    %v2107 = vsub.f32 %v43, %v2106
    %2108 = vmatpush.msra.mxu0 %v2107
    %v2109 = vand.u32 %v42, 4294901760
    %v2110 = vsub.f32 %v42, %v2109
    %2111 = vmatpush.msra.mxu0 %v2110
    %v2112 = vand.u32 %v41, 4294901760
    %v2113 = vsub.f32 %v41, %v2112
    %2114 = vmatpush.msra.mxu0 %v2113
    %v2115 = vand.u32 %v40, 4294901760
    %v2116 = vsub.f32 %v40, %v2115
    %2117 = vmatpush.msra.mxu0 %v2116
    %v2118 = vand.u32 %v39, 4294901760
    %v2119 = vsub.f32 %v39, %v2118
    %2120 = vmatpush.msra.mxu0 %v2119
    %v2121 = vand.u32 %v38, 4294901760
    %v2122 = vsub.f32 %v38, %v2121
    %2123 = vmatpush.msra.mxu0 %v2122
    %v2124 = vand.u32 %v37, 4294901760
    %v2125 = vsub.f32 %v37, %v2124
    %2126 = vmatpush.msra.mxu0 %v2125
    %v2127 = vand.u32 %v1920, 4294901760
    %v2128 = vsub.f32 %v1920, %v2127
    %2129 = vmatmul.f32.gmra.mxu0 %v2128
    %v2130 = vpop.f32.mrf.mxu0
    %v2131 = vadd.f32 %v2077, %v2130
    %2132 = vdwg.mxu0
    %v2133 = vand.u32 %v52, 4294901760
    %2134 = vmatpush.msra.mxu0 %v2133
    %v2135 = vand.u32 %v51, 4294901760
    %2136 = vmatpush.msra.mxu0 %v2135
    %v2137 = vand.u32 %v50, 4294901760
    %2138 = vmatpush.msra.mxu0 %v2137
    %v2139 = vand.u32 %v49, 4294901760
    %2140 = vmatpush.msra.mxu0 %v2139
    %v2141 = vand.u32 %v48, 4294901760
    %2142 = vmatpush.msra.mxu0 %v2141
    %v2143 = vand.u32 %v47, 4294901760
    %2144 = vmatpush.msra.mxu0 %v2143
    %v2145 = vand.u32 %v46, 4294901760
    %2146 = vmatpush.msra.mxu0 %v2145
    %v2147 = vand.u32 %v45, 4294901760
    %2148 = vmatpush.msra.mxu0 %v2147
    %v2149 = vand.u32 %v44, 4294901760
    %2150 = vmatpush.msra.mxu0 %v2149
    %v2151 = vand.u32 %v43, 4294901760
    %2152 = vmatpush.msra.mxu0 %v2151
    %v2153 = vand.u32 %v42, 4294901760
    %2154 = vmatpush.msra.mxu0 %v2153
    %v2155 = vand.u32 %v41, 4294901760
    %2156 = vmatpush.msra.mxu0 %v2155
    %v2157 = vand.u32 %v40, 4294901760
    %2158 = vmatpush.msra.mxu0 %v2157
    %v2159 = vand.u32 %v39, 4294901760
    %2160 = vmatpush.msra.mxu0 %v2159
    %v2161 = vand.u32 %v38, 4294901760
    %2162 = vmatpush.msra.mxu0 %v2161
    %v2163 = vand.u32 %v37, 4294901760
    %2164 = vmatpush.msra.mxu0 %v2163
    %v2165 = vand.u32 %v1920, 4294901760
    %v2166 = vsub.f32 %v1920, %v2165
    %v2167 = vand.u32 %v2166, 4294901760
    %2168 = vmatmul.f32.gmra.mxu0 %v2167
    %v2169 = vpop.f32.mrf.mxu0
    %v2170 = vadd.f32 %v2131, %v2169
    %2171 = vdwg.mxu0
    %v2172 = vand.u32 %v52, 4294901760
    %v2173 = vsub.f32 %v52, %v2172
    %v2174 = vand.u32 %v2173, 4294901760
    %2175 = vmatpush.msra.mxu0 %v2174
    %v2176 = vand.u32 %v51, 4294901760
    %v2177 = vsub.f32 %v51, %v2176
    %v2178 = vand.u32 %v2177, 4294901760
    %2179 = vmatpush.msra.mxu0 %v2178
    %v2180 = vand.u32 %v50, 4294901760
    %v2181 = vsub.f32 %v50, %v2180
    %v2182 = vand.u32 %v2181, 4294901760
    %2183 = vmatpush.msra.mxu0 %v2182
    %v2184 = vand.u32 %v49, 4294901760
    %v2185 = vsub.f32 %v49, %v2184
    %v2186 = vand.u32 %v2185, 4294901760
    %2187 = vmatpush.msra.mxu0 %v2186
    %v2188 = vand.u32 %v48, 4294901760
    %v2189 = vsub.f32 %v48, %v2188
    %v2190 = vand.u32 %v2189, 4294901760
    %2191 = vmatpush.msra.mxu0 %v2190
    %v2192 = vand.u32 %v47, 4294901760
    %v2193 = vsub.f32 %v47, %v2192
    %v2194 = vand.u32 %v2193, 4294901760
    %2195 = vmatpush.msra.mxu0 %v2194
    %v2196 = vand.u32 %v46, 4294901760
    %v2197 = vsub.f32 %v46, %v2196
    %v2198 = vand.u32 %v2197, 4294901760
    %2199 = vmatpush.msra.mxu0 %v2198
    %v2200 = vand.u32 %v45, 4294901760
    %v2201 = vsub.f32 %v45, %v2200
    %v2202 = vand.u32 %v2201, 4294901760
    %2203 = vmatpush.msra.mxu0 %v2202
    %v2204 = vand.u32 %v44, 4294901760
    %v2205 = vsub.f32 %v44, %v2204
    %v2206 = vand.u32 %v2205, 4294901760
    %2207 = vmatpush.msra.mxu0 %v2206
    %v2208 = vand.u32 %v43, 4294901760
    %v2209 = vsub.f32 %v43, %v2208
    %v2210 = vand.u32 %v2209, 4294901760
    %2211 = vmatpush.msra.mxu0 %v2210
    %v2212 = vand.u32 %v42, 4294901760
    %v2213 = vsub.f32 %v42, %v2212
    %v2214 = vand.u32 %v2213, 4294901760
    %2215 = vmatpush.msra.mxu0 %v2214
    %v2216 = vand.u32 %v41, 4294901760
    %v2217 = vsub.f32 %v41, %v2216
    %v2218 = vand.u32 %v2217, 4294901760
    %2219 = vmatpush.msra.mxu0 %v2218
    %v2220 = vand.u32 %v40, 4294901760
    %v2221 = vsub.f32 %v40, %v2220
    %v2222 = vand.u32 %v2221, 4294901760
    %2223 = vmatpush.msra.mxu0 %v2222
    %v2224 = vand.u32 %v39, 4294901760
    %v2225 = vsub.f32 %v39, %v2224
    %v2226 = vand.u32 %v2225, 4294901760
    %2227 = vmatpush.msra.mxu0 %v2226
    %v2228 = vand.u32 %v38, 4294901760
    %v2229 = vsub.f32 %v38, %v2228
    %v2230 = vand.u32 %v2229, 4294901760
    %2231 = vmatpush.msra.mxu0 %v2230
    %v2232 = vand.u32 %v37, 4294901760
    %v2233 = vsub.f32 %v37, %v2232
    %v2234 = vand.u32 %v2233, 4294901760
    %2235 = vmatpush.msra.mxu0 %v2234
    %v2236 = vand.u32 %v1920, 4294901760
    %2237 = vmatmul.f32.gmra.mxu0 %v2236
    %v2238 = vpop.f32.mrf.mxu0
    %v2239 = vadd.f32 %v2170, %v2238
    %2240 = vdwg.mxu0
    %v2241 = vand.u32 %v52, 4294901760
    %2242 = vmatpush.msra.mxu0 %v2241
    %v2243 = vand.u32 %v51, 4294901760
    %2244 = vmatpush.msra.mxu0 %v2243
    %v2245 = vand.u32 %v50, 4294901760
    %2246 = vmatpush.msra.mxu0 %v2245
    %v2247 = vand.u32 %v49, 4294901760
    %2248 = vmatpush.msra.mxu0 %v2247
    %v2249 = vand.u32 %v48, 4294901760
    %2250 = vmatpush.msra.mxu0 %v2249
    %v2251 = vand.u32 %v47, 4294901760
    %2252 = vmatpush.msra.mxu0 %v2251
    %v2253 = vand.u32 %v46, 4294901760
    %2254 = vmatpush.msra.mxu0 %v2253
    %v2255 = vand.u32 %v45, 4294901760
    %2256 = vmatpush.msra.mxu0 %v2255
    %v2257 = vand.u32 %v44, 4294901760
    %2258 = vmatpush.msra.mxu0 %v2257
    %v2259 = vand.u32 %v43, 4294901760
    %2260 = vmatpush.msra.mxu0 %v2259
    %v2261 = vand.u32 %v42, 4294901760
    %2262 = vmatpush.msra.mxu0 %v2261
    %v2263 = vand.u32 %v41, 4294901760
    %2264 = vmatpush.msra.mxu0 %v2263
    %v2265 = vand.u32 %v40, 4294901760
    %2266 = vmatpush.msra.mxu0 %v2265
    %v2267 = vand.u32 %v39, 4294901760
    %2268 = vmatpush.msra.mxu0 %v2267
    %v2269 = vand.u32 %v38, 4294901760
    %2270 = vmatpush.msra.mxu0 %v2269
    %v2271 = vand.u32 %v37, 4294901760
    %2272 = vmatpush.msra.mxu0 %v2271
    %v2273 = vand.u32 %v1920, 4294901760
    %2274 = vmatmul.f32.gmra.mxu0 %v2273
    %v2275 = vpop.f32.mrf.mxu0
    %v2276 = vadd.f32 %v2239, %v2275
    %2277 = vdwg.mxu0
    %v2278 = vadd.f32 %v1936, %v2276
    %v2279 = vtanh.pop %v2278
    %v2280 = vmul.f32 %v2278, 0.5
    %v2281 = vtanh.pop %v2280
    %v2282 = vmul.f32 %v2281, 0.5
    %v2283 = vadd.f32 %v2282, 0.5
    %v2284 = vsel %vm60, %v2279, %v2283
    %2285 = vrot.lane.b32.xlu0 %v2284, 112
    %v2286 = vpop.permute.xlu0 %2285
    %2287 = vrot.lane.b32.xlu0 %v2284, 96
    %v2288 = vpop.permute.xlu0 %2287
    %2289 = vrot.lane.b32.xlu0 %v2284, 80
    %v2290 = vpop.permute.xlu0 %2289
    %v2291 = vmul.f32 %v2286, %v1918
    %v2292 = vmul.f32 %v2284, %v2288
    %v2293 = vadd.f32 %v2291, %v2292
    %v2294 = vtanh.pop %v2293
    %v2295 = vmul.f32 %v2290, %v2294
    %vm2296 = vcmp.eq.s32.totalorder %v55, 5
    %v2297 = vsel %vm2296, 1, 0
    %2298 = vset.pattern.permute.xlu0 0
    %2299 = vperm.xlu0 %2298, %v2297
    %v2300 = vpop.permute.xlu0 %2299
    %vm2301 = vcmp.eq.s32.totalorder %v2300, 1
    %v2302 = vsel %vm2301, %v2295, %v1927
    %s2303 = scalar_lea.vmem %s0, 48
    %v2304 = vld [vmem:[%s2303] sm:$0xff]
    %2306 = vset.pattern.permute.xlu0 0
    %2307 = vperm.xlu0 %2306, %v2304
    %v2308 = vpop.permute.xlu0 %2307
    %v2310 = vmul.f32 %v2308, %v68
    %v2311 = vadd.f32 %v2310, %v72
    %v2312 = vand.u32 %v52, 4294901760
    %2313 = vmatpush.msra.mxu0 %v2312
    %v2314 = vand.u32 %v51, 4294901760
    %2315 = vmatpush.msra.mxu0 %v2314
    %v2316 = vand.u32 %v50, 4294901760
    %2317 = vmatpush.msra.mxu0 %v2316
    %v2318 = vand.u32 %v49, 4294901760
    %2319 = vmatpush.msra.mxu0 %v2318
    %v2320 = vand.u32 %v48, 4294901760
    %2321 = vmatpush.msra.mxu0 %v2320
    %v2322 = vand.u32 %v47, 4294901760
    %2323 = vmatpush.msra.mxu0 %v2322
    %v2324 = vand.u32 %v46, 4294901760
    %2325 = vmatpush.msra.mxu0 %v2324
    %v2326 = vand.u32 %v45, 4294901760
    %2327 = vmatpush.msra.mxu0 %v2326
    %v2328 = vand.u32 %v44, 4294901760
    %2329 = vmatpush.msra.mxu0 %v2328
    %v2330 = vand.u32 %v43, 4294901760
    %2331 = vmatpush.msra.mxu0 %v2330
    %v2332 = vand.u32 %v42, 4294901760
    %2333 = vmatpush.msra.mxu0 %v2332
    %v2334 = vand.u32 %v41, 4294901760
    %2335 = vmatpush.msra.mxu0 %v2334
    %v2336 = vand.u32 %v40, 4294901760
    %2337 = vmatpush.msra.mxu0 %v2336
    %v2338 = vand.u32 %v39, 4294901760
    %2339 = vmatpush.msra.mxu0 %v2338
    %v2340 = vand.u32 %v38, 4294901760
    %2341 = vmatpush.msra.mxu0 %v2340
    %v2342 = vand.u32 %v37, 4294901760
    %2343 = vmatpush.msra.mxu0 %v2342
    %v2344 = vand.u32 %v2295, 4294901760
    %v2345 = vsub.f32 %v2295, %v2344
    %v2346 = vand.u32 %v2345, 4294901760
    %v2347 = vsub.f32 %v2345, %v2346
    %v2348 = vand.u32 %v2347, 4294901760
    %2349 = vmatmul.f32.gmra.mxu0 %v2348
    %v2350 = vpop.f32.mrf.mxu0
    %v2351 = vadd.f32 0.0, %v2350
    %2352 = vdwg.mxu0
    %v2353 = vand.u32 %v52, 4294901760
    %v2354 = vsub.f32 %v52, %v2353
    %v2355 = vand.u32 %v2354, 4294901760
    %v2356 = vsub.f32 %v2354, %v2355
    %v2357 = vand.u32 %v2356, 4294901760
    %2358 = vmatpush.msra.mxu0 %v2357
    %v2359 = vand.u32 %v51, 4294901760
    %v2360 = vsub.f32 %v51, %v2359
    %v2361 = vand.u32 %v2360, 4294901760
    %v2362 = vsub.f32 %v2360, %v2361
    %v2363 = vand.u32 %v2362, 4294901760
    %2364 = vmatpush.msra.mxu0 %v2363
    %v2365 = vand.u32 %v50, 4294901760
    %v2366 = vsub.f32 %v50, %v2365
    %v2367 = vand.u32 %v2366, 4294901760
    %v2368 = vsub.f32 %v2366, %v2367
    %v2369 = vand.u32 %v2368, 4294901760
    %2370 = vmatpush.msra.mxu0 %v2369
    %v2371 = vand.u32 %v49, 4294901760
    %v2372 = vsub.f32 %v49, %v2371
    %v2373 = vand.u32 %v2372, 4294901760
    %v2374 = vsub.f32 %v2372, %v2373
    %v2375 = vand.u32 %v2374, 4294901760
    %2376 = vmatpush.msra.mxu0 %v2375
    %v2377 = vand.u32 %v48, 4294901760
    %v2378 = vsub.f32 %v48, %v2377
    %v2379 = vand.u32 %v2378, 4294901760
    %v2380 = vsub.f32 %v2378, %v2379
    %v2381 = vand.u32 %v2380, 4294901760
    %2382 = vmatpush.msra.mxu0 %v2381
    %v2383 = vand.u32 %v47, 4294901760
    %v2384 = vsub.f32 %v47, %v2383
    %v2385 = vand.u32 %v2384, 4294901760
    %v2386 = vsub.f32 %v2384, %v2385
    %v2387 = vand.u32 %v2386, 4294901760
    %2388 = vmatpush.msra.mxu0 %v2387
    %v2389 = vand.u32 %v46, 4294901760
    %v2390 = vsub.f32 %v46, %v2389
    %v2391 = vand.u32 %v2390, 4294901760
    %v2392 = vsub.f32 %v2390, %v2391
    %v2393 = vand.u32 %v2392, 4294901760
    %2394 = vmatpush.msra.mxu0 %v2393
    %v2395 = vand.u32 %v45, 4294901760
    %v2396 = vsub.f32 %v45, %v2395
    %v2397 = vand.u32 %v2396, 4294901760
    %v2398 = vsub.f32 %v2396, %v2397
    %v2399 = vand.u32 %v2398, 4294901760
    %2400 = vmatpush.msra.mxu0 %v2399
    %v2401 = vand.u32 %v44, 4294901760
    %v2402 = vsub.f32 %v44, %v2401
    %v2403 = vand.u32 %v2402, 4294901760
    %v2404 = vsub.f32 %v2402, %v2403
    %v2405 = vand.u32 %v2404, 4294901760
    %2406 = vmatpush.msra.mxu0 %v2405
    %v2407 = vand.u32 %v43, 4294901760
    %v2408 = vsub.f32 %v43, %v2407
    %v2409 = vand.u32 %v2408, 4294901760
    %v2410 = vsub.f32 %v2408, %v2409
    %v2411 = vand.u32 %v2410, 4294901760
    %2412 = vmatpush.msra.mxu0 %v2411
    %v2413 = vand.u32 %v42, 4294901760
    %v2414 = vsub.f32 %v42, %v2413
    %v2415 = vand.u32 %v2414, 4294901760
    %v2416 = vsub.f32 %v2414, %v2415
    %v2417 = vand.u32 %v2416, 4294901760
    %2418 = vmatpush.msra.mxu0 %v2417
    %v2419 = vand.u32 %v41, 4294901760
    %v2420 = vsub.f32 %v41, %v2419
    %v2421 = vand.u32 %v2420, 4294901760
    %v2422 = vsub.f32 %v2420, %v2421
    %v2423 = vand.u32 %v2422, 4294901760
    %2424 = vmatpush.msra.mxu0 %v2423
    %v2425 = vand.u32 %v40, 4294901760
    %v2426 = vsub.f32 %v40, %v2425
    %v2427 = vand.u32 %v2426, 4294901760
    %v2428 = vsub.f32 %v2426, %v2427
    %v2429 = vand.u32 %v2428, 4294901760
    %2430 = vmatpush.msra.mxu0 %v2429
    %v2431 = vand.u32 %v39, 4294901760
    %v2432 = vsub.f32 %v39, %v2431
    %v2433 = vand.u32 %v2432, 4294901760
    %v2434 = vsub.f32 %v2432, %v2433
    %v2435 = vand.u32 %v2434, 4294901760
    %2436 = vmatpush.msra.mxu0 %v2435
    %v2437 = vand.u32 %v38, 4294901760
    %v2438 = vsub.f32 %v38, %v2437
    %v2439 = vand.u32 %v2438, 4294901760
    %v2440 = vsub.f32 %v2438, %v2439
    %v2441 = vand.u32 %v2440, 4294901760
    %2442 = vmatpush.msra.mxu0 %v2441
    %v2443 = vand.u32 %v37, 4294901760
    %v2444 = vsub.f32 %v37, %v2443
    %v2445 = vand.u32 %v2444, 4294901760
    %v2446 = vsub.f32 %v2444, %v2445
    %v2447 = vand.u32 %v2446, 4294901760
    %2448 = vmatpush.msra.mxu0 %v2447
    %v2449 = vand.u32 %v2295, 4294901760
    %2450 = vmatmul.f32.gmra.mxu0 %v2449
    %v2451 = vpop.f32.mrf.mxu0
    %v2452 = vadd.f32 %v2351, %v2451
    %2453 = vdwg.mxu0
    %v2454 = vand.u32 %v52, 4294901760
    %v2455 = vsub.f32 %v52, %v2454
    %2456 = vmatpush.msra.mxu0 %v2455
    %v2457 = vand.u32 %v51, 4294901760
    %v2458 = vsub.f32 %v51, %v2457
    %2459 = vmatpush.msra.mxu0 %v2458
    %v2460 = vand.u32 %v50, 4294901760
    %v2461 = vsub.f32 %v50, %v2460
    %2462 = vmatpush.msra.mxu0 %v2461
    %v2463 = vand.u32 %v49, 4294901760
    %v2464 = vsub.f32 %v49, %v2463
    %2465 = vmatpush.msra.mxu0 %v2464
    %v2466 = vand.u32 %v48, 4294901760
    %v2467 = vsub.f32 %v48, %v2466
    %2468 = vmatpush.msra.mxu0 %v2467
    %v2469 = vand.u32 %v47, 4294901760
    %v2470 = vsub.f32 %v47, %v2469
    %2471 = vmatpush.msra.mxu0 %v2470
    %v2472 = vand.u32 %v46, 4294901760
    %v2473 = vsub.f32 %v46, %v2472
    %2474 = vmatpush.msra.mxu0 %v2473
    %v2475 = vand.u32 %v45, 4294901760
    %v2476 = vsub.f32 %v45, %v2475
    %2477 = vmatpush.msra.mxu0 %v2476
    %v2478 = vand.u32 %v44, 4294901760
    %v2479 = vsub.f32 %v44, %v2478
    %2480 = vmatpush.msra.mxu0 %v2479
    %v2481 = vand.u32 %v43, 4294901760
    %v2482 = vsub.f32 %v43, %v2481
    %2483 = vmatpush.msra.mxu0 %v2482
    %v2484 = vand.u32 %v42, 4294901760
    %v2485 = vsub.f32 %v42, %v2484
    %2486 = vmatpush.msra.mxu0 %v2485
    %v2487 = vand.u32 %v41, 4294901760
    %v2488 = vsub.f32 %v41, %v2487
    %2489 = vmatpush.msra.mxu0 %v2488
    %v2490 = vand.u32 %v40, 4294901760
    %v2491 = vsub.f32 %v40, %v2490
    %2492 = vmatpush.msra.mxu0 %v2491
    %v2493 = vand.u32 %v39, 4294901760
    %v2494 = vsub.f32 %v39, %v2493
    %2495 = vmatpush.msra.mxu0 %v2494
    %v2496 = vand.u32 %v38, 4294901760
    %v2497 = vsub.f32 %v38, %v2496
    %2498 = vmatpush.msra.mxu0 %v2497
    %v2499 = vand.u32 %v37, 4294901760
    %v2500 = vsub.f32 %v37, %v2499
    %2501 = vmatpush.msra.mxu0 %v2500
    %v2502 = vand.u32 %v2295, 4294901760
    %v2503 = vsub.f32 %v2295, %v2502
    %2504 = vmatmul.f32.gmra.mxu0 %v2503
    %v2505 = vpop.f32.mrf.mxu0
    %v2506 = vadd.f32 %v2452, %v2505
    %2507 = vdwg.mxu0
    %v2508 = vand.u32 %v52, 4294901760
    %2509 = vmatpush.msra.mxu0 %v2508
    %v2510 = vand.u32 %v51, 4294901760
    %2511 = vmatpush.msra.mxu0 %v2510
    %v2512 = vand.u32 %v50, 4294901760
    %2513 = vmatpush.msra.mxu0 %v2512
    %v2514 = vand.u32 %v49, 4294901760
    %2515 = vmatpush.msra.mxu0 %v2514
    %v2516 = vand.u32 %v48, 4294901760
    %2517 = vmatpush.msra.mxu0 %v2516
    %v2518 = vand.u32 %v47, 4294901760
    %2519 = vmatpush.msra.mxu0 %v2518
    %v2520 = vand.u32 %v46, 4294901760
    %2521 = vmatpush.msra.mxu0 %v2520
    %v2522 = vand.u32 %v45, 4294901760
    %2523 = vmatpush.msra.mxu0 %v2522
    %v2524 = vand.u32 %v44, 4294901760
    %2525 = vmatpush.msra.mxu0 %v2524
    %v2526 = vand.u32 %v43, 4294901760
    %2527 = vmatpush.msra.mxu0 %v2526
    %v2528 = vand.u32 %v42, 4294901760
    %2529 = vmatpush.msra.mxu0 %v2528
    %v2530 = vand.u32 %v41, 4294901760
    %2531 = vmatpush.msra.mxu0 %v2530
    %v2532 = vand.u32 %v40, 4294901760
    %2533 = vmatpush.msra.mxu0 %v2532
    %v2534 = vand.u32 %v39, 4294901760
    %2535 = vmatpush.msra.mxu0 %v2534
    %v2536 = vand.u32 %v38, 4294901760
    %2537 = vmatpush.msra.mxu0 %v2536
    %v2538 = vand.u32 %v37, 4294901760
    %2539 = vmatpush.msra.mxu0 %v2538
    %v2540 = vand.u32 %v2295, 4294901760
    %v2541 = vsub.f32 %v2295, %v2540
    %v2542 = vand.u32 %v2541, 4294901760
    %2543 = vmatmul.f32.gmra.mxu0 %v2542
    %v2544 = vpop.f32.mrf.mxu0
    %v2545 = vadd.f32 %v2506, %v2544
    %2546 = vdwg.mxu0
    %v2547 = vand.u32 %v52, 4294901760
    %v2548 = vsub.f32 %v52, %v2547
    %v2549 = vand.u32 %v2548, 4294901760
    %2550 = vmatpush.msra.mxu0 %v2549
    %v2551 = vand.u32 %v51, 4294901760
    %v2552 = vsub.f32 %v51, %v2551
    %v2553 = vand.u32 %v2552, 4294901760
    %2554 = vmatpush.msra.mxu0 %v2553
    %v2555 = vand.u32 %v50, 4294901760
    %v2556 = vsub.f32 %v50, %v2555
    %v2557 = vand.u32 %v2556, 4294901760
    %2558 = vmatpush.msra.mxu0 %v2557
    %v2559 = vand.u32 %v49, 4294901760
    %v2560 = vsub.f32 %v49, %v2559
    %v2561 = vand.u32 %v2560, 4294901760
    %2562 = vmatpush.msra.mxu0 %v2561
    %v2563 = vand.u32 %v48, 4294901760
    %v2564 = vsub.f32 %v48, %v2563
    %v2565 = vand.u32 %v2564, 4294901760
    %2566 = vmatpush.msra.mxu0 %v2565
    %v2567 = vand.u32 %v47, 4294901760
    %v2568 = vsub.f32 %v47, %v2567
    %v2569 = vand.u32 %v2568, 4294901760
    %2570 = vmatpush.msra.mxu0 %v2569
    %v2571 = vand.u32 %v46, 4294901760
    %v2572 = vsub.f32 %v46, %v2571
    %v2573 = vand.u32 %v2572, 4294901760
    %2574 = vmatpush.msra.mxu0 %v2573
    %v2575 = vand.u32 %v45, 4294901760
    %v2576 = vsub.f32 %v45, %v2575
    %v2577 = vand.u32 %v2576, 4294901760
    %2578 = vmatpush.msra.mxu0 %v2577
    %v2579 = vand.u32 %v44, 4294901760
    %v2580 = vsub.f32 %v44, %v2579
    %v2581 = vand.u32 %v2580, 4294901760
    %2582 = vmatpush.msra.mxu0 %v2581
    %v2583 = vand.u32 %v43, 4294901760
    %v2584 = vsub.f32 %v43, %v2583
    %v2585 = vand.u32 %v2584, 4294901760
    %2586 = vmatpush.msra.mxu0 %v2585
    %v2587 = vand.u32 %v42, 4294901760
    %v2588 = vsub.f32 %v42, %v2587
    %v2589 = vand.u32 %v2588, 4294901760
    %2590 = vmatpush.msra.mxu0 %v2589
    %v2591 = vand.u32 %v41, 4294901760
    %v2592 = vsub.f32 %v41, %v2591
    %v2593 = vand.u32 %v2592, 4294901760
    %2594 = vmatpush.msra.mxu0 %v2593
    %v2595 = vand.u32 %v40, 4294901760
    %v2596 = vsub.f32 %v40, %v2595
    %v2597 = vand.u32 %v2596, 4294901760
    %2598 = vmatpush.msra.mxu0 %v2597
    %v2599 = vand.u32 %v39, 4294901760
    %v2600 = vsub.f32 %v39, %v2599
    %v2601 = vand.u32 %v2600, 4294901760
    %2602 = vmatpush.msra.mxu0 %v2601
    %v2603 = vand.u32 %v38, 4294901760
    %v2604 = vsub.f32 %v38, %v2603
    %v2605 = vand.u32 %v2604, 4294901760
    %2606 = vmatpush.msra.mxu0 %v2605
    %v2607 = vand.u32 %v37, 4294901760
    %v2608 = vsub.f32 %v37, %v2607
    %v2609 = vand.u32 %v2608, 4294901760
    %2610 = vmatpush.msra.mxu0 %v2609
    %v2611 = vand.u32 %v2295, 4294901760
    %2612 = vmatmul.f32.gmra.mxu0 %v2611
    %v2613 = vpop.f32.mrf.mxu0
    %v2614 = vadd.f32 %v2545, %v2613
    %2615 = vdwg.mxu0
    %v2616 = vand.u32 %v52, 4294901760
    %2617 = vmatpush.msra.mxu0 %v2616
    %v2618 = vand.u32 %v51, 4294901760
    %2619 = vmatpush.msra.mxu0 %v2618
    %v2620 = vand.u32 %v50, 4294901760
    %2621 = vmatpush.msra.mxu0 %v2620
    %v2622 = vand.u32 %v49, 4294901760
    %2623 = vmatpush.msra.mxu0 %v2622
    %v2624 = vand.u32 %v48, 4294901760
    %2625 = vmatpush.msra.mxu0 %v2624
    %v2626 = vand.u32 %v47, 4294901760
    %2627 = vmatpush.msra.mxu0 %v2626
    %v2628 = vand.u32 %v46, 4294901760
    %2629 = vmatpush.msra.mxu0 %v2628
    %v2630 = vand.u32 %v45, 4294901760
    %2631 = vmatpush.msra.mxu0 %v2630
    %v2632 = vand.u32 %v44, 4294901760
    %2633 = vmatpush.msra.mxu0 %v2632
    %v2634 = vand.u32 %v43, 4294901760
    %2635 = vmatpush.msra.mxu0 %v2634
    %v2636 = vand.u32 %v42, 4294901760
    %2637 = vmatpush.msra.mxu0 %v2636
    %v2638 = vand.u32 %v41, 4294901760
    %2639 = vmatpush.msra.mxu0 %v2638
    %v2640 = vand.u32 %v40, 4294901760
    %2641 = vmatpush.msra.mxu0 %v2640
    %v2642 = vand.u32 %v39, 4294901760
    %2643 = vmatpush.msra.mxu0 %v2642
    %v2644 = vand.u32 %v38, 4294901760
    %2645 = vmatpush.msra.mxu0 %v2644
    %v2646 = vand.u32 %v37, 4294901760
    %2647 = vmatpush.msra.mxu0 %v2646
    %v2648 = vand.u32 %v2295, 4294901760
    %2649 = vmatmul.f32.gmra.mxu0 %v2648
    %v2650 = vpop.f32.mrf.mxu0
    %v2651 = vadd.f32 %v2614, %v2650
    %2652 = vdwg.mxu0
    %v2653 = vadd.f32 %v2311, %v2651
    %v2654 = vtanh.pop %v2653
    %v2655 = vmul.f32 %v2653, 0.5
    %v2656 = vtanh.pop %v2655
    %v2657 = vmul.f32 %v2656, 0.5
    %v2658 = vadd.f32 %v2657, 0.5
    %v2659 = vsel %vm60, %v2654, %v2658
    %2660 = vrot.lane.b32.xlu0 %v2659, 112
    %v2661 = vpop.permute.xlu0 %2660
    %2662 = vrot.lane.b32.xlu0 %v2659, 96
    %v2663 = vpop.permute.xlu0 %2662
    %2664 = vrot.lane.b32.xlu0 %v2659, 80
    %v2665 = vpop.permute.xlu0 %2664
    %v2666 = vmul.f32 %v2661, %v2293
    %v2667 = vmul.f32 %v2659, %v2663
    %v2668 = vadd.f32 %v2666, %v2667
    %v2669 = vtanh.pop %v2668
    %v2670 = vmul.f32 %v2665, %v2669
    %vm2671 = vcmp.eq.s32.totalorder %v55, 6
    %v2672 = vsel %vm2671, 1, 0
    %2673 = vset.pattern.permute.xlu0 0
    %2674 = vperm.xlu0 %2673, %v2672
    %v2675 = vpop.permute.xlu0 %2674
    %vm2676 = vcmp.eq.s32.totalorder %v2675, 1
    %v2677 = vsel %vm2676, %v2670, %v2302
    %s2678 = scalar_lea.vmem %s0, 56
    %v2679 = vld [vmem:[%s2678] sm:$0xff]
    %2681 = vset.pattern.permute.xlu0 0
    %2682 = vperm.xlu0 %2681, %v2679
    %v2683 = vpop.permute.xlu0 %2682
    %v2685 = vmul.f32 %v2683, %v68
    %v2686 = vadd.f32 %v2685, %v72
    %v2687 = vand.u32 %v52, 4294901760
    %2688 = vmatpush.msra.mxu0 %v2687
    %v2689 = vand.u32 %v51, 4294901760
    %2690 = vmatpush.msra.mxu0 %v2689
    %v2691 = vand.u32 %v50, 4294901760
    %2692 = vmatpush.msra.mxu0 %v2691
    %v2693 = vand.u32 %v49, 4294901760
    %2694 = vmatpush.msra.mxu0 %v2693
    %v2695 = vand.u32 %v48, 4294901760
    %2696 = vmatpush.msra.mxu0 %v2695
    %v2697 = vand.u32 %v47, 4294901760
    %2698 = vmatpush.msra.mxu0 %v2697
    %v2699 = vand.u32 %v46, 4294901760
    %2700 = vmatpush.msra.mxu0 %v2699
    %v2701 = vand.u32 %v45, 4294901760
    %2702 = vmatpush.msra.mxu0 %v2701
    %v2703 = vand.u32 %v44, 4294901760
    %2704 = vmatpush.msra.mxu0 %v2703
    %v2705 = vand.u32 %v43, 4294901760
    %2706 = vmatpush.msra.mxu0 %v2705
    %v2707 = vand.u32 %v42, 4294901760
    %2708 = vmatpush.msra.mxu0 %v2707
    %v2709 = vand.u32 %v41, 4294901760
    %2710 = vmatpush.msra.mxu0 %v2709
    %v2711 = vand.u32 %v40, 4294901760
    %2712 = vmatpush.msra.mxu0 %v2711
    %v2713 = vand.u32 %v39, 4294901760
    %2714 = vmatpush.msra.mxu0 %v2713
    %v2715 = vand.u32 %v38, 4294901760
    %2716 = vmatpush.msra.mxu0 %v2715
    %v2717 = vand.u32 %v37, 4294901760
    %2718 = vmatpush.msra.mxu0 %v2717
    %v2719 = vand.u32 %v2670, 4294901760
    %v2720 = vsub.f32 %v2670, %v2719
    %v2721 = vand.u32 %v2720, 4294901760
    %v2722 = vsub.f32 %v2720, %v2721
    %v2723 = vand.u32 %v2722, 4294901760
    %2724 = vmatmul.f32.gmra.mxu0 %v2723
    %v2725 = vpop.f32.mrf.mxu0
    %v2726 = vadd.f32 0.0, %v2725
    %2727 = vdwg.mxu0
    %v2728 = vand.u32 %v52, 4294901760
    %v2729 = vsub.f32 %v52, %v2728
    %v2730 = vand.u32 %v2729, 4294901760
    %v2731 = vsub.f32 %v2729, %v2730
    %v2732 = vand.u32 %v2731, 4294901760
    %2733 = vmatpush.msra.mxu0 %v2732
    %v2734 = vand.u32 %v51, 4294901760
    %v2735 = vsub.f32 %v51, %v2734
    %v2736 = vand.u32 %v2735, 4294901760
    %v2737 = vsub.f32 %v2735, %v2736
    %v2738 = vand.u32 %v2737, 4294901760
    %2739 = vmatpush.msra.mxu0 %v2738
    %v2740 = vand.u32 %v50, 4294901760
    %v2741 = vsub.f32 %v50, %v2740
    %v2742 = vand.u32 %v2741, 4294901760
    %v2743 = vsub.f32 %v2741, %v2742
    %v2744 = vand.u32 %v2743, 4294901760
    %2745 = vmatpush.msra.mxu0 %v2744
    %v2746 = vand.u32 %v49, 4294901760
    %v2747 = vsub.f32 %v49, %v2746
    %v2748 = vand.u32 %v2747, 4294901760
    %v2749 = vsub.f32 %v2747, %v2748
    %v2750 = vand.u32 %v2749, 4294901760
    %2751 = vmatpush.msra.mxu0 %v2750
    %v2752 = vand.u32 %v48, 4294901760
    %v2753 = vsub.f32 %v48, %v2752
    %v2754 = vand.u32 %v2753, 4294901760
    %v2755 = vsub.f32 %v2753, %v2754
    %v2756 = vand.u32 %v2755, 4294901760
    %2757 = vmatpush.msra.mxu0 %v2756
    %v2758 = vand.u32 %v47, 4294901760
    %v2759 = vsub.f32 %v47, %v2758
    %v2760 = vand.u32 %v2759, 4294901760
    %v2761 = vsub.f32 %v2759, %v2760
    %v2762 = vand.u32 %v2761, 4294901760
    %2763 = vmatpush.msra.mxu0 %v2762
    %v2764 = vand.u32 %v46, 4294901760
    %v2765 = vsub.f32 %v46, %v2764
    %v2766 = vand.u32 %v2765, 4294901760
    %v2767 = vsub.f32 %v2765, %v2766
    %v2768 = vand.u32 %v2767, 4294901760
    %2769 = vmatpush.msra.mxu0 %v2768
    %v2770 = vand.u32 %v45, 4294901760
    %v2771 = vsub.f32 %v45, %v2770
    %v2772 = vand.u32 %v2771, 4294901760
    %v2773 = vsub.f32 %v2771, %v2772
    %v2774 = vand.u32 %v2773, 4294901760
    %2775 = vmatpush.msra.mxu0 %v2774
    %v2776 = vand.u32 %v44, 4294901760
    %v2777 = vsub.f32 %v44, %v2776
    %v2778 = vand.u32 %v2777, 4294901760
    %v2779 = vsub.f32 %v2777, %v2778
    %v2780 = vand.u32 %v2779, 4294901760
    %2781 = vmatpush.msra.mxu0 %v2780
    %v2782 = vand.u32 %v43, 4294901760
    %v2783 = vsub.f32 %v43, %v2782
    %v2784 = vand.u32 %v2783, 4294901760
    %v2785 = vsub.f32 %v2783, %v2784
    %v2786 = vand.u32 %v2785, 4294901760
    %2787 = vmatpush.msra.mxu0 %v2786
    %v2788 = vand.u32 %v42, 4294901760
    %v2789 = vsub.f32 %v42, %v2788
    %v2790 = vand.u32 %v2789, 4294901760
    %v2791 = vsub.f32 %v2789, %v2790
    %v2792 = vand.u32 %v2791, 4294901760
    %2793 = vmatpush.msra.mxu0 %v2792
    %v2794 = vand.u32 %v41, 4294901760
    %v2795 = vsub.f32 %v41, %v2794
    %v2796 = vand.u32 %v2795, 4294901760
    %v2797 = vsub.f32 %v2795, %v2796
    %v2798 = vand.u32 %v2797, 4294901760
    %2799 = vmatpush.msra.mxu0 %v2798
    %v2800 = vand.u32 %v40, 4294901760
    %v2801 = vsub.f32 %v40, %v2800
    %v2802 = vand.u32 %v2801, 4294901760
    %v2803 = vsub.f32 %v2801, %v2802
    %v2804 = vand.u32 %v2803, 4294901760
    %2805 = vmatpush.msra.mxu0 %v2804
    %v2806 = vand.u32 %v39, 4294901760
    %v2807 = vsub.f32 %v39, %v2806
    %v2808 = vand.u32 %v2807, 4294901760
    %v2809 = vsub.f32 %v2807, %v2808
    %v2810 = vand.u32 %v2809, 4294901760
    %2811 = vmatpush.msra.mxu0 %v2810
    %v2812 = vand.u32 %v38, 4294901760
    %v2813 = vsub.f32 %v38, %v2812
    %v2814 = vand.u32 %v2813, 4294901760
    %v2815 = vsub.f32 %v2813, %v2814
    %v2816 = vand.u32 %v2815, 4294901760
    %2817 = vmatpush.msra.mxu0 %v2816
    %v2818 = vand.u32 %v37, 4294901760
    %v2819 = vsub.f32 %v37, %v2818
    %v2820 = vand.u32 %v2819, 4294901760
    %v2821 = vsub.f32 %v2819, %v2820
    %v2822 = vand.u32 %v2821, 4294901760
    %2823 = vmatpush.msra.mxu0 %v2822
    %v2824 = vand.u32 %v2670, 4294901760
    %2825 = vmatmul.f32.gmra.mxu0 %v2824
    %v2826 = vpop.f32.mrf.mxu0
    %v2827 = vadd.f32 %v2726, %v2826
    %2828 = vdwg.mxu0
    %v2829 = vand.u32 %v52, 4294901760
    %v2830 = vsub.f32 %v52, %v2829
    %2831 = vmatpush.msra.mxu0 %v2830
    %v2832 = vand.u32 %v51, 4294901760
    %v2833 = vsub.f32 %v51, %v2832
    %2834 = vmatpush.msra.mxu0 %v2833
    %v2835 = vand.u32 %v50, 4294901760
    %v2836 = vsub.f32 %v50, %v2835
    %2837 = vmatpush.msra.mxu0 %v2836
    %v2838 = vand.u32 %v49, 4294901760
    %v2839 = vsub.f32 %v49, %v2838
    %2840 = vmatpush.msra.mxu0 %v2839
    %v2841 = vand.u32 %v48, 4294901760
    %v2842 = vsub.f32 %v48, %v2841
    %2843 = vmatpush.msra.mxu0 %v2842
    %v2844 = vand.u32 %v47, 4294901760
    %v2845 = vsub.f32 %v47, %v2844
    %2846 = vmatpush.msra.mxu0 %v2845
    %v2847 = vand.u32 %v46, 4294901760
    %v2848 = vsub.f32 %v46, %v2847
    %2849 = vmatpush.msra.mxu0 %v2848
    %v2850 = vand.u32 %v45, 4294901760
    %v2851 = vsub.f32 %v45, %v2850
    %2852 = vmatpush.msra.mxu0 %v2851
    %v2853 = vand.u32 %v44, 4294901760
    %v2854 = vsub.f32 %v44, %v2853
    %2855 = vmatpush.msra.mxu0 %v2854
    %v2856 = vand.u32 %v43, 4294901760
    %v2857 = vsub.f32 %v43, %v2856
    %2858 = vmatpush.msra.mxu0 %v2857
    %v2859 = vand.u32 %v42, 4294901760
    %v2860 = vsub.f32 %v42, %v2859
    %2861 = vmatpush.msra.mxu0 %v2860
    %v2862 = vand.u32 %v41, 4294901760
    %v2863 = vsub.f32 %v41, %v2862
    %2864 = vmatpush.msra.mxu0 %v2863
    %v2865 = vand.u32 %v40, 4294901760
    %v2866 = vsub.f32 %v40, %v2865
    %2867 = vmatpush.msra.mxu0 %v2866
    %v2868 = vand.u32 %v39, 4294901760
    %v2869 = vsub.f32 %v39, %v2868
    %2870 = vmatpush.msra.mxu0 %v2869
    %v2871 = vand.u32 %v38, 4294901760
    %v2872 = vsub.f32 %v38, %v2871
    %2873 = vmatpush.msra.mxu0 %v2872
    %v2874 = vand.u32 %v37, 4294901760
    %v2875 = vsub.f32 %v37, %v2874
    %2876 = vmatpush.msra.mxu0 %v2875
    %v2877 = vand.u32 %v2670, 4294901760
    %v2878 = vsub.f32 %v2670, %v2877
    %2879 = vmatmul.f32.gmra.mxu0 %v2878
    %v2880 = vpop.f32.mrf.mxu0
    %v2881 = vadd.f32 %v2827, %v2880
    %2882 = vdwg.mxu0
    %v2883 = vand.u32 %v52, 4294901760
    %2884 = vmatpush.msra.mxu0 %v2883
    %v2885 = vand.u32 %v51, 4294901760
    %2886 = vmatpush.msra.mxu0 %v2885
    %v2887 = vand.u32 %v50, 4294901760
    %2888 = vmatpush.msra.mxu0 %v2887
    %v2889 = vand.u32 %v49, 4294901760
    %2890 = vmatpush.msra.mxu0 %v2889
    %v2891 = vand.u32 %v48, 4294901760
    %2892 = vmatpush.msra.mxu0 %v2891
    %v2893 = vand.u32 %v47, 4294901760
    %2894 = vmatpush.msra.mxu0 %v2893
    %v2895 = vand.u32 %v46, 4294901760
    %2896 = vmatpush.msra.mxu0 %v2895
    %v2897 = vand.u32 %v45, 4294901760
    %2898 = vmatpush.msra.mxu0 %v2897
    %v2899 = vand.u32 %v44, 4294901760
    %2900 = vmatpush.msra.mxu0 %v2899
    %v2901 = vand.u32 %v43, 4294901760
    %2902 = vmatpush.msra.mxu0 %v2901
    %v2903 = vand.u32 %v42, 4294901760
    %2904 = vmatpush.msra.mxu0 %v2903
    %v2905 = vand.u32 %v41, 4294901760
    %2906 = vmatpush.msra.mxu0 %v2905
    %v2907 = vand.u32 %v40, 4294901760
    %2908 = vmatpush.msra.mxu0 %v2907
    %v2909 = vand.u32 %v39, 4294901760
    %2910 = vmatpush.msra.mxu0 %v2909
    %v2911 = vand.u32 %v38, 4294901760
    %2912 = vmatpush.msra.mxu0 %v2911
    %v2913 = vand.u32 %v37, 4294901760
    %2914 = vmatpush.msra.mxu0 %v2913
    %v2915 = vand.u32 %v2670, 4294901760
    %v2916 = vsub.f32 %v2670, %v2915
    %v2917 = vand.u32 %v2916, 4294901760
    %2918 = vmatmul.f32.gmra.mxu0 %v2917
    %v2919 = vpop.f32.mrf.mxu0
    %v2920 = vadd.f32 %v2881, %v2919
    %2921 = vdwg.mxu0
    %v2922 = vand.u32 %v52, 4294901760
    %v2923 = vsub.f32 %v52, %v2922
    %v2924 = vand.u32 %v2923, 4294901760
    %2925 = vmatpush.msra.mxu0 %v2924
    %v2926 = vand.u32 %v51, 4294901760
    %v2927 = vsub.f32 %v51, %v2926
    %v2928 = vand.u32 %v2927, 4294901760
    %2929 = vmatpush.msra.mxu0 %v2928
    %v2930 = vand.u32 %v50, 4294901760
    %v2931 = vsub.f32 %v50, %v2930
    %v2932 = vand.u32 %v2931, 4294901760
    %2933 = vmatpush.msra.mxu0 %v2932
    %v2934 = vand.u32 %v49, 4294901760
    %v2935 = vsub.f32 %v49, %v2934
    %v2936 = vand.u32 %v2935, 4294901760
    %2937 = vmatpush.msra.mxu0 %v2936
    %v2938 = vand.u32 %v48, 4294901760
    %v2939 = vsub.f32 %v48, %v2938
    %v2940 = vand.u32 %v2939, 4294901760
    %2941 = vmatpush.msra.mxu0 %v2940
    %v2942 = vand.u32 %v47, 4294901760
    %v2943 = vsub.f32 %v47, %v2942
    %v2944 = vand.u32 %v2943, 4294901760
    %2945 = vmatpush.msra.mxu0 %v2944
    %v2946 = vand.u32 %v46, 4294901760
    %v2947 = vsub.f32 %v46, %v2946
    %v2948 = vand.u32 %v2947, 4294901760
    %2949 = vmatpush.msra.mxu0 %v2948
    %v2950 = vand.u32 %v45, 4294901760
    %v2951 = vsub.f32 %v45, %v2950
    %v2952 = vand.u32 %v2951, 4294901760
    %2953 = vmatpush.msra.mxu0 %v2952
    %v2954 = vand.u32 %v44, 4294901760
    %v2955 = vsub.f32 %v44, %v2954
    %v2956 = vand.u32 %v2955, 4294901760
    %2957 = vmatpush.msra.mxu0 %v2956
    %v2958 = vand.u32 %v43, 4294901760
    %v2959 = vsub.f32 %v43, %v2958
    %v2960 = vand.u32 %v2959, 4294901760
    %2961 = vmatpush.msra.mxu0 %v2960
    %v2962 = vand.u32 %v42, 4294901760
    %v2963 = vsub.f32 %v42, %v2962
    %v2964 = vand.u32 %v2963, 4294901760
    %2965 = vmatpush.msra.mxu0 %v2964
    %v2966 = vand.u32 %v41, 4294901760
    %v2967 = vsub.f32 %v41, %v2966
    %v2968 = vand.u32 %v2967, 4294901760
    %2969 = vmatpush.msra.mxu0 %v2968
    %v2970 = vand.u32 %v40, 4294901760
    %v2971 = vsub.f32 %v40, %v2970
    %v2972 = vand.u32 %v2971, 4294901760
    %2973 = vmatpush.msra.mxu0 %v2972
    %v2974 = vand.u32 %v39, 4294901760
    %v2975 = vsub.f32 %v39, %v2974
    %v2976 = vand.u32 %v2975, 4294901760
    %2977 = vmatpush.msra.mxu0 %v2976
    %v2978 = vand.u32 %v38, 4294901760
    %v2979 = vsub.f32 %v38, %v2978
    %v2980 = vand.u32 %v2979, 4294901760
    %2981 = vmatpush.msra.mxu0 %v2980
    %v2982 = vand.u32 %v37, 4294901760
    %v2983 = vsub.f32 %v37, %v2982
    %v2984 = vand.u32 %v2983, 4294901760
    %2985 = vmatpush.msra.mxu0 %v2984
    %v2986 = vand.u32 %v2670, 4294901760
    %2987 = vmatmul.f32.gmra.mxu0 %v2986
    %v2988 = vpop.f32.mrf.mxu0
    %v2989 = vadd.f32 %v2920, %v2988
    %2990 = vdwg.mxu0
    %v2991 = vand.u32 %v52, 4294901760
    %2992 = vmatpush.msra.mxu0 %v2991
    %v2993 = vand.u32 %v51, 4294901760
    %2994 = vmatpush.msra.mxu0 %v2993
    %v2995 = vand.u32 %v50, 4294901760
    %2996 = vmatpush.msra.mxu0 %v2995
    %v2997 = vand.u32 %v49, 4294901760
    %2998 = vmatpush.msra.mxu0 %v2997
    %v2999 = vand.u32 %v48, 4294901760
    %3000 = vmatpush.msra.mxu0 %v2999
    %v3001 = vand.u32 %v47, 4294901760
    %3002 = vmatpush.msra.mxu0 %v3001
    %v3003 = vand.u32 %v46, 4294901760
    %3004 = vmatpush.msra.mxu0 %v3003
    %v3005 = vand.u32 %v45, 4294901760
    %3006 = vmatpush.msra.mxu0 %v3005
    %v3007 = vand.u32 %v44, 4294901760
    %3008 = vmatpush.msra.mxu0 %v3007
    %v3009 = vand.u32 %v43, 4294901760
    %3010 = vmatpush.msra.mxu0 %v3009
    %v3011 = vand.u32 %v42, 4294901760
    %3012 = vmatpush.msra.mxu0 %v3011
    %v3013 = vand.u32 %v41, 4294901760
    %3014 = vmatpush.msra.mxu0 %v3013
    %v3015 = vand.u32 %v40, 4294901760
    %3016 = vmatpush.msra.mxu0 %v3015
    %v3017 = vand.u32 %v39, 4294901760
    %3018 = vmatpush.msra.mxu0 %v3017
    %v3019 = vand.u32 %v38, 4294901760
    %3020 = vmatpush.msra.mxu0 %v3019
    %v3021 = vand.u32 %v37, 4294901760
    %3022 = vmatpush.msra.mxu0 %v3021
    %v3023 = vand.u32 %v2670, 4294901760
    %3024 = vmatmul.f32.gmra.mxu0 %v3023
    %v3025 = vpop.f32.mrf.mxu0
    %v3026 = vadd.f32 %v2989, %v3025
    %3027 = vdwg.mxu0
    %v3028 = vadd.f32 %v2686, %v3026
    %v3029 = vtanh.pop %v3028
    %v3030 = vmul.f32 %v3028, 0.5
    %v3031 = vtanh.pop %v3030
    %v3032 = vmul.f32 %v3031, 0.5
    %v3033 = vadd.f32 %v3032, 0.5
    %v3034 = vsel %vm60, %v3029, %v3033
    %3035 = vrot.lane.b32.xlu0 %v3034, 112
    %v3036 = vpop.permute.xlu0 %3035
    %3037 = vrot.lane.b32.xlu0 %v3034, 96
    %v3038 = vpop.permute.xlu0 %3037
    %3039 = vrot.lane.b32.xlu0 %v3034, 80
    %v3040 = vpop.permute.xlu0 %3039
    %v3041 = vmul.f32 %v3036, %v2668
    %v3042 = vmul.f32 %v3034, %v3038
    %v3043 = vadd.f32 %v3041, %v3042
    %v3044 = vtanh.pop %v3043
    %v3045 = vmul.f32 %v3040, %v3044
    %vm3046 = vcmp.eq.s32.totalorder %v55, 7
    %v3047 = vsel %vm3046, 1, 0
    %3048 = vset.pattern.permute.xlu0 0
    %3049 = vperm.xlu0 %3048, %v3047
    %v3050 = vpop.permute.xlu0 %3049
    %vm3051 = vcmp.eq.s32.totalorder %v3050, 1
    %v3052 = vsel %vm3051, %v3045, %v2677
    %3053 = vst [vmem:[#allocation5] sm:$0xff] %v3052
    // Predicated region
    $region26: #{tpu_custom_call.1} parent=1 // pred_check
      _
    $region27: #{tpu_custom_call.1} parent=1 // pred_check_branch
      %3055 = sbr.rel (0) target = $region29
    $region28: #{tpu_custom_call.1} parent=1 // pred_region
      %3057 = vsyncadd [#allocation4], 0
      %s3059 = sshll.u32 [#allocation5], 4
      %s3060 = int_to_ptr.vmem [resolvable:$true] %s3059
      %s3061 = sshll.u32 %s5, 4
      %s3062 = int_to_ptr.hbm [resolvable:$true] %s3061
      %3064 = dma.vmem_to_hbm [thread:$0]  %s3060, 128, %s3062, [#allocation4]
    $region29: #{tpu_custom_call.1} parent=1 // pred_fallthru
      _
    // Predicated region
    $region30: #{tpu_custom_call.1} parent=1 // pred_check
      _
    $region31: #{tpu_custom_call.1} parent=1 // pred_check_branch
      %3066 = sbr.rel (0) target = $region33
    $region32: #{tpu_custom_call.1} parent=1 // pred_region
      %3068 = dma.done [#allocation4], 128
    $region33: #{tpu_custom_call.1} parent=1 // pred_fallthru
      _
    %3069 = vsyncpa [#allocation3], 1
    %3070 = vsyncpa [#allocation4], 1

</llo_original>
